<compile_context>
chip_gen: v5e
topology: v5e:2x2
jax: 0.10.0
libtpu: 0.0.40
codegen_flags: <defaults>
</compile_context>

<pallas_src>
import jax
import jax.numpy as jnp
import numpy as np
from jax.experimental import pallas as pl
from jax.experimental.pallas import tpu as pltpu

_MATMUL_DTYPE = jnp.bfloat16   # MXU operand dtype (f32 accumulation/epilogues)
_BT = 16                       # images per grid step (multiple of 8)


# ---------------------------------------------------------------------------
# Fused kernel: one grid step == Bt images.
# ---------------------------------------------------------------------------
def _lenet_kernel(xr_ref, w1_ref, b1_ref, w2_ref, b2_ref, g1_ref, bf1_ref,
                  wf2_ref, bf2_ref, wf3_ref, bf3_ref, out_ref,
                  a1_ref, acc2_ref, xf_ref):
    f32 = jnp.float32
    wdt = w1_ref.dtype
    bt = out_ref.shape[0]
    half = 14 * bt

    # ---- conv1 (+bias+ReLU+2x2 pool): two (14*Bt,160)x(160,256) GEMMs ------
    # xr rows are (parity, out-row j, image b); columns pack (kh, iw).  W1
    # columns hold even out-width positions in lanes 0..127 and odd in
    # 128..255, so the width pool is a lane-aligned max and the height pool
    # is the max of the two parity halves.
    c_e = jnp.dot(xr_ref[0, pl.ds(0, half), :], w1_ref[...],
                  preferred_element_type=f32)                       # (14*Bt,256)
    w_e = jnp.maximum(c_e[:, 0:128], c_e[:, 128:256])
    c_o = jnp.dot(xr_ref[0, pl.ds(half, half), :], w1_ref[...],
                  preferred_element_type=f32)
    w_o = jnp.maximum(c_o[:, 0:128], c_o[:, 128:256])
    a1_ref[...] = jnp.maximum(jnp.maximum(w_e, w_o) + b1_ref[...], 0.0)

    # ---- conv2: 5 accumulating (10*Bt,128)x(128,256) GEMMs over kh ---------
    # a1 rows are h-major ((h, image)), so tap kh is the contiguous slice
    # starting at row kh*Bt: every image shifts together, no garbage rows.
    for kh in range(5):
        slab = a1_ref[pl.ds(kh * bt, 10 * bt), :].astype(wdt)       # (10*Bt,128)
        part = jnp.dot(slab, w2_ref[kh], preferred_element_type=f32)
        if kh == 0:
            acc2_ref[...] = part
        else:
            acc2_ref[...] += part

    # ---- conv2 bias+ReLU+2x2 pool fused with fc1 input packing -------------
    # Pooled row r of the 5x5x16 map goes to lane group r of xf; lanes 80..127
    # of each group stay zero and meet zero rows of g1.
    for r in range(5):
        top = jnp.maximum(acc2_ref[pl.ds((2 * r) * bt, bt), 0:128],
                          acc2_ref[pl.ds((2 * r) * bt, bt), 128:256])
        bot = jnp.maximum(acc2_ref[pl.ds((2 * r + 1) * bt, bt), 0:128],
                          acc2_ref[pl.ds((2 * r + 1) * bt, bt), 128:256])
        xf_ref[:, r * 128:(r + 1) * 128] = jnp.maximum(
            jnp.maximum(top, bot) + b2_ref[...], 0.0)

    # ---- fc1 (one (Bt,640)x(640,120) GEMM), fc2, fc3 ------------------------
    y = jnp.dot(xf_ref[...].astype(wdt), g1_ref[...], preferred_element_type=f32)
    y = jnp.maximum(y + bf1_ref[...], 0.0)
    y = jnp.dot(y.astype(wdt), wf2_ref[...], preferred_element_type=f32)
    y = jnp.maximum(y + bf2_ref[...], 0.0)
    y = jnp.dot(y.astype(wdt), wf3_ref[...], preferred_element_type=f32)
    out_ref[...] = (y + bf3_ref[...]).astype(out_ref.dtype)         # (Bt,128)


# ---------------------------------------------------------------------------
# Wrapper-side (plain JAX) weight / input repacking.
# ---------------------------------------------------------------------------
def _pack_params(params, mdt=_MATMUL_DTYPE):
    f32 = jnp.float32
    w1 = params["w1"].astype(f32)      # (5, 5, 1, 6)   (KH, KW, Cin, Cout)
    w2 = params["w2"].astype(f32)      # (5, 5, 6, 16)
    wf1 = params["wf1"].astype(f32)    # (400, 120)
    wf2 = params["wf2"].astype(f32)    # (120, 84)
    wf3 = params["wf3"].astype(f32)    # (84, 10)

    def pad_last(a, n):
        return jnp.pad(a, [(0, 0)] * (a.ndim - 1) + [(0, n - a.shape[-1])])

    # conv1 Toeplitz slab: rows (kh*32+iw), cols = even|odd out-width groups.
    d = jnp.arange(32)[:, None] - jnp.arange(28)[None, :]            # iw - ow
    t1 = w1[:, :, 0, :][:, jnp.clip(d, 0, 4), :]                     # (5,32,28,6)
    t1 = jnp.where(((d >= 0) & (d < 5))[None, :, :, None], t1, 0.0)
    e1 = pad_last(t1[:, :, 0::2, :].reshape(5, 32, 84), 128)
    o1 = pad_last(t1[:, :, 1::2, :].reshape(5, 32, 84), 128)
    W1 = jnp.concatenate([e1, o1], axis=-1).reshape(160, 256)

    # conv2 Toeplitz slabs per kh: rows (iw1*6+ci), cols = even|odd out-width.
    d = jnp.arange(14)[:, None] - jnp.arange(10)[None, :]
    t2 = w2[:, jnp.clip(d, 0, 4), :, :]                              # (5,14,10,6,16)
    t2 = jnp.where(((d >= 0) & (d < 5))[None, :, :, None, None], t2, 0.0)
    t2 = jnp.transpose(t2, (0, 1, 3, 2, 4))                          # (5,14,6,10,16)
    e2 = jnp.pad(pad_last(t2[:, :, :, 0::2, :].reshape(5, 84, 80), 128),
                 ((0, 0), (0, 44), (0, 0)))
    o2 = jnp.pad(pad_last(t2[:, :, :, 1::2, :].reshape(5, 84, 80), 128),
                 ((0, 0), (0, 44), (0, 0)))
    W2 = jnp.concatenate([e2, o2], axis=-1)                          # (5,128,256)

    # fc1 consumes xf layout (r*128 + m*16 + c); torch flatten = c*25 + r*5 + m.
    G1 = jnp.transpose(wf1.reshape(16, 5, 5, 120), (1, 2, 0, 3)).reshape(5, 80, 120)
    G1 = jnp.pad(G1, ((0, 0), (0, 48), (0, 0))).reshape(640, 120)

    return dict(
        w1=W1.astype(mdt),
        b1=pad_last(jnp.tile(params["b1"].astype(f32), 14)[None, :], 128),
        w2=W2.astype(mdt),
        b2=pad_last(jnp.tile(params["b2"].astype(f32), 5)[None, :], 128),
        g1=G1.astype(mdt),
        bf1=params["bf1"].astype(f32)[None, :],
        wf2=wf2.astype(mdt),
        bf2=params["bf2"].astype(f32)[None, :],
        wf3=pad_last(wf3, 128).astype(mdt),
        bf3=pad_last(params["bf3"].astype(f32)[None, :], 128),
    )


def _pack_input(x_nchw, bt, mdt=_MATMUL_DTYPE):
    """im2row over kh (h-parity-major rows): (G, 28*Bt, 160)."""
    b = x_nchw.shape[0]
    bp = ((b + bt - 1) // bt) * bt
    x = x_nchw.reshape(b, 32, 32)
    if bp != b:
        x = jnp.pad(x, ((0, bp - b), (0, 0), (0, 0)))
    xr = jnp.concatenate([x[:, kh:kh + 28, :] for kh in range(5)], axis=-1)
    xr = jnp.stack([xr[:, 0::2, :], xr[:, 1::2, :]], axis=1)         # (Bp,2,14,160)
    g = bp // bt
    xr = xr.reshape(g, bt, 2, 14, 160).transpose(0, 2, 3, 1, 4)      # (G,2,14,Bt,160)
    return xr.reshape(g, 28 * bt, 160).astype(mdt), bp


# ---------------------------------------------------------------------------
# Forward pass (single fused pallas_call, grid over batch chunks).
# ---------------------------------------------------------------------------
def lenet_forward(params, x_nchw, bt=_BT):
    """Fused LeNet forward.  x_nchw: (B, 1, 32, 32) float32 -> (B, 10)."""
    b = x_nchw.shape[0]
    assert x_nchw.shape[1:] == (1, 32, 32)
    assert bt % 8 == 0
    xr, bp = _pack_input(x_nchw, bt)
    p = _pack_params(params)
    g = bp // bt

    def full(a):                          # whole-array block, same every step
        zero = (0,) * a.ndim
        return pl.BlockSpec(a.shape, lambda i, _z=zero: _z)

    weights = (p["w1"], p["b1"], p["w2"], p["b2"], p["g1"], p["bf1"],
               p["wf2"], p["bf2"], p["wf3"], p["bf3"])

    out = pl.pallas_call(
        _lenet_kernel,
        out_shape=jax.ShapeDtypeStruct((bp, 128), jnp.float32),
        grid=(g,),
        in_specs=[pl.BlockSpec((1, 28 * bt, 160), lambda i: (i, 0, 0))]
                + [full(a) for a in weights],
        out_specs=pl.BlockSpec((bt, 128), lambda i: (i, 0)),
        scratch_shapes=[pltpu.VMEM((14 * bt, 128), jnp.float32),   # pooled conv1
                        pltpu.VMEM((10 * bt, 256), jnp.float32),   # conv2 accum
                        pltpu.VMEM((bt, 640), jnp.float32)],       # fc1 input
        compiler_params=pltpu.CompilerParams(
            dimension_semantics=("parallel",)),
    )(xr, *weights)
    return out[:b, :10]


# ---------------------------------------------------------------------------
# NumPy float64 reference (mirrors the PyTorch module) + params + main.
# ---------------------------------------------------------------------------
def _reference_forward(params, x_nchw):
    p = {k: np.asarray(v, np.float64) for k, v in params.items()}
    a = np.transpose(np.asarray(x_nchw, np.float64), (0, 2, 3, 1))     # NHWC

    def conv(a, w, bias):                          # w: (KH, KW, Cin, Cout), 'valid'
        kh, kw = w.shape[:2]
        oh, ow = a.shape[1] - kh + 1, a.shape[2] - kw + 1
        acc = np.zeros((a.shape[0], oh, ow, w.shape[3]))
        for i in range(kh):
            for j in range(kw):
                acc += np.einsum("bhwc,cd->bhwd", a[:, i:i + oh, j:j + ow, :], w[i, j])
        return acc + bias

    def pool(a):
        return np.maximum(np.maximum(a[:, 0::2, 0::2, :], a[:, 0::2, 1::2, :]),
                          np.maximum(a[:, 1::2, 0::2, :], a[:, 1::2, 1::2, :]))

    a = pool(np.maximum(conv(a, p["w1"], p["b1"]), 0.0))
    a = pool(np.maximum(conv(a, p["w2"], p["b2"]), 0.0))
    a = np.transpose(a, (0, 3, 1, 2)).reshape(a.shape[0], -1)          # torch .view
    a = np.maximum(a @ p["wf1"] + p["bf1"], 0.0)
    a = np.maximum(a @ p["wf2"] + p["bf2"], 0.0)
    return a @ p["wf3"] + p["bf3"]


def init_params(key):
    ks = jax.random.split(key, 10)

    def u(k, shape, fan_in):
        bound = 1.0 / (fan_in ** 0.5)
        return jax.random.uniform(k, shape, jnp.float32, -bound, bound)

    return {
        # conv weights (KH, KW, Cin, Cout); linear weights (Din, Dout).
        "w1": u(ks[0], (5, 5, 1, 6), 25), "b1": u(ks[1], (6,), 25),
        "w2": u(ks[2], (5, 5, 6, 16), 150), "b2": u(ks[3], (16,), 150),
        "wf1": u(ks[4], (400, 120), 400), "bf1": u(ks[5], (120,), 400),
        "wf2": u(ks[6], (120, 84), 120), "bf2": u(ks[7], (84,), 120),
        "wf3": u(ks[8], (84, 10), 84), "bf3": u(ks[9], (10,), 84),
    }


if __name__ == "__main__":
    key = jax.random.PRNGKey(0)
    pkey, xkey = jax.random.split(key)
    params = init_params(pkey)
    x = jax.random.normal(xkey, (2, 1, 32, 32), jnp.float32)   # NCHW like PyTorch

    out = jax.block_until_ready(jax.jit(lenet_forward)(params, x))
    assert out.shape == (2, 10) and out.dtype == jnp.float32

    ref = _reference_forward(params, x)
    tol = 3e-2 if _MATMUL_DTYPE is jnp.bfloat16 else 1e-2   # bf16 operands, f32 accum
    assert float(np.max(np.abs(np.asarray(out, np.float64) - ref))) < tol
    print("KERNEL_OK")
</pallas_src>

<mosaic_0001>
module attributes {stable_mosaic.version = 11 : i64} {
  func.func @_lenet_kernel(%arg0: i32, %arg1: memref<1x448x160xbf16, #tpu.memory_space<vmem>>, %arg2: memref<160x256xbf16, #tpu.memory_space<vmem>>, %arg3: memref<1x128xf32, #tpu.memory_space<vmem>>, %arg4: memref<5x128x256xbf16, #tpu.memory_space<vmem>>, %arg5: memref<1x128xf32, #tpu.memory_space<vmem>>, %arg6: memref<640x120xbf16, #tpu.memory_space<vmem>>, %arg7: memref<1x120xf32, #tpu.memory_space<vmem>>, %arg8: memref<120x84xbf16, #tpu.memory_space<vmem>>, %arg9: memref<1x84xf32, #tpu.memory_space<vmem>>, %arg10: memref<84x128xbf16, #tpu.memory_space<vmem>>, %arg11: memref<1x128xf32, #tpu.memory_space<vmem>>, %arg12: memref<16x128xf32, #tpu.memory_space<vmem>>, %arg13: memref<224x128xf32, #tpu.memory_space<vmem>>, %arg14: memref<160x256xf32, #tpu.memory_space<vmem>>, %arg15: memref<16x640xf32, #tpu.memory_space<vmem>>) attributes {dimension_semantics = [#tpu.dimension_semantics<parallel>], iteration_bounds = array<i64: 1>, scalar_prefetch = 0 : i64, scratch_operands = 3 : i64, tpu.core_type = #tpu.core_type<tc>, window_params = [{transform_indices = @transform_0, window_bounds = array<i64: 1, 448, 160>}, {pipeline_mode = #tpu.pipeline_mode<synchronous>, transform_indices = @transform_1, window_bounds = array<i64: 160, 256>}, {pipeline_mode = #tpu.pipeline_mode<synchronous>, transform_indices = @transform_2, window_bounds = array<i64: 1, 128>}, {pipeline_mode = #tpu.pipeline_mode<synchronous>, transform_indices = @transform_3, window_bounds = array<i64: 5, 128, 256>}, {pipeline_mode = #tpu.pipeline_mode<synchronous>, transform_indices = @transform_4, window_bounds = array<i64: 1, 128>}, {pipeline_mode = #tpu.pipeline_mode<synchronous>, transform_indices = @transform_5, window_bounds = array<i64: 640, 120>}, {pipeline_mode = #tpu.pipeline_mode<synchronous>, transform_indices = @transform_6, window_bounds = array<i64: 1, 120>}, {pipeline_mode = #tpu.pipeline_mode<synchronous>, transform_indices = @transform_7, window_bounds = array<i64: 120, 84>}, {pipeline_mode = #tpu.pipeline_mode<synchronous>, transform_indices = @transform_8, window_bounds = array<i64: 1, 84>}, {pipeline_mode = #tpu.pipeline_mode<synchronous>, transform_indices = @transform_9, window_bounds = array<i64: 84, 128>}, {pipeline_mode = #tpu.pipeline_mode<synchronous>, transform_indices = @transform_10, window_bounds = array<i64: 1, 128>}, {transform_indices = @transform_11, window_bounds = array<i64: 16, 128>}]} {
    %c0 = arith.constant 0 : index
    %c0_0 = arith.constant 0 : index
    %c0_1 = arith.constant 0 : index
    %0 = vector.load %arg1[%c0, %c0_0, %c0_1] : memref<1x448x160xbf16, #tpu.memory_space<vmem>>, vector<1x224x160xbf16>
    %1 = vector.shape_cast %0 : vector<1x224x160xbf16> to vector<224x160xbf16>
    %c0_2 = arith.constant 0 : index
    %c0_3 = arith.constant 0 : index
    %2 = vector.load %arg2[%c0_2, %c0_3] : memref<160x256xbf16, #tpu.memory_space<vmem>>, vector<160x256xbf16>
    %cst = arith.constant dense<0.000000e+00> : vector<224x256xf32>
    %3 = tpu.matmul %1, %2, %cst {dimension_numbers = #tpu.dot_dimension_numbers<[1], [0], [0], [1], [0, 0, 1, 1], [], []>} : vector<224x160xbf16>, vector<160x256xbf16>, vector<224x256xf32> -> vector<224x256xf32>
    %4 = vector.extract_strided_slice %3 {offsets = [0, 0], sizes = [224, 128], strides = [1, 1]} : vector<224x256xf32> to vector<224x128xf32>
    %5 = vector.extract_strided_slice %3 {offsets = [0, 128], sizes = [224, 128], strides = [1, 1]} : vector<224x256xf32> to vector<224x128xf32>
    %6 = arith.maximumf %4, %5 : vector<224x128xf32>
    %c0_4 = arith.constant 0 : index
    %c224 = arith.constant 224 : index
    %c0_5 = arith.constant 0 : index
    %7 = vector.load %arg1[%c0_4, %c224, %c0_5] : memref<1x448x160xbf16, #tpu.memory_space<vmem>>, vector<1x224x160xbf16>
    %8 = vector.shape_cast %7 : vector<1x224x160xbf16> to vector<224x160xbf16>
    %c0_6 = arith.constant 0 : index
    %c0_7 = arith.constant 0 : index
    %9 = vector.load %arg2[%c0_6, %c0_7] : memref<160x256xbf16, #tpu.memory_space<vmem>>, vector<160x256xbf16>
    %cst_8 = arith.constant dense<0.000000e+00> : vector<224x256xf32>
    %10 = tpu.matmul %8, %9, %cst_8 {dimension_numbers = #tpu.dot_dimension_numbers<[1], [0], [0], [1], [0, 0, 1, 1], [], []>} : vector<224x160xbf16>, vector<160x256xbf16>, vector<224x256xf32> -> vector<224x256xf32>
    %11 = vector.extract_strided_slice %10 {offsets = [0, 0], sizes = [224, 128], strides = [1, 1]} : vector<224x256xf32> to vector<224x128xf32>
    %12 = vector.extract_strided_slice %10 {offsets = [0, 128], sizes = [224, 128], strides = [1, 1]} : vector<224x256xf32> to vector<224x128xf32>
    %13 = arith.maximumf %11, %12 : vector<224x128xf32>
    %14 = arith.maximumf %6, %13 : vector<224x128xf32>
    %c0_9 = arith.constant 0 : index
    %c0_10 = arith.constant 0 : index
    %15 = vector.load %arg3[%c0_9, %c0_10] : memref<1x128xf32, #tpu.memory_space<vmem>>, vector<1x128xf32>
    %16 = vector.broadcast %15 : vector<1x128xf32> to vector<224x128xf32>
    %17 = arith.addf %14, %16 : vector<224x128xf32>
    %cst_11 = arith.constant 0.000000e+00 : f32
    %18 = vector.broadcast %cst_11 : f32 to vector<224x128xf32>
    %19 = arith.maximumf %17, %18 : vector<224x128xf32>
    %c0_12 = arith.constant 0 : index
    %c0_13 = arith.constant 0 : index
    %20 = vector.load %arg13[%c0_12, %c0_13] : memref<224x128xf32, #tpu.memory_space<vmem>>, vector<224x128xf32>
    tpu.vector_store %arg13[%c0_12, %c0_13], %19 {strides = array<i32>} : memref<224x128xf32, #tpu.memory_space<vmem>>, vector<224x128xf32>,
    %c0_14 = arith.constant 0 : index
    %c0_15 = arith.constant 0 : index
    %21 = vector.load %arg13[%c0_14, %c0_15] : memref<224x128xf32, #tpu.memory_space<vmem>>, vector<160x128xf32>
    %22 = arith.truncf %21 : vector<160x128xf32> to vector<160x128xbf16>
    %c0_16 = arith.constant 0 : index
    %c0_17 = arith.constant 0 : index
    %c0_18 = arith.constant 0 : index
    %23 = vector.load %arg4[%c0_16, %c0_17, %c0_18] : memref<5x128x256xbf16, #tpu.memory_space<vmem>>, vector<1x128x256xbf16>
    %24 = vector.shape_cast %23 : vector<1x128x256xbf16> to vector<128x256xbf16>
    %cst_19 = arith.constant dense<0.000000e+00> : vector<160x256xf32>
    %25 = tpu.matmul %22, %24, %cst_19 {dimension_numbers = #tpu.dot_dimension_numbers<[1], [0], [0], [1], [0, 0, 1, 1], [], []>} : vector<160x128xbf16>, vector<128x256xbf16>, vector<160x256xf32> -> vector<160x256xf32>
    %c0_20 = arith.constant 0 : index
    %c0_21 = arith.constant 0 : index
    %26 = vector.load %arg14[%c0_20, %c0_21] : memref<160x256xf32, #tpu.memory_space<vmem>>, vector<160x256xf32>
    tpu.vector_store %arg14[%c0_20, %c0_21], %25 {strides = array<i32>} : memref<160x256xf32, #tpu.memory_space<vmem>>, vector<160x256xf32>,
    %c16 = arith.constant 16 : index
    %c0_22 = arith.constant 0 : index
    %27 = vector.load %arg13[%c16, %c0_22] : memref<224x128xf32, #tpu.memory_space<vmem>>, vector<160x128xf32>
    %28 = arith.truncf %27 : vector<160x128xf32> to vector<160x128xbf16>
    %c1 = arith.constant 1 : index
    %c0_23 = arith.constant 0 : index
    %c0_24 = arith.constant 0 : index
    %29 = vector.load %arg4[%c1, %c0_23, %c0_24] : memref<5x128x256xbf16, #tpu.memory_space<vmem>>, vector<1x128x256xbf16>
    %30 = vector.shape_cast %29 : vector<1x128x256xbf16> to vector<128x256xbf16>
    %cst_25 = arith.constant dense<0.000000e+00> : vector<160x256xf32>
    %31 = tpu.matmul %28, %30, %cst_25 {dimension_numbers = #tpu.dot_dimension_numbers<[1], [0], [0], [1], [0, 0, 1, 1], [], []>} : vector<160x128xbf16>, vector<128x256xbf16>, vector<160x256xf32> -> vector<160x256xf32>
    %c0_26 = arith.constant 0 : index
    %c0_27 = arith.constant 0 : index
    %32 = vector.load %arg14[%c0_26, %c0_27] : memref<160x256xf32, #tpu.memory_space<vmem>>, vector<160x256xf32>
    %33 = arith.addf %32, %31 : vector<160x256xf32>
    %c0_28 = arith.constant 0 : index
    %c0_29 = arith.constant 0 : index
    %34 = vector.load %arg14[%c0_28, %c0_29] : memref<160x256xf32, #tpu.memory_space<vmem>>, vector<160x256xf32>
    tpu.vector_store %arg14[%c0_28, %c0_29], %33 {strides = array<i32>} : memref<160x256xf32, #tpu.memory_space<vmem>>, vector<160x256xf32>,
    %c32 = arith.constant 32 : index
    %c0_30 = arith.constant 0 : index
    %35 = vector.load %arg13[%c32, %c0_30] : memref<224x128xf32, #tpu.memory_space<vmem>>, vector<160x128xf32>
    %36 = arith.truncf %35 : vector<160x128xf32> to vector<160x128xbf16>
    %c2 = arith.constant 2 : index
    %c0_31 = arith.constant 0 : index
    %c0_32 = arith.constant 0 : index
    %37 = vector.load %arg4[%c2, %c0_31, %c0_32] : memref<5x128x256xbf16, #tpu.memory_space<vmem>>, vector<1x128x256xbf16>
    %38 = vector.shape_cast %37 : vector<1x128x256xbf16> to vector<128x256xbf16>
    %cst_33 = arith.constant dense<0.000000e+00> : vector<160x256xf32>
    %39 = tpu.matmul %36, %38, %cst_33 {dimension_numbers = #tpu.dot_dimension_numbers<[1], [0], [0], [1], [0, 0, 1, 1], [], []>} : vector<160x128xbf16>, vector<128x256xbf16>, vector<160x256xf32> -> vector<160x256xf32>
    %c0_34 = arith.constant 0 : index
    %c0_35 = arith.constant 0 : index
    %40 = vector.load %arg14[%c0_34, %c0_35] : memref<160x256xf32, #tpu.memory_space<vmem>>, vector<160x256xf32>
    %41 = arith.addf %40, %39 : vector<160x256xf32>
    %c0_36 = arith.constant 0 : index
    %c0_37 = arith.constant 0 : index
    %42 = vector.load %arg14[%c0_36, %c0_37] : memref<160x256xf32, #tpu.memory_space<vmem>>, vector<160x256xf32>
    tpu.vector_store %arg14[%c0_36, %c0_37], %41 {strides = array<i32>} : memref<160x256xf32, #tpu.memory_space<vmem>>, vector<160x256xf32>,
    %c48 = arith.constant 48 : index
    %c0_38 = arith.constant 0 : index
    %43 = vector.load %arg13[%c48, %c0_38] : memref<224x128xf32, #tpu.memory_space<vmem>>, vector<160x128xf32>
    %44 = arith.truncf %43 : vector<160x128xf32> to vector<160x128xbf16>
    %c3 = arith.constant 3 : index
    %c0_39 = arith.constant 0 : index
    %c0_40 = arith.constant 0 : index
    %45 = vector.load %arg4[%c3, %c0_39, %c0_40] : memref<5x128x256xbf16, #tpu.memory_space<vmem>>, vector<1x128x256xbf16>
    %46 = vector.shape_cast %45 : vector<1x128x256xbf16> to vector<128x256xbf16>
    %cst_41 = arith.constant dense<0.000000e+00> : vector<160x256xf32>
    %47 = tpu.matmul %44, %46, %cst_41 {dimension_numbers = #tpu.dot_dimension_numbers<[1], [0], [0], [1], [0, 0, 1, 1], [], []>} : vector<160x128xbf16>, vector<128x256xbf16>, vector<160x256xf32> -> vector<160x256xf32>
    %c0_42 = arith.constant 0 : index
    %c0_43 = arith.constant 0 : index
    %48 = vector.load %arg14[%c0_42, %c0_43] : memref<160x256xf32, #tpu.memory_space<vmem>>, vector<160x256xf32>
    %49 = arith.addf %48, %47 : vector<160x256xf32>
    %c0_44 = arith.constant 0 : index
    %c0_45 = arith.constant 0 : index
    %50 = vector.load %arg14[%c0_44, %c0_45] : memref<160x256xf32, #tpu.memory_space<vmem>>, vector<160x256xf32>
    tpu.vector_store %arg14[%c0_44, %c0_45], %49 {strides = array<i32>} : memref<160x256xf32, #tpu.memory_space<vmem>>, vector<160x256xf32>,
    %c64 = arith.constant 64 : index
    %c0_46 = arith.constant 0 : index
    %51 = vector.load %arg13[%c64, %c0_46] : memref<224x128xf32, #tpu.memory_space<vmem>>, vector<160x128xf32>
    %52 = arith.truncf %51 : vector<160x128xf32> to vector<160x128xbf16>
    %c4 = arith.constant 4 : index
    %c0_47 = arith.constant 0 : index
    %c0_48 = arith.constant 0 : index
    %53 = vector.load %arg4[%c4, %c0_47, %c0_48] : memref<5x128x256xbf16, #tpu.memory_space<vmem>>, vector<1x128x256xbf16>
    %54 = vector.shape_cast %53 : vector<1x128x256xbf16> to vector<128x256xbf16>
    %cst_49 = arith.constant dense<0.000000e+00> : vector<160x256xf32>
    %55 = tpu.matmul %52, %54, %cst_49 {dimension_numbers = #tpu.dot_dimension_numbers<[1], [0], [0], [1], [0, 0, 1, 1], [], []>} : vector<160x128xbf16>, vector<128x256xbf16>, vector<160x256xf32> -> vector<160x256xf32>
    %c0_50 = arith.constant 0 : index
    %c0_51 = arith.constant 0 : index
    %56 = vector.load %arg14[%c0_50, %c0_51] : memref<160x256xf32, #tpu.memory_space<vmem>>, vector<160x256xf32>
    %57 = arith.addf %56, %55 : vector<160x256xf32>
    %c0_52 = arith.constant 0 : index
    %c0_53 = arith.constant 0 : index
    %58 = vector.load %arg14[%c0_52, %c0_53] : memref<160x256xf32, #tpu.memory_space<vmem>>, vector<160x256xf32>
    tpu.vector_store %arg14[%c0_52, %c0_53], %57 {strides = array<i32>} : memref<160x256xf32, #tpu.memory_space<vmem>>, vector<160x256xf32>,
    %c0_54 = arith.constant 0 : index
    %c0_55 = arith.constant 0 : index
    %59 = vector.load %arg14[%c0_54, %c0_55] : memref<160x256xf32, #tpu.memory_space<vmem>>, vector<16x128xf32>
    %c0_56 = arith.constant 0 : index
    %c128 = arith.constant 128 : index
    %60 = vector.load %arg14[%c0_56, %c128] : memref<160x256xf32, #tpu.memory_space<vmem>>, vector<16x128xf32>
    %61 = arith.maximumf %59, %60 : vector<16x128xf32>
    %c16_57 = arith.constant 16 : index
    %c0_58 = arith.constant 0 : index
    %62 = vector.load %arg14[%c16_57, %c0_58] : memref<160x256xf32, #tpu.memory_space<vmem>>, vector<16x128xf32>
    %c16_59 = arith.constant 16 : index
    %c128_60 = arith.constant 128 : index
    %63 = vector.load %arg14[%c16_59, %c128_60] : memref<160x256xf32, #tpu.memory_space<vmem>>, vector<16x128xf32>
    %64 = arith.maximumf %62, %63 : vector<16x128xf32>
    %65 = arith.maximumf %61, %64 : vector<16x128xf32>
    %c0_61 = arith.constant 0 : index
    %c0_62 = arith.constant 0 : index
    %66 = vector.load %arg5[%c0_61, %c0_62] : memref<1x128xf32, #tpu.memory_space<vmem>>, vector<1x128xf32>
    %67 = vector.broadcast %66 : vector<1x128xf32> to vector<16x128xf32>
    %68 = arith.addf %65, %67 : vector<16x128xf32>
    %cst_63 = arith.constant 0.000000e+00 : f32
    %69 = vector.broadcast %cst_63 : f32 to vector<16x128xf32>
    %70 = arith.maximumf %68, %69 : vector<16x128xf32>
    %c0_64 = arith.constant 0 : index
    %c0_65 = arith.constant 0 : index
    %71 = vector.load %arg15[%c0_64, %c0_65] : memref<16x640xf32, #tpu.memory_space<vmem>>, vector<16x128xf32>
    tpu.vector_store %arg15[%c0_64, %c0_65], %70 {strides = array<i32>} : memref<16x640xf32, #tpu.memory_space<vmem>>, vector<16x128xf32>,
    %c32_66 = arith.constant 32 : index
    %c0_67 = arith.constant 0 : index
    %72 = vector.load %arg14[%c32_66, %c0_67] : memref<160x256xf32, #tpu.memory_space<vmem>>, vector<16x128xf32>
    %c32_68 = arith.constant 32 : index
    %c128_69 = arith.constant 128 : index
    %73 = vector.load %arg14[%c32_68, %c128_69] : memref<160x256xf32, #tpu.memory_space<vmem>>, vector<16x128xf32>
    %74 = arith.maximumf %72, %73 : vector<16x128xf32>
    %c48_70 = arith.constant 48 : index
    %c0_71 = arith.constant 0 : index
    %75 = vector.load %arg14[%c48_70, %c0_71] : memref<160x256xf32, #tpu.memory_space<vmem>>, vector<16x128xf32>
    %c48_72 = arith.constant 48 : index
    %c128_73 = arith.constant 128 : index
    %76 = vector.load %arg14[%c48_72, %c128_73] : memref<160x256xf32, #tpu.memory_space<vmem>>, vector<16x128xf32>
    %77 = arith.maximumf %75, %76 : vector<16x128xf32>
    %78 = arith.maximumf %74, %77 : vector<16x128xf32>
    %c0_74 = arith.constant 0 : index
    %c0_75 = arith.constant 0 : index
    %79 = vector.load %arg5[%c0_74, %c0_75] : memref<1x128xf32, #tpu.memory_space<vmem>>, vector<1x128xf32>
    %80 = vector.broadcast %79 : vector<1x128xf32> to vector<16x128xf32>
    %81 = arith.addf %78, %80 : vector<16x128xf32>
    %cst_76 = arith.constant 0.000000e+00 : f32
    %82 = vector.broadcast %cst_76 : f32 to vector<16x128xf32>
    %83 = arith.maximumf %81, %82 : vector<16x128xf32>
    %c0_77 = arith.constant 0 : index
    %c128_78 = arith.constant 128 : index
    %84 = vector.load %arg15[%c0_77, %c128_78] : memref<16x640xf32, #tpu.memory_space<vmem>>, vector<16x128xf32>
    tpu.vector_store %arg15[%c0_77, %c128_78], %83 {strides = array<i32>} : memref<16x640xf32, #tpu.memory_space<vmem>>, vector<16x128xf32>,
    %c64_79 = arith.constant 64 : index
    %c0_80 = arith.constant 0 : index
    %85 = vector.load %arg14[%c64_79, %c0_80] : memref<160x256xf32, #tpu.memory_space<vmem>>, vector<16x128xf32>
    %c64_81 = arith.constant 64 : index
    %c128_82 = arith.constant 128 : index
    %86 = vector.load %arg14[%c64_81, %c128_82] : memref<160x256xf32, #tpu.memory_space<vmem>>, vector<16x128xf32>
    %87 = arith.maximumf %85, %86 : vector<16x128xf32>
    %c80 = arith.constant 80 : index
    %c0_83 = arith.constant 0 : index
    %88 = vector.load %arg14[%c80, %c0_83] : memref<160x256xf32, #tpu.memory_space<vmem>>, vector<16x128xf32>
    %c80_84 = arith.constant 80 : index
    %c128_85 = arith.constant 128 : index
    %89 = vector.load %arg14[%c80_84, %c128_85] : memref<160x256xf32, #tpu.memory_space<vmem>>, vector<16x128xf32>
    %90 = arith.maximumf %88, %89 : vector<16x128xf32>
    %91 = arith.maximumf %87, %90 : vector<16x128xf32>
    %c0_86 = arith.constant 0 : index
    %c0_87 = arith.constant 0 : index
    %92 = vector.load %arg5[%c0_86, %c0_87] : memref<1x128xf32, #tpu.memory_space<vmem>>, vector<1x128xf32>
    %93 = vector.broadcast %92 : vector<1x128xf32> to vector<16x128xf32>
    %94 = arith.addf %91, %93 : vector<16x128xf32>
    %cst_88 = arith.constant 0.000000e+00 : f32
    %95 = vector.broadcast %cst_88 : f32 to vector<16x128xf32>
    %96 = arith.maximumf %94, %95 : vector<16x128xf32>
    %c0_89 = arith.constant 0 : index
    %c256 = arith.constant 256 : index
    %97 = vector.load %arg15[%c0_89, %c256] : memref<16x640xf32, #tpu.memory_space<vmem>>, vector<16x128xf32>
    tpu.vector_store %arg15[%c0_89, %c256], %96 {strides = array<i32>} : memref<16x640xf32, #tpu.memory_space<vmem>>, vector<16x128xf32>,
    %c96 = arith.constant 96 : index
    %c0_90 = arith.constant 0 : index
    %98 = vector.load %arg14[%c96, %c0_90] : memref<160x256xf32, #tpu.memory_space<vmem>>, vector<16x128xf32>
    %c96_91 = arith.constant 96 : index
    %c128_92 = arith.constant 128 : index
    %99 = vector.load %arg14[%c96_91, %c128_92] : memref<160x256xf32, #tpu.memory_space<vmem>>, vector<16x128xf32>
    %100 = arith.maximumf %98, %99 : vector<16x128xf32>
    %c112 = arith.constant 112 : index
    %c0_93 = arith.constant 0 : index
    %101 = vector.load %arg14[%c112, %c0_93] : memref<160x256xf32, #tpu.memory_space<vmem>>, vector<16x128xf32>
    %c112_94 = arith.constant 112 : index
    %c128_95 = arith.constant 128 : index
    %102 = vector.load %arg14[%c112_94, %c128_95] : memref<160x256xf32, #tpu.memory_space<vmem>>, vector<16x128xf32>
    %103 = arith.maximumf %101, %102 : vector<16x128xf32>
    %104 = arith.maximumf %100, %103 : vector<16x128xf32>
    %c0_96 = arith.constant 0 : index
    %c0_97 = arith.constant 0 : index
    %105 = vector.load %arg5[%c0_96, %c0_97] : memref<1x128xf32, #tpu.memory_space<vmem>>, vector<1x128xf32>
    %106 = vector.broadcast %105 : vector<1x128xf32> to vector<16x128xf32>
    %107 = arith.addf %104, %106 : vector<16x128xf32>
    %cst_98 = arith.constant 0.000000e+00 : f32
    %108 = vector.broadcast %cst_98 : f32 to vector<16x128xf32>
    %109 = arith.maximumf %107, %108 : vector<16x128xf32>
    %c0_99 = arith.constant 0 : index
    %c384 = arith.constant 384 : index
    %110 = vector.load %arg15[%c0_99, %c384] : memref<16x640xf32, #tpu.memory_space<vmem>>, vector<16x128xf32>
    tpu.vector_store %arg15[%c0_99, %c384], %109 {strides = array<i32>} : memref<16x640xf32, #tpu.memory_space<vmem>>, vector<16x128xf32>,
    %c128_100 = arith.constant 128 : index
    %c0_101 = arith.constant 0 : index
    %111 = vector.load %arg14[%c128_100, %c0_101] : memref<160x256xf32, #tpu.memory_space<vmem>>, vector<16x128xf32>
    %c128_102 = arith.constant 128 : index
    %c128_103 = arith.constant 128 : index
    %112 = vector.load %arg14[%c128_102, %c128_103] : memref<160x256xf32, #tpu.memory_space<vmem>>, vector<16x128xf32>
    %113 = arith.maximumf %111, %112 : vector<16x128xf32>
    %c144 = arith.constant 144 : index
    %c0_104 = arith.constant 0 : index
    %114 = vector.load %arg14[%c144, %c0_104] : memref<160x256xf32, #tpu.memory_space<vmem>>, vector<16x128xf32>
    %c144_105 = arith.constant 144 : index
    %c128_106 = arith.constant 128 : index
    %115 = vector.load %arg14[%c144_105, %c128_106] : memref<160x256xf32, #tpu.memory_space<vmem>>, vector<16x128xf32>
    %116 = arith.maximumf %114, %115 : vector<16x128xf32>
    %117 = arith.maximumf %113, %116 : vector<16x128xf32>
    %c0_107 = arith.constant 0 : index
    %c0_108 = arith.constant 0 : index
    %118 = vector.load %arg5[%c0_107, %c0_108] : memref<1x128xf32, #tpu.memory_space<vmem>>, vector<1x128xf32>
    %119 = vector.broadcast %118 : vector<1x128xf32> to vector<16x128xf32>
    %120 = arith.addf %117, %119 : vector<16x128xf32>
    %cst_109 = arith.constant 0.000000e+00 : f32
    %121 = vector.broadcast %cst_109 : f32 to vector<16x128xf32>
    %122 = arith.maximumf %120, %121 : vector<16x128xf32>
    %c0_110 = arith.constant 0 : index
    %c512 = arith.constant 512 : index
    %123 = vector.load %arg15[%c0_110, %c512] : memref<16x640xf32, #tpu.memory_space<vmem>>, vector<16x128xf32>
    tpu.vector_store %arg15[%c0_110, %c512], %122 {strides = array<i32>} : memref<16x640xf32, #tpu.memory_space<vmem>>, vector<16x128xf32>,
    %c0_111 = arith.constant 0 : index
    %c0_112 = arith.constant 0 : index
    %124 = vector.load %arg15[%c0_111, %c0_112] : memref<16x640xf32, #tpu.memory_space<vmem>>, vector<16x640xf32>
    %125 = arith.truncf %124 : vector<16x640xf32> to vector<16x640xbf16>
    %c0_113 = arith.constant 0 : index
    %c0_114 = arith.constant 0 : index
    %126 = vector.load %arg6[%c0_113, %c0_114] : memref<640x120xbf16, #tpu.memory_space<vmem>>, vector<640x120xbf16>
    %cst_115 = arith.constant dense<0.000000e+00> : vector<16x120xf32>
    %127 = tpu.matmul %125, %126, %cst_115 {dimension_numbers = #tpu.dot_dimension_numbers<[1], [0], [0], [1], [0, 0, 1, 1], [], []>} : vector<16x640xbf16>, vector<640x120xbf16>, vector<16x120xf32> -> vector<16x120xf32>
    %c0_116 = arith.constant 0 : index
    %c0_117 = arith.constant 0 : index
    %128 = vector.load %arg7[%c0_116, %c0_117] : memref<1x120xf32, #tpu.memory_space<vmem>>, vector<1x120xf32>
    %129 = vector.broadcast %128 : vector<1x120xf32> to vector<16x120xf32>
    %130 = arith.addf %127, %129 : vector<16x120xf32>
    %cst_118 = arith.constant 0.000000e+00 : f32
    %131 = vector.broadcast %cst_118 : f32 to vector<16x120xf32>
    %132 = arith.maximumf %130, %131 : vector<16x120xf32>
    %133 = arith.truncf %132 : vector<16x120xf32> to vector<16x120xbf16>
    %c0_119 = arith.constant 0 : index
    %c0_120 = arith.constant 0 : index
    %134 = vector.load %arg8[%c0_119, %c0_120] : memref<120x84xbf16, #tpu.memory_space<vmem>>, vector<120x84xbf16>
    %cst_121 = arith.constant dense<0.000000e+00> : vector<16x84xf32>
    %135 = tpu.matmul %133, %134, %cst_121 {dimension_numbers = #tpu.dot_dimension_numbers<[1], [0], [0], [1], [0, 0, 1, 1], [], []>} : vector<16x120xbf16>, vector<120x84xbf16>, vector<16x84xf32> -> vector<16x84xf32>
    %c0_122 = arith.constant 0 : index
    %c0_123 = arith.constant 0 : index
    %136 = vector.load %arg9[%c0_122, %c0_123] : memref<1x84xf32, #tpu.memory_space<vmem>>, vector<1x84xf32>
    %137 = vector.broadcast %136 : vector<1x84xf32> to vector<16x84xf32>
    %138 = arith.addf %135, %137 : vector<16x84xf32>
    %cst_124 = arith.constant 0.000000e+00 : f32
    %139 = vector.broadcast %cst_124 : f32 to vector<16x84xf32>
    %140 = arith.maximumf %138, %139 : vector<16x84xf32>
    %141 = arith.truncf %140 : vector<16x84xf32> to vector<16x84xbf16>
    %c0_125 = arith.constant 0 : index
    %c0_126 = arith.constant 0 : index
    %142 = vector.load %arg10[%c0_125, %c0_126] : memref<84x128xbf16, #tpu.memory_space<vmem>>, vector<84x128xbf16>
    %cst_127 = arith.constant dense<0.000000e+00> : vector<16x128xf32>
    %143 = tpu.matmul %141, %142, %cst_127 {dimension_numbers = #tpu.dot_dimension_numbers<[1], [0], [0], [1], [0, 0, 1, 1], [], []>} : vector<16x84xbf16>, vector<84x128xbf16>, vector<16x128xf32> -> vector<16x128xf32>
    %c0_128 = arith.constant 0 : index
    %c0_129 = arith.constant 0 : index
    %144 = vector.load %arg11[%c0_128, %c0_129] : memref<1x128xf32, #tpu.memory_space<vmem>>, vector<1x128xf32>
    %145 = vector.broadcast %144 : vector<1x128xf32> to vector<16x128xf32>
    %146 = arith.addf %143, %145 : vector<16x128xf32>
    %c0_130 = arith.constant 0 : index
    %c0_131 = arith.constant 0 : index
    %147 = vector.load %arg12[%c0_130, %c0_131] : memref<16x128xf32, #tpu.memory_space<vmem>>, vector<16x128xf32>
    tpu.vector_store %arg12[%c0_130, %c0_131], %146 {strides = array<i32>} : memref<16x128xf32, #tpu.memory_space<vmem>>, vector<16x128xf32>,
    return
  }
  func.func @transform_0(%arg0: i32) -> (i32, i32, i32) {
    %c0_i32 = arith.constant 0 : i32
    %c0_i32_0 = arith.constant 0 : i32
    %c0_i32_1 = arith.constant 0 : i32
    return %arg0, %c0_i32, %c0_i32_0 : i32, i32, i32
  }
  func.func @transform_1(%arg0: i32) -> (i32, i32) {
    %c0_i32 = arith.constant 0 : i32
    %c0_i32_0 = arith.constant 0 : i32
    %c0_i32_1 = arith.constant 0 : i32
    return %c0_i32, %c0_i32_0 : i32, i32
  }
  func.func @transform_2(%arg0: i32) -> (i32, i32) {
    %c0_i32 = arith.constant 0 : i32
    %c0_i32_0 = arith.constant 0 : i32
    %c0_i32_1 = arith.constant 0 : i32
    return %c0_i32, %c0_i32_0 : i32, i32
  }
  func.func @transform_3(%arg0: i32) -> (i32, i32, i32) {
    %c0_i32 = arith.constant 0 : i32
    %c0_i32_0 = arith.constant 0 : i32
    %c0_i32_1 = arith.constant 0 : i32
    %c0_i32_2 = arith.constant 0 : i32
    return %c0_i32, %c0_i32_0, %c0_i32_1 : i32, i32, i32
  }
  func.func @transform_4(%arg0: i32) -> (i32, i32) {
    %c0_i32 = arith.constant 0 : i32
    %c0_i32_0 = arith.constant 0 : i32
    %c0_i32_1 = arith.constant 0 : i32
    return %c0_i32, %c0_i32_0 : i32, i32
  }
  func.func @transform_5(%arg0: i32) -> (i32, i32) {
    %c0_i32 = arith.constant 0 : i32
    %c0_i32_0 = arith.constant 0 : i32
    %c0_i32_1 = arith.constant 0 : i32
    return %c0_i32, %c0_i32_0 : i32, i32
  }
  func.func @transform_6(%arg0: i32) -> (i32, i32) {
    %c0_i32 = arith.constant 0 : i32
    %c0_i32_0 = arith.constant 0 : i32
    %c0_i32_1 = arith.constant 0 : i32
    return %c0_i32, %c0_i32_0 : i32, i32
  }
  func.func @transform_7(%arg0: i32) -> (i32, i32) {
    %c0_i32 = arith.constant 0 : i32
    %c0_i32_0 = arith.constant 0 : i32
    %c0_i32_1 = arith.constant 0 : i32
    return %c0_i32, %c0_i32_0 : i32, i32
  }
  func.func @transform_8(%arg0: i32) -> (i32, i32) {
    %c0_i32 = arith.constant 0 : i32
    %c0_i32_0 = arith.constant 0 : i32
    %c0_i32_1 = arith.constant 0 : i32
    return %c0_i32, %c0_i32_0 : i32, i32
  }
  func.func @transform_9(%arg0: i32) -> (i32, i32) {
    %c0_i32 = arith.constant 0 : i32
    %c0_i32_0 = arith.constant 0 : i32
    %c0_i32_1 = arith.constant 0 : i32
    return %c0_i32, %c0_i32_0 : i32, i32
  }
  func.func @transform_10(%arg0: i32) -> (i32, i32) {
    %c0_i32 = arith.constant 0 : i32
    %c0_i32_0 = arith.constant 0 : i32
    %c0_i32_1 = arith.constant 0 : i32
    return %c0_i32, %c0_i32_0 : i32, i32
  }
  func.func @transform_11(%arg0: i32) -> (i32, i32) {
    %c0_i32 = arith.constant 0 : i32
    %c0_i32_0 = arith.constant 0 : i32
    return %arg0, %c0_i32 : i32, i32
  }
}

</mosaic_0001>

<llo_original>
// kernel: tile.13
$region0: #{tile.13}
  #allocation0 [shape = 's32[1]{0}', space=sflag, size = 0x4, scoped, tag = 'scoped memory for tile.13']
  %s0 = inlined_call_operand.vmem [shape: f32[6], index: 0, kind: input, shape index: {}]
  %s1 = inlined_call_operand.vmem [shape: f32[14,6], index: 1, kind: output, shape index: {}]
  // Predicated region
  $region2: #{tile.13} parent=0 // pred_check
    _
  $region3: #{tile.13} parent=0 // pred_check_branch
    %3 = sbr.rel (0) target = $region5
  $region4: #{tile.13} parent=0 // pred_region
    _
  $region5: #{tile.13} parent=0 // pred_fallthru
    _
  %v4 = vld [vmem:[%s0] ss:$0 sm:$0xff]
  %5 = vst [vmem:[%s1] sm:$0xff] %v4
  %s6 = scalar_lea.vmem %s1, 8
  %7 = vst [vmem:[%s6] sm:$0xff] %v4

// kernel: tile.14
$region0: #{tile.14}
  %s0 = inlined_call_operand.vmem [shape: f32[14,6], index: 0, kind: input, shape index: {}]
  %s1 = inlined_call_operand.vmem [shape: f32[1,84], index: 1, kind: output, shape index: {}]
  $region1: #{tile.14} parent=0
    #allocation0 [shape = 'u8[4096]{0}', space=vmem, size = 0x1000, scoped, tag = 'scoped mem for output reshape']
    %v2 = vld [vmem:[%s0] sm:$0x1]
    %vm3 = vcmask 48128
    %4 = vst.msk [vmem:[#allocation0] sm:$0x1] %vm3, %v2
    %s5 = scalar_lea.vmem %s0, 13
    %v6 = vld [vmem:[%s5] sm:$0x1]
    %7 = vrot.lane.b32.xlu0 %v6, 78
    %v8 = vpop.permute.xlu0 %7
    %vm9 = vcmask 687728
    %10 = vst.msk [vmem:[#allocation0] sm:$0x1] %vm9, %v8
    %s11 = scalar_lea.vmem %s0, 12
    %v12 = vld [vmem:[%s11] sm:$0x1]
    %13 = vrot.lane.b32.xlu0 %v12, 72
    %v14 = vpop.permute.xlu0 %13
    %vm15 = vcmask 638528
    %16 = vst.msk [vmem:[#allocation0] sm:$0x1] %vm15, %v14
    %s17 = scalar_lea.vmem %s0, 11
    %v18 = vld [vmem:[%s17] sm:$0x1]
    %19 = vrot.lane.b32.xlu0 %v18, 66
    %v20 = vpop.permute.xlu0 %19
    %vm21 = vcmask 589328
    %22 = vst.msk [vmem:[#allocation0] sm:$0x1] %vm21, %v20
    %s23 = scalar_lea.vmem %s0, 10
    %v24 = vld [vmem:[%s23] sm:$0x1]
    %25 = vrot.lane.b32.xlu0 %v24, 60
    %v26 = vpop.permute.xlu0 %25
    %vm27 = vcmask 540128
    %28 = vst.msk [vmem:[#allocation0] sm:$0x1] %vm27, %v26
    %s29 = scalar_lea.vmem %s0, 9
    %v30 = vld [vmem:[%s29] sm:$0x1]
    %31 = vrot.lane.b32.xlu0 %v30, 54
    %v32 = vpop.permute.xlu0 %31
    %vm33 = vcmask 490928
    %34 = vst.msk [vmem:[#allocation0] sm:$0x1] %vm33, %v32
    %s35 = scalar_lea.vmem %s0, 8
    %v36 = vld [vmem:[%s35] sm:$0x1]
    %37 = vrot.lane.b32.xlu0 %v36, 48
    %v38 = vpop.permute.xlu0 %37
    %vm39 = vcmask 441728
    %40 = vst.msk [vmem:[#allocation0] sm:$0x1] %vm39, %v38
    %s41 = scalar_lea.vmem %s0, 7
    %v42 = vld [vmem:[%s41] sm:$0x1]
    %43 = vrot.lane.b32.xlu0 %v42, 42
    %v44 = vpop.permute.xlu0 %43
    %vm45 = vcmask 392528
    %46 = vst.msk [vmem:[#allocation0] sm:$0x1] %vm45, %v44
    %s47 = scalar_lea.vmem %s0, 6
    %v48 = vld [vmem:[%s47] sm:$0x1]
    %49 = vrot.lane.b32.xlu0 %v48, 36
    %v50 = vpop.permute.xlu0 %49
    %vm51 = vcmask 343328
    %52 = vst.msk [vmem:[#allocation0] sm:$0x1] %vm51, %v50
    %s53 = scalar_lea.vmem %s0, 5
    %v54 = vld [vmem:[%s53] sm:$0x1]
    %55 = vrot.lane.b32.xlu0 %v54, 30
    %v56 = vpop.permute.xlu0 %55
    %vm57 = vcmask 294128
    %58 = vst.msk [vmem:[#allocation0] sm:$0x1] %vm57, %v56
    %s59 = scalar_lea.vmem %s0, 4
    %v60 = vld [vmem:[%s59] sm:$0x1]
    %61 = vrot.lane.b32.xlu0 %v60, 24
    %v62 = vpop.permute.xlu0 %61
    %vm63 = vcmask 244928
    %64 = vst.msk [vmem:[#allocation0] sm:$0x1] %vm63, %v62
    %s65 = scalar_lea.vmem %s0, 3
    %v66 = vld [vmem:[%s65] sm:$0x1]
    %67 = vrot.lane.b32.xlu0 %v66, 18
    %v68 = vpop.permute.xlu0 %67
    %vm69 = vcmask 195728
    %70 = vst.msk [vmem:[#allocation0] sm:$0x1] %vm69, %v68
    %s71 = scalar_lea.vmem %s0, 2
    %v72 = vld [vmem:[%s71] sm:$0x1]
    %73 = vrot.lane.b32.xlu0 %v72, 12
    %v74 = vpop.permute.xlu0 %73
    %vm75 = vcmask 146528
    %76 = vst.msk [vmem:[#allocation0] sm:$0x1] %vm75, %v74
    %s77 = scalar_lea.vmem %s0, 1
    %v78 = vld [vmem:[%s77] sm:$0x1]
    %79 = vrot.lane.b32.xlu0 %v78, 6
    %v80 = vpop.permute.xlu0 %79
    %vm81 = vcmask 97328
    %82 = vst.msk [vmem:[#allocation0] sm:$0x1] %vm81, %v80
    %s84 = ssub.s32 2, 1
    %v85 = vld [vmem:[#allocation0] sm:%s84]
    %s87 = ssub.s32 2, 1
    %88 = vst [vmem:[%s1] sm:%s87] %v85

// kernel: tile.18
$region0: #{tile.18}
  #allocation0 [shape = 's32[1]{0}', space=sflag, size = 0x4, scoped, tag = 'scoped memory for tile.18']
  %s0 = inlined_call_operand.vmem [shape: f32[16], index: 0, kind: input, shape index: {}]
  %s1 = inlined_call_operand.vmem [shape: f32[5,16], index: 1, kind: output, shape index: {}]
  // Predicated region
  $region2: #{tile.18} parent=0 // pred_check
    _
  $region3: #{tile.18} parent=0 // pred_check_branch
    %3 = sbr.rel (0) target = $region5
  $region4: #{tile.18} parent=0 // pred_region
    _
  $region5: #{tile.18} parent=0 // pred_fallthru
    _
  %v4 = vld [vmem:[%s0] ss:$0 sm:$0xff]
  %5 = vst [vmem:[%s1] sm:$0xff] %v4

// kernel: tile.19
$region0: #{tile.19}
  %s0 = inlined_call_operand.vmem [shape: f32[5,16], index: 0, kind: input, shape index: {}]
  %s1 = inlined_call_operand.vmem [shape: f32[1,80], index: 1, kind: output, shape index: {}]
  $region1: #{tile.19} parent=0
    #allocation0 [shape = 'u8[4096]{0}', space=vmem, size = 0x1000, scoped, tag = 'scoped mem for output reshape']
    %v2 = vld [vmem:[%s0] sm:$0x1]
    %vm3 = vcmask 130048
    %4 = vst.msk [vmem:[#allocation0] sm:$0x1] %vm3, %v2
    %s5 = scalar_lea.vmem %s0, 4
    %v6 = vld [vmem:[%s5] sm:$0x1]
    %7 = vrot.lane.b32.xlu0 %v6, 64
    %v8 = vpop.permute.xlu0 %7
    %vm9 = vcmask 654848
    %10 = vst.msk [vmem:[#allocation0] sm:$0x1] %vm9, %v8
    %s11 = scalar_lea.vmem %s0, 3
    %v12 = vld [vmem:[%s11] sm:$0x1]
    %13 = vrot.lane.b32.xlu0 %v12, 48
    %v14 = vpop.permute.xlu0 %13
    %vm15 = vcmask 523648
    %16 = vst.msk [vmem:[#allocation0] sm:$0x1] %vm15, %v14
    %s17 = scalar_lea.vmem %s0, 2
    %v18 = vld [vmem:[%s17] sm:$0x1]
    %19 = vrot.lane.b32.xlu0 %v18, 32
    %v20 = vpop.permute.xlu0 %19
    %vm21 = vcmask 392448
    %22 = vst.msk [vmem:[#allocation0] sm:$0x1] %vm21, %v20
    %s23 = scalar_lea.vmem %s0, 1
    %v24 = vld [vmem:[%s23] sm:$0x1]
    %25 = vrot.lane.b32.xlu0 %v24, 16
    %v26 = vpop.permute.xlu0 %25
    %vm27 = vcmask 261248
    %28 = vst.msk [vmem:[#allocation0] sm:$0x1] %vm27, %v26
    %s30 = ssub.s32 2, 1
    %v31 = vld [vmem:[#allocation0] sm:%s30]
    %s33 = ssub.s32 2, 1
    %34 = vst [vmem:[%s1] sm:%s33] %v31

// kernel: lenet_forward.1
$region0: #{lenet_forward.1}
  #allocation0 [shape = 'u32[]', space=smem, size = 0x4, offset = 0x4, fixed_abs, tag = 'smem constant byte address 0x4 - core index']
  #allocation1 [shape = 'u32[72,128]{1,0:T(1,128)}', space=vmem, size = 0x9000, scoped, tag = 'internal scratch']
  #allocation2 [shape = 'f32[224,128]{1,0:T(8,128)}', space=vmem, size = 0x1c000, scoped, tag = 'scratch operand']
  #allocation3 [shape = 'f32[160,256]{1,0:T(8,128)}', space=vmem, size = 0x28000, scoped, tag = 'scratch operand']
  #allocation4 [shape = 'f32[16,640]{1,0:T(8,128)}', space=vmem, size = 0xa000, scoped, tag = 'scratch operand']
  %s0 = inlined_call_operand.vmem [shape: bf16[1,448,160], index: 0, kind: input, shape index: {}]
  %s1 = inlined_call_operand.vmem [shape: bf16[160,256], index: 1, kind: input, shape index: {}]
  %s2 = inlined_call_operand.vmem [shape: f32[1,128], index: 2, kind: input, shape index: {}]
  %s3 = inlined_call_operand.vmem [shape: bf16[5,128,256], index: 3, kind: input, shape index: {}]
  %s4 = inlined_call_operand.vmem [shape: f32[1,128], index: 4, kind: input, shape index: {}]
  %s5 = inlined_call_operand.vmem [shape: bf16[640,120], index: 5, kind: input, shape index: {}]
  %s6 = inlined_call_operand.vmem [shape: f32[1,120], index: 6, kind: input, shape index: {}]
  %s7 = inlined_call_operand.vmem [shape: bf16[120,84], index: 7, kind: input, shape index: {}]
  %s8 = inlined_call_operand.vmem [shape: f32[1,84], index: 8, kind: input, shape index: {}]
  %s9 = inlined_call_operand.vmem [shape: bf16[84,128], index: 9, kind: input, shape index: {}]
  %s10 = inlined_call_operand.vmem [shape: f32[1,128], index: 10, kind: input, shape index: {}]
  %s11 = inlined_call_operand.vmem [shape: f32[16,128], index: 11, kind: output, shape index: {}]
  %s12 = sld [smem:[#allocation0]]
  $region54: #{lenet_forward.1} parent=0
    _
  %s14 = ssub.s32 1, %s12
  %s15 = scalar_select 0, %s14, %s12
  // Predicated region
  $region2: #{lenet_forward.1} parent=0 // pred_check
    _
  $region3: #{lenet_forward.1} parent=0 // pred_check_branch
    %17 = sbr.rel (0) target = $region5
  $region4: #{lenet_forward.1} parent=0 // pred_region
    _
  $region5: #{lenet_forward.1} parent=0 // pred_fallthru
    _
  // Predicated region
  $region6: #{lenet_forward.1} parent=0 // pred_check
    _
  $region7: #{lenet_forward.1} parent=0 // pred_check_branch
    %19 = sbr.rel (0) target = $region9
  $region8: #{lenet_forward.1} parent=0 // pred_region
    _
  $region9: #{lenet_forward.1} parent=0 // pred_fallthru
    _
  // Predicated region
  $region10: #{lenet_forward.1} parent=0 // pred_check
    _
  $region11: #{lenet_forward.1} parent=0 // pred_check_branch
    %21 = sbr.rel (0) target = $region13
  $region12: #{lenet_forward.1} parent=0 // pred_region
    _
  $region13: #{lenet_forward.1} parent=0 // pred_fallthru
    _
  // Predicated region
  $region14: #{lenet_forward.1} parent=0 // pred_check
    _
  $region15: #{lenet_forward.1} parent=0 // pred_check_branch
    %23 = sbr.rel (0) target = $region17
  $region16: #{lenet_forward.1} parent=0 // pred_region
    _
  $region17: #{lenet_forward.1} parent=0 // pred_fallthru
    _
  // Predicated region
  $region18: #{lenet_forward.1} parent=0 // pred_check
    _
  $region19: #{lenet_forward.1} parent=0 // pred_check_branch
    %25 = sbr.rel (0) target = $region21
  $region20: #{lenet_forward.1} parent=0 // pred_region
    _
  $region21: #{lenet_forward.1} parent=0 // pred_fallthru
    _
  // Predicated region
  $region22: #{lenet_forward.1} parent=0 // pred_check
    _
  $region23: #{lenet_forward.1} parent=0 // pred_check_branch
    %27 = sbr.rel (0) target = $region25
  $region24: #{lenet_forward.1} parent=0 // pred_region
    _
  $region25: #{lenet_forward.1} parent=0 // pred_fallthru
    _
  // Predicated region
  $region26: #{lenet_forward.1} parent=0 // pred_check
    _
  $region27: #{lenet_forward.1} parent=0 // pred_check_branch
    %29 = sbr.rel (0) target = $region29
  $region28: #{lenet_forward.1} parent=0 // pred_region
    _
  $region29: #{lenet_forward.1} parent=0 // pred_fallthru
    _
  // Predicated region
  $region30: #{lenet_forward.1} parent=0 // pred_check
    _
  $region31: #{lenet_forward.1} parent=0 // pred_check_branch
    %31 = sbr.rel (0) target = $region33
  $region32: #{lenet_forward.1} parent=0 // pred_region
    _
  $region33: #{lenet_forward.1} parent=0 // pred_fallthru
    _
  // Predicated region
  $region34: #{lenet_forward.1} parent=0 // pred_check
    _
  $region35: #{lenet_forward.1} parent=0 // pred_check_branch
    %33 = sbr.rel (0) target = $region37
  $region36: #{lenet_forward.1} parent=0 // pred_region
    _
  $region37: #{lenet_forward.1} parent=0 // pred_fallthru
    _
  // Predicated region
  $region38: #{lenet_forward.1} parent=0 // pred_check
    _
  $region39: #{lenet_forward.1} parent=0 // pred_check_branch
    %35 = sbr.rel (0) target = $region41
  $region40: #{lenet_forward.1} parent=0 // pred_region
    _
  $region41: #{lenet_forward.1} parent=0 // pred_fallthru
    _
  // Predicated region
  $region42: #{lenet_forward.1} parent=0 // pred_check
    _
  $region43: #{lenet_forward.1} parent=0 // pred_check_branch
    %37 = sbr.rel (0) target = $region45
  $region44: #{lenet_forward.1} parent=0 // pred_region
    _
  $region45: #{lenet_forward.1} parent=0 // pred_fallthru
    _
  %v39 = vld [vmem:[%s0] sm:$0xff]
  %v40 = vld [vmem:[%s0 + $0x8] sm:$0xff]
  %v41 = vld [vmem:[%s0 + $0x10] sm:$0xff]
  %v42 = vld [vmem:[%s0 + $0x18] sm:$0xff]
  %v43 = vld [vmem:[%s0 + $0x20] sm:$0xff]
  %v44 = vld [vmem:[%s0 + $0x28] sm:$0xff]
  %v45 = vld [vmem:[%s0 + $0x30] sm:$0xff]
  %v46 = vld [vmem:[%s0 + $0x38] sm:$0xff]
  %v47 = vld [vmem:[%s0 + $0x40] sm:$0xff]
  %v48 = vld [vmem:[%s0 + $0x48] sm:$0xff]
  %v49 = vld [vmem:[%s0 + $0x50] sm:$0xff]
  %v50 = vld [vmem:[%s0 + $0x58] sm:$0xff]
  %v51 = vld [vmem:[%s0 + $0x60] sm:$0xff]
  %v52 = vld [vmem:[%s0 + $0x68] sm:$0xff]
  %v53 = vld [vmem:[%s0 + $0x70] sm:$0xff]
  %v54 = vld [vmem:[%s0 + $0x78] sm:$0xff]
  %v55 = vld [vmem:[%s0 + $0x80] sm:$0xff]
  %v56 = vld [vmem:[%s0 + $0x88] sm:$0xff]
  %v57 = vld [vmem:[%s0 + $0x90] sm:$0xff]
  %v58 = vld [vmem:[%s0 + $0x98] sm:$0xff]
  %v59 = vld [vmem:[%s0 + $0xa0] sm:$0xff]
  %v60 = vld [vmem:[%s0 + $0xa8] sm:$0xff]
  %v61 = vld [vmem:[%s0 + $0xb0] sm:$0xff]
  %v62 = vld [vmem:[%s0 + $0xb8] sm:$0xff]
  %v63 = vld [vmem:[%s0 + $0xc0] sm:$0xff]
  %v64 = vld [vmem:[%s0 + $0xc8] sm:$0xff]
  %v65 = vld [vmem:[%s0 + $0xd0] sm:$0xff]
  %v66 = vld [vmem:[%s0 + $0xd8] sm:$0xff]
  %v67 = vld [vmem:[%s1] sm:$0xff]
  %v68 = vld [vmem:[%s1 + $0x8] sm:$0xff]
  %v69 = vld [vmem:[%s1 + $0x10] sm:$0xff]
  %v70 = vld [vmem:[%s1 + $0x18] sm:$0xff]
  %v71 = vld [vmem:[%s1 + $0x20] sm:$0xff]
  %v72 = vld [vmem:[%s1 + $0x28] sm:$0xff]
  %v73 = vld [vmem:[%s1 + $0x30] sm:$0xff]
  %v74 = vld [vmem:[%s1 + $0x38] sm:$0xff]
  %v75 = vld [vmem:[%s1 + $0x40] sm:$0xff]
  %v76 = vld [vmem:[%s1 + $0x48] sm:$0xff]
  %v77 = vld [vmem:[%s1 + $0x50] sm:$0xff]
  %v78 = vld [vmem:[%s1 + $0x58] sm:$0xff]
  %v79 = vld [vmem:[%s1 + $0x60] sm:$0xff]
  %v80 = vld [vmem:[%s1 + $0x68] sm:$0xff]
  %v81 = vld [vmem:[%s1 + $0x70] sm:$0xff]
  %v82 = vld [vmem:[%s1 + $0x78] sm:$0xff]
  %v83 = vld [vmem:[%s1 + $0x80] sm:$0xff]
  %v84 = vld [vmem:[%s1 + $0x88] sm:$0xff]
  %v85 = vld [vmem:[%s1 + $0x90] sm:$0xff]
  %v86 = vld [vmem:[%s1 + $0x98] sm:$0xff]
  %v115 = vunpack.c.l.b16 %v39
  %v116 = vunpack.c.h.b16 %v39
  %v117 = vunpack.c.l.b16 %v40
  %v118 = vunpack.c.h.b16 %v40
  %v119 = vunpack.c.l.b16 %v41
  %v120 = vunpack.c.h.b16 %v41
  %v121 = vunpack.c.l.b16 %v42
  %v122 = vunpack.c.h.b16 %v42
  %v123 = vunpack.c.l.b16 %v43
  %v124 = vunpack.c.h.b16 %v43
  %v125 = vunpack.c.l.b16 %v44
  %v126 = vunpack.c.h.b16 %v44
  %v127 = vunpack.c.l.b16 %v45
  %v128 = vunpack.c.h.b16 %v45
  %v129 = vunpack.c.l.b16 %v46
  %v130 = vunpack.c.h.b16 %v46
  %v131 = vunpack.c.l.b16 %v47
  %v132 = vunpack.c.h.b16 %v47
  %v133 = vunpack.c.l.b16 %v48
  %v134 = vunpack.c.h.b16 %v48
  %v135 = vunpack.c.l.b16 %v49
  %v136 = vunpack.c.h.b16 %v49
  %v137 = vunpack.c.l.b16 %v50
  %v138 = vunpack.c.h.b16 %v50
  %v139 = vunpack.c.l.b16 %v51
  %v140 = vunpack.c.h.b16 %v51
  %v141 = vunpack.c.l.b16 %v52
  %v142 = vunpack.c.h.b16 %v52
  %v143 = vunpack.c.l.b16 %v53
  %v144 = vunpack.c.h.b16 %v53
  %v145 = vunpack.c.l.b16 %v54
  %v146 = vunpack.c.h.b16 %v54
  %v147 = vunpack.c.l.b16 %v55
  %v148 = vunpack.c.h.b16 %v55
  %v149 = vunpack.c.l.b16 %v56
  %v150 = vunpack.c.h.b16 %v56
  %v151 = vunpack.c.l.b16 %v57
  %v152 = vunpack.c.h.b16 %v57
  %v153 = vunpack.c.l.b16 %v58
  %v154 = vunpack.c.h.b16 %v58
  %v155 = vunpack.c.l.b16 %v59
  %v156 = vunpack.c.h.b16 %v59
  %v157 = vunpack.c.l.b16 %v60
  %v158 = vunpack.c.h.b16 %v60
  %v159 = vunpack.c.l.b16 %v61
  %v160 = vunpack.c.h.b16 %v61
  %v161 = vunpack.c.l.b16 %v62
  %v162 = vunpack.c.h.b16 %v62
  %v163 = vunpack.c.l.b16 %v63
  %v164 = vunpack.c.h.b16 %v63
  %v165 = vunpack.c.l.b16 %v64
  %v166 = vunpack.c.h.b16 %v64
  %v167 = vunpack.c.l.b16 %v65
  %v168 = vunpack.c.h.b16 %v65
  %v169 = vunpack.c.l.b16 %v66
  %v170 = vunpack.c.h.b16 %v66
  %v171 = vpack.c.b16 %v117, %v115
  %v172 = vpack.c.b16 %v118, %v116
  %v173 = vpack.c.b16 %v121, %v119
  %v174 = vpack.c.b16 %v122, %v120
  %v175 = vpack.c.b16 %v125, %v123
  %v176 = vpack.c.b16 %v126, %v124
  %v177 = vpack.c.b16 %v129, %v127
  %v178 = vpack.c.b16 %v130, %v128
  %v179 = vpack.c.b16 %v133, %v131
  %v180 = vpack.c.b16 %v134, %v132
  %v181 = vpack.c.b16 %v137, %v135
  %v182 = vpack.c.b16 %v138, %v136
  %v183 = vpack.c.b16 %v141, %v139
  %v184 = vpack.c.b16 %v142, %v140
  %v185 = vpack.c.b16 %v145, %v143
  %v186 = vpack.c.b16 %v146, %v144
  %v187 = vpack.c.b16 %v149, %v147
  %v188 = vpack.c.b16 %v150, %v148
  %v189 = vpack.c.b16 %v153, %v151
  %v190 = vpack.c.b16 %v154, %v152
  %v191 = vpack.c.b16 %v157, %v155
  %v192 = vpack.c.b16 %v158, %v156
  %v193 = vpack.c.b16 %v161, %v159
  %v194 = vpack.c.b16 %v162, %v160
  %v195 = vpack.c.b16 %v165, %v163
  %v196 = vpack.c.b16 %v166, %v164
  %v197 = vpack.c.b16 %v169, %v167
  %v198 = vpack.c.b16 %v170, %v168
  %v233 = vunpack.c.l.b16 %v67
  %v234 = vunpack.c.h.b16 %v67
  %v235 = vunpack.c.l.b16 %v68
  %v236 = vunpack.c.h.b16 %v68
  %v237 = vunpack.c.l.b16 %v69
  %v238 = vunpack.c.h.b16 %v69
  %v239 = vunpack.c.l.b16 %v70
  %v240 = vunpack.c.h.b16 %v70
  %v241 = vunpack.c.l.b16 %v71
  %v242 = vunpack.c.h.b16 %v71
  %v243 = vunpack.c.l.b16 %v72
  %v244 = vunpack.c.h.b16 %v72
  %v245 = vunpack.c.l.b16 %v73
  %v246 = vunpack.c.h.b16 %v73
  %v247 = vunpack.c.l.b16 %v74
  %v248 = vunpack.c.h.b16 %v74
  %v249 = vunpack.c.l.b16 %v75
  %v250 = vunpack.c.h.b16 %v75
  %v251 = vunpack.c.l.b16 %v76
  %v252 = vunpack.c.h.b16 %v76
  %v253 = vunpack.c.l.b16 %v77
  %v254 = vunpack.c.h.b16 %v77
  %v255 = vunpack.c.l.b16 %v78
  %v256 = vunpack.c.h.b16 %v78
  %v257 = vunpack.c.l.b16 %v79
  %v258 = vunpack.c.h.b16 %v79
  %v259 = vunpack.c.l.b16 %v80
  %v260 = vunpack.c.h.b16 %v80
  %v261 = vunpack.c.l.b16 %v81
  %v262 = vunpack.c.h.b16 %v81
  %v263 = vunpack.c.l.b16 %v82
  %v264 = vunpack.c.h.b16 %v82
  %v265 = vunpack.c.l.b16 %v83
  %v266 = vunpack.c.h.b16 %v83
  %v267 = vunpack.c.l.b16 %v84
  %v268 = vunpack.c.h.b16 %v84
  %v269 = vunpack.c.l.b16 %v85
  %v270 = vunpack.c.h.b16 %v85
  %v271 = vunpack.c.l.b16 %v86
  %v272 = vunpack.c.h.b16 %v86
  %v273 = vpack.c.b16 %v235, %v233
  %v274 = vpack.c.b16 %v236, %v234
  %v275 = vpack.c.b16 %v239, %v237
  %v276 = vpack.c.b16 %v240, %v238
  %v277 = vpack.c.b16 %v243, %v241
  %v278 = vpack.c.b16 %v244, %v242
  %v279 = vpack.c.b16 %v247, %v245
  %v280 = vpack.c.b16 %v248, %v246
  %v281 = vpack.c.b16 %v251, %v249
  %v282 = vpack.c.b16 %v252, %v250
  %v283 = vpack.c.b16 %v255, %v253
  %v284 = vpack.c.b16 %v256, %v254
  %v285 = vpack.c.b16 %v259, %v257
  %v286 = vpack.c.b16 %v260, %v258
  %v287 = vpack.c.b16 %v263, %v261
  %v288 = vpack.c.b16 %v264, %v262
  %v289 = vpack.c.b16 %v267, %v265
  %v290 = vpack.c.b16 %v268, %v266
  %v291 = vpack.c.b16 %v271, %v269
  %v292 = vpack.c.b16 %v272, %v270
  %vm313 = vcmask 261120
  %v315 = vsel %vm313, %v172, 0
  %v318 = vsel %vm313, %v174, 0
  %v321 = vsel %vm313, %v176, 0
  %v324 = vsel %vm313, %v178, 0
  %v327 = vsel %vm313, %v180, 0
  %v330 = vsel %vm313, %v182, 0
  %v333 = vsel %vm313, %v184, 0
  %v336 = vsel %vm313, %v186, 0
  %v339 = vsel %vm313, %v188, 0
  %v342 = vsel %vm313, %v190, 0
  %v345 = vsel %vm313, %v192, 0
  %v348 = vsel %vm313, %v194, 0
  %v351 = vsel %vm313, %v196, 0
  %v354 = vsel %vm313, %v198, 0
  %356 = vmatpush.bf16.msra.mxu0 %v287
  %357 = vmatpush.bf16.msra.mxu0 %v285
  %358 = vmatpush.bf16.msra.mxu0 %v283
  %359 = vmatpush.bf16.msra.mxu0 %v281
  %360 = vmatpush.bf16.msra.mxu0 %v279
  %361 = vmatpush.bf16.msra.mxu0 %v277
  %362 = vmatpush.bf16.msra.mxu0 %v275
  %363 = vmatpush.bf16.msra.mxu0 %v273
  %364 = vmatmul.bf16.gmra.mxu0 %v171
  %v365 = vpop.f32.mrf.mxu0
  %v366 = vadd.f32 0.0, %v365
  %v367 = vpop.f32.mrf.mxu0
  %v368 = vadd.f32 0.0, %v367
  %369 = vmatmul.bf16.gmra.mxu0 %v173
  %v370 = vpop.f32.mrf.mxu0
  %v371 = vadd.f32 0.0, %v370
  %v372 = vpop.f32.mrf.mxu0
  %v373 = vadd.f32 0.0, %v372
  %374 = vmatmul.bf16.gmra.mxu0 %v175
  %v375 = vpop.f32.mrf.mxu0
  %v376 = vadd.f32 0.0, %v375
  %v377 = vpop.f32.mrf.mxu0
  %v378 = vadd.f32 0.0, %v377
  %379 = vmatmul.bf16.gmra.mxu0 %v177
  %v380 = vpop.f32.mrf.mxu0
  %v381 = vadd.f32 0.0, %v380
  %v382 = vpop.f32.mrf.mxu0
  %v383 = vadd.f32 0.0, %v382
  %384 = vmatmul.bf16.gmra.mxu0 %v179
  %v385 = vpop.f32.mrf.mxu0
  %v386 = vadd.f32 0.0, %v385
  %v387 = vpop.f32.mrf.mxu0
  %v388 = vadd.f32 0.0, %v387
  %389 = vmatmul.bf16.gmra.mxu0 %v181
  %v390 = vpop.f32.mrf.mxu0
  %v391 = vadd.f32 0.0, %v390
  %v392 = vpop.f32.mrf.mxu0
  %v393 = vadd.f32 0.0, %v392
  %394 = vmatmul.bf16.gmra.mxu0 %v183
  %v395 = vpop.f32.mrf.mxu0
  %v396 = vadd.f32 0.0, %v395
  %v397 = vpop.f32.mrf.mxu0
  %v398 = vadd.f32 0.0, %v397
  %399 = vmatmul.bf16.gmra.mxu0 %v185
  %v400 = vpop.f32.mrf.mxu0
  %v401 = vadd.f32 0.0, %v400
  %v402 = vpop.f32.mrf.mxu0
  %v403 = vadd.f32 0.0, %v402
  %404 = vmatmul.bf16.gmra.mxu0 %v187
  %v405 = vpop.f32.mrf.mxu0
  %v406 = vadd.f32 0.0, %v405
  %v407 = vpop.f32.mrf.mxu0
  %v408 = vadd.f32 0.0, %v407
  %409 = vmatmul.bf16.gmra.mxu0 %v189
  %v410 = vpop.f32.mrf.mxu0
  %v411 = vadd.f32 0.0, %v410
  %v412 = vpop.f32.mrf.mxu0
  %v413 = vadd.f32 0.0, %v412
  %414 = vmatmul.bf16.gmra.mxu0 %v191
  %v415 = vpop.f32.mrf.mxu0
  %v416 = vadd.f32 0.0, %v415
  %v417 = vpop.f32.mrf.mxu0
  %v418 = vadd.f32 0.0, %v417
  %419 = vmatmul.bf16.gmra.mxu0 %v193
  %v420 = vpop.f32.mrf.mxu0
  %v421 = vadd.f32 0.0, %v420
  %v422 = vpop.f32.mrf.mxu0
  %v423 = vadd.f32 0.0, %v422
  %424 = vmatmul.bf16.gmra.mxu0 %v195
  %v425 = vpop.f32.mrf.mxu0
  %v426 = vadd.f32 0.0, %v425
  %v427 = vpop.f32.mrf.mxu0
  %v428 = vadd.f32 0.0, %v427
  %429 = vmatmul.bf16.gmra.mxu0 %v197
  %v430 = vpop.f32.mrf.mxu0
  %v431 = vadd.f32 0.0, %v430
  %v432 = vpop.f32.mrf.mxu0
  %v433 = vadd.f32 0.0, %v432
  %434 = vdwg.mxu0
  %435 = vmatpush.bf16.msra.mxu0 0
  %436 = vmatpush.bf16.msra.mxu0 0
  %437 = vmatpush.bf16.msra.mxu0 0
  %438 = vmatpush.bf16.msra.mxu0 0
  %439 = vmatpush.bf16.msra.mxu0 0
  %440 = vmatpush.bf16.msra.mxu0 0
  %441 = vmatpush.bf16.msra.mxu0 %v291
  %442 = vmatpush.bf16.msra.mxu0 %v289
  %443 = vmatmul.bf16.gmra.mxu0 %v315
  %v444 = vpop.f32.mrf.mxu0
  %v445 = vadd.f32 %v366, %v444
  %v446 = vpop.f32.mrf.mxu0
  %v447 = vadd.f32 %v368, %v446
  %448 = vmatmul.bf16.gmra.mxu0 %v318
  %v449 = vpop.f32.mrf.mxu0
  %v450 = vadd.f32 %v371, %v449
  %v451 = vpop.f32.mrf.mxu0
  %v452 = vadd.f32 %v373, %v451
  %453 = vmatmul.bf16.gmra.mxu0 %v321
  %v454 = vpop.f32.mrf.mxu0
  %v455 = vadd.f32 %v376, %v454
  %v456 = vpop.f32.mrf.mxu0
  %v457 = vadd.f32 %v378, %v456
  %458 = vmatmul.bf16.gmra.mxu0 %v324
  %v459 = vpop.f32.mrf.mxu0
  %v460 = vadd.f32 %v381, %v459
  %v461 = vpop.f32.mrf.mxu0
  %v462 = vadd.f32 %v383, %v461
  %463 = vmatmul.bf16.gmra.mxu0 %v327
  %v464 = vpop.f32.mrf.mxu0
  %v465 = vadd.f32 %v386, %v464
  %v466 = vpop.f32.mrf.mxu0
  %v467 = vadd.f32 %v388, %v466
  %468 = vmatmul.bf16.gmra.mxu0 %v330
  %v469 = vpop.f32.mrf.mxu0
  %v470 = vadd.f32 %v391, %v469
  %v471 = vpop.f32.mrf.mxu0
  %v472 = vadd.f32 %v393, %v471
  %473 = vmatmul.bf16.gmra.mxu0 %v333
  %v474 = vpop.f32.mrf.mxu0
  %v475 = vadd.f32 %v396, %v474
  %v476 = vpop.f32.mrf.mxu0
  %v477 = vadd.f32 %v398, %v476
  %478 = vmatmul.bf16.gmra.mxu0 %v336
  %v479 = vpop.f32.mrf.mxu0
  %v480 = vadd.f32 %v401, %v479
  %v481 = vpop.f32.mrf.mxu0
  %v482 = vadd.f32 %v403, %v481
  %483 = vmatmul.bf16.gmra.mxu0 %v339
  %v484 = vpop.f32.mrf.mxu0
  %v485 = vadd.f32 %v406, %v484
  %v486 = vpop.f32.mrf.mxu0
  %v487 = vadd.f32 %v408, %v486
  %488 = vmatmul.bf16.gmra.mxu0 %v342
  %v489 = vpop.f32.mrf.mxu0
  %v490 = vadd.f32 %v411, %v489
  %v491 = vpop.f32.mrf.mxu0
  %v492 = vadd.f32 %v413, %v491
  %493 = vmatmul.bf16.gmra.mxu0 %v345
  %v494 = vpop.f32.mrf.mxu0
  %v495 = vadd.f32 %v416, %v494
  %v496 = vpop.f32.mrf.mxu0
  %v497 = vadd.f32 %v418, %v496
  %498 = vmatmul.bf16.gmra.mxu0 %v348
  %v499 = vpop.f32.mrf.mxu0
  %v500 = vadd.f32 %v421, %v499
  %v501 = vpop.f32.mrf.mxu0
  %v502 = vadd.f32 %v423, %v501
  %503 = vmatmul.bf16.gmra.mxu0 %v351
  %v504 = vpop.f32.mrf.mxu0
  %v505 = vadd.f32 %v426, %v504
  %v506 = vpop.f32.mrf.mxu0
  %v507 = vadd.f32 %v428, %v506
  %508 = vmatmul.bf16.gmra.mxu0 %v354
  %v509 = vpop.f32.mrf.mxu0
  %v510 = vadd.f32 %v431, %v509
  %v511 = vpop.f32.mrf.mxu0
  %v512 = vadd.f32 %v433, %v511
  %513 = vdwg.mxu0
  %514 = vmatpush.bf16.msra.mxu0 %v288
  %515 = vmatpush.bf16.msra.mxu0 %v286
  %516 = vmatpush.bf16.msra.mxu0 %v284
  %517 = vmatpush.bf16.msra.mxu0 %v282
  %518 = vmatpush.bf16.msra.mxu0 %v280
  %519 = vmatpush.bf16.msra.mxu0 %v278
  %520 = vmatpush.bf16.msra.mxu0 %v276
  %521 = vmatpush.bf16.msra.mxu0 %v274
  %522 = vmatmul.bf16.gmra.mxu0 %v171
  %v523 = vpop.f32.mrf.mxu0
  %v524 = vadd.f32 0.0, %v523
  %v525 = vpop.f32.mrf.mxu0
  %v526 = vadd.f32 0.0, %v525
  %527 = vmatmul.bf16.gmra.mxu0 %v173
  %v528 = vpop.f32.mrf.mxu0
  %v529 = vadd.f32 0.0, %v528
  %v530 = vpop.f32.mrf.mxu0
  %v531 = vadd.f32 0.0, %v530
  %532 = vmatmul.bf16.gmra.mxu0 %v175
  %v533 = vpop.f32.mrf.mxu0
  %v534 = vadd.f32 0.0, %v533
  %v535 = vpop.f32.mrf.mxu0
  %v536 = vadd.f32 0.0, %v535
  %537 = vmatmul.bf16.gmra.mxu0 %v177
  %v538 = vpop.f32.mrf.mxu0
  %v539 = vadd.f32 0.0, %v538
  %v540 = vpop.f32.mrf.mxu0
  %v541 = vadd.f32 0.0, %v540
  %542 = vmatmul.bf16.gmra.mxu0 %v179
  %v543 = vpop.f32.mrf.mxu0
  %v544 = vadd.f32 0.0, %v543
  %v545 = vpop.f32.mrf.mxu0
  %v546 = vadd.f32 0.0, %v545
  %547 = vmatmul.bf16.gmra.mxu0 %v181
  %v548 = vpop.f32.mrf.mxu0
  %v549 = vadd.f32 0.0, %v548
  %v550 = vpop.f32.mrf.mxu0
  %v551 = vadd.f32 0.0, %v550
  %552 = vmatmul.bf16.gmra.mxu0 %v183
  %v553 = vpop.f32.mrf.mxu0
  %v554 = vadd.f32 0.0, %v553
  %v555 = vpop.f32.mrf.mxu0
  %v556 = vadd.f32 0.0, %v555
  %557 = vmatmul.bf16.gmra.mxu0 %v185
  %v558 = vpop.f32.mrf.mxu0
  %v559 = vadd.f32 0.0, %v558
  %v560 = vpop.f32.mrf.mxu0
  %v561 = vadd.f32 0.0, %v560
  %562 = vmatmul.bf16.gmra.mxu0 %v187
  %v563 = vpop.f32.mrf.mxu0
  %v564 = vadd.f32 0.0, %v563
  %v565 = vpop.f32.mrf.mxu0
  %v566 = vadd.f32 0.0, %v565
  %567 = vmatmul.bf16.gmra.mxu0 %v189
  %v568 = vpop.f32.mrf.mxu0
  %v569 = vadd.f32 0.0, %v568
  %v570 = vpop.f32.mrf.mxu0
  %v571 = vadd.f32 0.0, %v570
  %572 = vmatmul.bf16.gmra.mxu0 %v191
  %v573 = vpop.f32.mrf.mxu0
  %v574 = vadd.f32 0.0, %v573
  %v575 = vpop.f32.mrf.mxu0
  %v576 = vadd.f32 0.0, %v575
  %577 = vmatmul.bf16.gmra.mxu0 %v193
  %v578 = vpop.f32.mrf.mxu0
  %v579 = vadd.f32 0.0, %v578
  %v580 = vpop.f32.mrf.mxu0
  %v581 = vadd.f32 0.0, %v580
  %582 = vmatmul.bf16.gmra.mxu0 %v195
  %v583 = vpop.f32.mrf.mxu0
  %v584 = vadd.f32 0.0, %v583
  %v585 = vpop.f32.mrf.mxu0
  %v586 = vadd.f32 0.0, %v585
  %587 = vmatmul.bf16.gmra.mxu0 %v197
  %v588 = vpop.f32.mrf.mxu0
  %v589 = vadd.f32 0.0, %v588
  %v590 = vpop.f32.mrf.mxu0
  %v591 = vadd.f32 0.0, %v590
  %592 = vdwg.mxu0
  %593 = vmatpush.bf16.msra.mxu0 0
  %594 = vmatpush.bf16.msra.mxu0 0
  %595 = vmatpush.bf16.msra.mxu0 0
  %596 = vmatpush.bf16.msra.mxu0 0
  %597 = vmatpush.bf16.msra.mxu0 0
  %598 = vmatpush.bf16.msra.mxu0 0
  %599 = vmatpush.bf16.msra.mxu0 %v292
  %600 = vmatpush.bf16.msra.mxu0 %v290
  %601 = vmatmul.bf16.gmra.mxu0 %v315
  %v602 = vpop.f32.mrf.mxu0
  %v603 = vadd.f32 %v524, %v602
  %v604 = vpop.f32.mrf.mxu0
  %v605 = vadd.f32 %v526, %v604
  %606 = vmatmul.bf16.gmra.mxu0 %v318
  %v607 = vpop.f32.mrf.mxu0
  %v608 = vadd.f32 %v529, %v607
  %v609 = vpop.f32.mrf.mxu0
  %v610 = vadd.f32 %v531, %v609
  %611 = vmatmul.bf16.gmra.mxu0 %v321
  %v612 = vpop.f32.mrf.mxu0
  %v613 = vadd.f32 %v534, %v612
  %v614 = vpop.f32.mrf.mxu0
  %v615 = vadd.f32 %v536, %v614
  %616 = vmatmul.bf16.gmra.mxu0 %v324
  %v617 = vpop.f32.mrf.mxu0
  %v618 = vadd.f32 %v539, %v617
  %v619 = vpop.f32.mrf.mxu0
  %v620 = vadd.f32 %v541, %v619
  %621 = vmatmul.bf16.gmra.mxu0 %v327
  %v622 = vpop.f32.mrf.mxu0
  %v623 = vadd.f32 %v544, %v622
  %v624 = vpop.f32.mrf.mxu0
  %v625 = vadd.f32 %v546, %v624
  %626 = vmatmul.bf16.gmra.mxu0 %v330
  %v627 = vpop.f32.mrf.mxu0
  %v628 = vadd.f32 %v549, %v627
  %v629 = vpop.f32.mrf.mxu0
  %v630 = vadd.f32 %v551, %v629
  %631 = vmatmul.bf16.gmra.mxu0 %v333
  %v632 = vpop.f32.mrf.mxu0
  %v633 = vadd.f32 %v554, %v632
  %v634 = vpop.f32.mrf.mxu0
  %v635 = vadd.f32 %v556, %v634
  %636 = vmatmul.bf16.gmra.mxu0 %v336
  %v637 = vpop.f32.mrf.mxu0
  %v638 = vadd.f32 %v559, %v637
  %v639 = vpop.f32.mrf.mxu0
  %v640 = vadd.f32 %v561, %v639
  %641 = vmatmul.bf16.gmra.mxu0 %v339
  %v642 = vpop.f32.mrf.mxu0
  %v643 = vadd.f32 %v564, %v642
  %v644 = vpop.f32.mrf.mxu0
  %v645 = vadd.f32 %v566, %v644
  %646 = vmatmul.bf16.gmra.mxu0 %v342
  %v647 = vpop.f32.mrf.mxu0
  %v648 = vadd.f32 %v569, %v647
  %v649 = vpop.f32.mrf.mxu0
  %v650 = vadd.f32 %v571, %v649
  %651 = vmatmul.bf16.gmra.mxu0 %v345
  %v652 = vpop.f32.mrf.mxu0
  %v653 = vadd.f32 %v574, %v652
  %v654 = vpop.f32.mrf.mxu0
  %v655 = vadd.f32 %v576, %v654
  %656 = vmatmul.bf16.gmra.mxu0 %v348
  %v657 = vpop.f32.mrf.mxu0
  %v658 = vadd.f32 %v579, %v657
  %v659 = vpop.f32.mrf.mxu0
  %v660 = vadd.f32 %v581, %v659
  %661 = vmatmul.bf16.gmra.mxu0 %v351
  %v662 = vpop.f32.mrf.mxu0
  %v663 = vadd.f32 %v584, %v662
  %v664 = vpop.f32.mrf.mxu0
  %v665 = vadd.f32 %v586, %v664
  %666 = vmatmul.bf16.gmra.mxu0 %v354
  %v667 = vpop.f32.mrf.mxu0
  %v668 = vadd.f32 %v589, %v667
  %v669 = vpop.f32.mrf.mxu0
  %v670 = vadd.f32 %v591, %v669
  %671 = vdwg.mxu0
  %v672 = vmax.f32 %v445, %v603
  %v673 = vmax.f32 %v447, %v605
  %v674 = vmax.f32 %v450, %v608
  %v675 = vmax.f32 %v452, %v610
  %v676 = vmax.f32 %v455, %v613
  %v677 = vmax.f32 %v457, %v615
  %v678 = vmax.f32 %v460, %v618
  %v679 = vmax.f32 %v462, %v620
  %v680 = vmax.f32 %v465, %v623
  %v681 = vmax.f32 %v467, %v625
  %v682 = vmax.f32 %v470, %v628
  %v683 = vmax.f32 %v472, %v630
  %v684 = vmax.f32 %v475, %v633
  %v685 = vmax.f32 %v477, %v635
  %v686 = vmax.f32 %v480, %v638
  %v687 = vmax.f32 %v482, %v640
  %v688 = vmax.f32 %v485, %v643
  %v689 = vmax.f32 %v487, %v645
  %v690 = vmax.f32 %v490, %v648
  %v691 = vmax.f32 %v492, %v650
  %v692 = vmax.f32 %v495, %v653
  %v693 = vmax.f32 %v497, %v655
  %v694 = vmax.f32 %v500, %v658
  %v695 = vmax.f32 %v502, %v660
  %v696 = vmax.f32 %v505, %v663
  %v697 = vmax.f32 %v507, %v665
  %v698 = vmax.f32 %v510, %v668
  %v699 = vmax.f32 %v512, %v670
  %v700 = vld [vmem:[%s0 + $0xe0] sm:$0xff]
  %v701 = vld [vmem:[%s0 + $0xe8] sm:$0xff]
  %v702 = vld [vmem:[%s0 + $0xf0] sm:$0xff]
  %v703 = vld [vmem:[%s0 + $0xf8] sm:$0xff]
  %v704 = vld [vmem:[%s0 + $0x100] sm:$0xff]
  %v705 = vld [vmem:[%s0 + $0x108] sm:$0xff]
  %v706 = vld [vmem:[%s0 + $0x110] sm:$0xff]
  %v707 = vld [vmem:[%s0 + $0x118] sm:$0xff]
  %v708 = vld [vmem:[%s0 + $0x120] sm:$0xff]
  %v709 = vld [vmem:[%s0 + $0x128] sm:$0xff]
  %v710 = vld [vmem:[%s0 + $0x130] sm:$0xff]
  %v711 = vld [vmem:[%s0 + $0x138] sm:$0xff]
  %v712 = vld [vmem:[%s0 + $0x140] sm:$0xff]
  %v713 = vld [vmem:[%s0 + $0x148] sm:$0xff]
  %v714 = vld [vmem:[%s0 + $0x150] sm:$0xff]
  %v715 = vld [vmem:[%s0 + $0x158] sm:$0xff]
  %v716 = vld [vmem:[%s0 + $0x160] sm:$0xff]
  %v717 = vld [vmem:[%s0 + $0x168] sm:$0xff]
  %v718 = vld [vmem:[%s0 + $0x170] sm:$0xff]
  %v719 = vld [vmem:[%s0 + $0x178] sm:$0xff]
  %v720 = vld [vmem:[%s0 + $0x180] sm:$0xff]
  %v721 = vld [vmem:[%s0 + $0x188] sm:$0xff]
  %v722 = vld [vmem:[%s0 + $0x190] sm:$0xff]
  %v723 = vld [vmem:[%s0 + $0x198] sm:$0xff]
  %v724 = vld [vmem:[%s0 + $0x1a0] sm:$0xff]
  %v725 = vld [vmem:[%s0 + $0x1a8] sm:$0xff]
  %v726 = vld [vmem:[%s0 + $0x1b0] sm:$0xff]
  %v727 = vld [vmem:[%s0 + $0x1b8] sm:$0xff]
  %v756 = vunpack.c.l.b16 %v700
  %v757 = vunpack.c.h.b16 %v700
  %v758 = vunpack.c.l.b16 %v701
  %v759 = vunpack.c.h.b16 %v701
  %v760 = vunpack.c.l.b16 %v702
  %v761 = vunpack.c.h.b16 %v702
  %v762 = vunpack.c.l.b16 %v703
  %v763 = vunpack.c.h.b16 %v703
  %v764 = vunpack.c.l.b16 %v704
  %v765 = vunpack.c.h.b16 %v704
  %v766 = vunpack.c.l.b16 %v705
  %v767 = vunpack.c.h.b16 %v705
  %v768 = vunpack.c.l.b16 %v706
  %v769 = vunpack.c.h.b16 %v706
  %v770 = vunpack.c.l.b16 %v707
  %v771 = vunpack.c.h.b16 %v707
  %v772 = vunpack.c.l.b16 %v708
  %v773 = vunpack.c.h.b16 %v708
  %v774 = vunpack.c.l.b16 %v709
  %v775 = vunpack.c.h.b16 %v709
  %v776 = vunpack.c.l.b16 %v710
  %v777 = vunpack.c.h.b16 %v710
  %v778 = vunpack.c.l.b16 %v711
  %v779 = vunpack.c.h.b16 %v711
  %v780 = vunpack.c.l.b16 %v712
  %v781 = vunpack.c.h.b16 %v712
  %v782 = vunpack.c.l.b16 %v713
  %v783 = vunpack.c.h.b16 %v713
  %v784 = vunpack.c.l.b16 %v714
  %v785 = vunpack.c.h.b16 %v714
  %v786 = vunpack.c.l.b16 %v715
  %v787 = vunpack.c.h.b16 %v715
  %v788 = vunpack.c.l.b16 %v716
  %v789 = vunpack.c.h.b16 %v716
  %v790 = vunpack.c.l.b16 %v717
  %v791 = vunpack.c.h.b16 %v717
  %v792 = vunpack.c.l.b16 %v718
  %v793 = vunpack.c.h.b16 %v718
  %v794 = vunpack.c.l.b16 %v719
  %v795 = vunpack.c.h.b16 %v719
  %v796 = vunpack.c.l.b16 %v720
  %v797 = vunpack.c.h.b16 %v720
  %v798 = vunpack.c.l.b16 %v721
  %v799 = vunpack.c.h.b16 %v721
  %v800 = vunpack.c.l.b16 %v722
  %v801 = vunpack.c.h.b16 %v722
  %v802 = vunpack.c.l.b16 %v723
  %v803 = vunpack.c.h.b16 %v723
  %v804 = vunpack.c.l.b16 %v724
  %v805 = vunpack.c.h.b16 %v724
  %v806 = vunpack.c.l.b16 %v725
  %v807 = vunpack.c.h.b16 %v725
  %v808 = vunpack.c.l.b16 %v726
  %v809 = vunpack.c.h.b16 %v726
  %v810 = vunpack.c.l.b16 %v727
  %v811 = vunpack.c.h.b16 %v727
  %v812 = vpack.c.b16 %v758, %v756
  %v813 = vpack.c.b16 %v759, %v757
  %v814 = vpack.c.b16 %v762, %v760
  %v815 = vpack.c.b16 %v763, %v761
  %v816 = vpack.c.b16 %v766, %v764
  %v817 = vpack.c.b16 %v767, %v765
  %v818 = vpack.c.b16 %v770, %v768
  %v819 = vpack.c.b16 %v771, %v769
  %v820 = vpack.c.b16 %v774, %v772
  %v821 = vpack.c.b16 %v775, %v773
  %v822 = vpack.c.b16 %v778, %v776
  %v823 = vpack.c.b16 %v779, %v777
  %v824 = vpack.c.b16 %v782, %v780
  %v825 = vpack.c.b16 %v783, %v781
  %v826 = vpack.c.b16 %v786, %v784
  %v827 = vpack.c.b16 %v787, %v785
  %v828 = vpack.c.b16 %v790, %v788
  %v829 = vpack.c.b16 %v791, %v789
  %v830 = vpack.c.b16 %v794, %v792
  %v831 = vpack.c.b16 %v795, %v793
  %v832 = vpack.c.b16 %v798, %v796
  %v833 = vpack.c.b16 %v799, %v797
  %v834 = vpack.c.b16 %v802, %v800
  %v835 = vpack.c.b16 %v803, %v801
  %v836 = vpack.c.b16 %v806, %v804
  %v837 = vpack.c.b16 %v807, %v805
  %v838 = vpack.c.b16 %v810, %v808
  %v839 = vpack.c.b16 %v811, %v809
  %v855 = vsel %vm313, %v813, 0
  %v858 = vsel %vm313, %v815, 0
  %v861 = vsel %vm313, %v817, 0
  %v864 = vsel %vm313, %v819, 0
  %v867 = vsel %vm313, %v821, 0
  %v870 = vsel %vm313, %v823, 0
  %v873 = vsel %vm313, %v825, 0
  %v876 = vsel %vm313, %v827, 0
  %v879 = vsel %vm313, %v829, 0
  %v882 = vsel %vm313, %v831, 0
  %v885 = vsel %vm313, %v833, 0
  %v888 = vsel %vm313, %v835, 0
  %v891 = vsel %vm313, %v837, 0
  %v894 = vsel %vm313, %v839, 0
  %896 = vmatpush.bf16.msra.mxu0 %v287
  %897 = vmatpush.bf16.msra.mxu0 %v285
  %898 = vmatpush.bf16.msra.mxu0 %v283
  %899 = vmatpush.bf16.msra.mxu0 %v281
  %900 = vmatpush.bf16.msra.mxu0 %v279
  %901 = vmatpush.bf16.msra.mxu0 %v277
  %902 = vmatpush.bf16.msra.mxu0 %v275
  %903 = vmatpush.bf16.msra.mxu0 %v273
  %904 = vmatmul.bf16.gmra.mxu0 %v812
  %v905 = vpop.f32.mrf.mxu0
  %v906 = vadd.f32 0.0, %v905
  %v907 = vpop.f32.mrf.mxu0
  %v908 = vadd.f32 0.0, %v907
  %909 = vmatmul.bf16.gmra.mxu0 %v814
  %v910 = vpop.f32.mrf.mxu0
  %v911 = vadd.f32 0.0, %v910
  %v912 = vpop.f32.mrf.mxu0
  %v913 = vadd.f32 0.0, %v912
  %914 = vmatmul.bf16.gmra.mxu0 %v816
  %v915 = vpop.f32.mrf.mxu0
  %v916 = vadd.f32 0.0, %v915
  %v917 = vpop.f32.mrf.mxu0
  %v918 = vadd.f32 0.0, %v917
  %919 = vmatmul.bf16.gmra.mxu0 %v818
  %v920 = vpop.f32.mrf.mxu0
  %v921 = vadd.f32 0.0, %v920
  %v922 = vpop.f32.mrf.mxu0
  %v923 = vadd.f32 0.0, %v922
  %924 = vmatmul.bf16.gmra.mxu0 %v820
  %v925 = vpop.f32.mrf.mxu0
  %v926 = vadd.f32 0.0, %v925
  %v927 = vpop.f32.mrf.mxu0
  %v928 = vadd.f32 0.0, %v927
  %929 = vmatmul.bf16.gmra.mxu0 %v822
  %v930 = vpop.f32.mrf.mxu0
  %v931 = vadd.f32 0.0, %v930
  %v932 = vpop.f32.mrf.mxu0
  %v933 = vadd.f32 0.0, %v932
  %934 = vmatmul.bf16.gmra.mxu0 %v824
  %v935 = vpop.f32.mrf.mxu0
  %v936 = vadd.f32 0.0, %v935
  %v937 = vpop.f32.mrf.mxu0
  %v938 = vadd.f32 0.0, %v937
  %939 = vmatmul.bf16.gmra.mxu0 %v826
  %v940 = vpop.f32.mrf.mxu0
  %v941 = vadd.f32 0.0, %v940
  %v942 = vpop.f32.mrf.mxu0
  %v943 = vadd.f32 0.0, %v942
  %944 = vmatmul.bf16.gmra.mxu0 %v828
  %v945 = vpop.f32.mrf.mxu0
  %v946 = vadd.f32 0.0, %v945
  %v947 = vpop.f32.mrf.mxu0
  %v948 = vadd.f32 0.0, %v947
  %949 = vmatmul.bf16.gmra.mxu0 %v830
  %v950 = vpop.f32.mrf.mxu0
  %v951 = vadd.f32 0.0, %v950
  %v952 = vpop.f32.mrf.mxu0
  %v953 = vadd.f32 0.0, %v952
  %954 = vmatmul.bf16.gmra.mxu0 %v832
  %v955 = vpop.f32.mrf.mxu0
  %v956 = vadd.f32 0.0, %v955
  %v957 = vpop.f32.mrf.mxu0
  %v958 = vadd.f32 0.0, %v957
  %959 = vmatmul.bf16.gmra.mxu0 %v834
  %v960 = vpop.f32.mrf.mxu0
  %v961 = vadd.f32 0.0, %v960
  %v962 = vpop.f32.mrf.mxu0
  %v963 = vadd.f32 0.0, %v962
  %964 = vmatmul.bf16.gmra.mxu0 %v836
  %v965 = vpop.f32.mrf.mxu0
  %v966 = vadd.f32 0.0, %v965
  %v967 = vpop.f32.mrf.mxu0
  %v968 = vadd.f32 0.0, %v967
  %969 = vmatmul.bf16.gmra.mxu0 %v838
  %v970 = vpop.f32.mrf.mxu0
  %v971 = vadd.f32 0.0, %v970
  %v972 = vpop.f32.mrf.mxu0
  %v973 = vadd.f32 0.0, %v972
  %974 = vdwg.mxu0
  %975 = vmatpush.bf16.msra.mxu0 0
  %976 = vmatpush.bf16.msra.mxu0 0
  %977 = vmatpush.bf16.msra.mxu0 0
  %978 = vmatpush.bf16.msra.mxu0 0
  %979 = vmatpush.bf16.msra.mxu0 0
  %980 = vmatpush.bf16.msra.mxu0 0
  %981 = vmatpush.bf16.msra.mxu0 %v291
  %982 = vmatpush.bf16.msra.mxu0 %v289
  %983 = vmatmul.bf16.gmra.mxu0 %v855
  %v984 = vpop.f32.mrf.mxu0
  %v985 = vadd.f32 %v906, %v984
  %v986 = vpop.f32.mrf.mxu0
  %v987 = vadd.f32 %v908, %v986
  %988 = vmatmul.bf16.gmra.mxu0 %v858
  %v989 = vpop.f32.mrf.mxu0
  %v990 = vadd.f32 %v911, %v989
  %v991 = vpop.f32.mrf.mxu0
  %v992 = vadd.f32 %v913, %v991
  %993 = vmatmul.bf16.gmra.mxu0 %v861
  %v994 = vpop.f32.mrf.mxu0
  %v995 = vadd.f32 %v916, %v994
  %v996 = vpop.f32.mrf.mxu0
  %v997 = vadd.f32 %v918, %v996
  %998 = vmatmul.bf16.gmra.mxu0 %v864
  %v999 = vpop.f32.mrf.mxu0
  %v1000 = vadd.f32 %v921, %v999
  %v1001 = vpop.f32.mrf.mxu0
  %v1002 = vadd.f32 %v923, %v1001
  %1003 = vmatmul.bf16.gmra.mxu0 %v867
  %v1004 = vpop.f32.mrf.mxu0
  %v1005 = vadd.f32 %v926, %v1004
  %v1006 = vpop.f32.mrf.mxu0
  %v1007 = vadd.f32 %v928, %v1006
  %1008 = vmatmul.bf16.gmra.mxu0 %v870
  %v1009 = vpop.f32.mrf.mxu0
  %v1010 = vadd.f32 %v931, %v1009
  %v1011 = vpop.f32.mrf.mxu0
  %v1012 = vadd.f32 %v933, %v1011
  %1013 = vmatmul.bf16.gmra.mxu0 %v873
  %v1014 = vpop.f32.mrf.mxu0
  %v1015 = vadd.f32 %v936, %v1014
  %v1016 = vpop.f32.mrf.mxu0
  %v1017 = vadd.f32 %v938, %v1016
  %1018 = vmatmul.bf16.gmra.mxu0 %v876
  %v1019 = vpop.f32.mrf.mxu0
  %v1020 = vadd.f32 %v941, %v1019
  %v1021 = vpop.f32.mrf.mxu0
  %v1022 = vadd.f32 %v943, %v1021
  %1023 = vmatmul.bf16.gmra.mxu0 %v879
  %v1024 = vpop.f32.mrf.mxu0
  %v1025 = vadd.f32 %v946, %v1024
  %v1026 = vpop.f32.mrf.mxu0
  %v1027 = vadd.f32 %v948, %v1026
  %1028 = vmatmul.bf16.gmra.mxu0 %v882
  %v1029 = vpop.f32.mrf.mxu0
  %v1030 = vadd.f32 %v951, %v1029
  %v1031 = vpop.f32.mrf.mxu0
  %v1032 = vadd.f32 %v953, %v1031
  %1033 = vmatmul.bf16.gmra.mxu0 %v885
  %v1034 = vpop.f32.mrf.mxu0
  %v1035 = vadd.f32 %v956, %v1034
  %v1036 = vpop.f32.mrf.mxu0
  %v1037 = vadd.f32 %v958, %v1036
  %1038 = vmatmul.bf16.gmra.mxu0 %v888
  %v1039 = vpop.f32.mrf.mxu0
  %v1040 = vadd.f32 %v961, %v1039
  %v1041 = vpop.f32.mrf.mxu0
  %v1042 = vadd.f32 %v963, %v1041
  %1043 = vmatmul.bf16.gmra.mxu0 %v891
  %v1044 = vpop.f32.mrf.mxu0
  %v1045 = vadd.f32 %v966, %v1044
  %v1046 = vpop.f32.mrf.mxu0
  %v1047 = vadd.f32 %v968, %v1046
  %1048 = vmatmul.bf16.gmra.mxu0 %v894
  %v1049 = vpop.f32.mrf.mxu0
  %v1050 = vadd.f32 %v971, %v1049
  %v1051 = vpop.f32.mrf.mxu0
  %v1052 = vadd.f32 %v973, %v1051
  %1053 = vdwg.mxu0
  %1054 = vmatpush.bf16.msra.mxu0 %v288
  %1055 = vmatpush.bf16.msra.mxu0 %v286
  %1056 = vmatpush.bf16.msra.mxu0 %v284
  %1057 = vmatpush.bf16.msra.mxu0 %v282
  %1058 = vmatpush.bf16.msra.mxu0 %v280
  %1059 = vmatpush.bf16.msra.mxu0 %v278
  %1060 = vmatpush.bf16.msra.mxu0 %v276
  %1061 = vmatpush.bf16.msra.mxu0 %v274
  %1062 = vmatmul.bf16.gmra.mxu0 %v812
  %v1063 = vpop.f32.mrf.mxu0
  %v1064 = vadd.f32 0.0, %v1063
  %v1065 = vpop.f32.mrf.mxu0
  %v1066 = vadd.f32 0.0, %v1065
  %1067 = vmatmul.bf16.gmra.mxu0 %v814
  %v1068 = vpop.f32.mrf.mxu0
  %v1069 = vadd.f32 0.0, %v1068
  %v1070 = vpop.f32.mrf.mxu0
  %v1071 = vadd.f32 0.0, %v1070
  %1072 = vmatmul.bf16.gmra.mxu0 %v816
  %v1073 = vpop.f32.mrf.mxu0
  %v1074 = vadd.f32 0.0, %v1073
  %v1075 = vpop.f32.mrf.mxu0
  %v1076 = vadd.f32 0.0, %v1075
  %1077 = vmatmul.bf16.gmra.mxu0 %v818
  %v1078 = vpop.f32.mrf.mxu0
  %v1079 = vadd.f32 0.0, %v1078
  %v1080 = vpop.f32.mrf.mxu0
  %v1081 = vadd.f32 0.0, %v1080
  %1082 = vmatmul.bf16.gmra.mxu0 %v820
  %v1083 = vpop.f32.mrf.mxu0
  %v1084 = vadd.f32 0.0, %v1083
  %v1085 = vpop.f32.mrf.mxu0
  %v1086 = vadd.f32 0.0, %v1085
  %1087 = vmatmul.bf16.gmra.mxu0 %v822
  %v1088 = vpop.f32.mrf.mxu0
  %v1089 = vadd.f32 0.0, %v1088
  %v1090 = vpop.f32.mrf.mxu0
  %v1091 = vadd.f32 0.0, %v1090
  %1092 = vmatmul.bf16.gmra.mxu0 %v824
  %v1093 = vpop.f32.mrf.mxu0
  %v1094 = vadd.f32 0.0, %v1093
  %v1095 = vpop.f32.mrf.mxu0
  %v1096 = vadd.f32 0.0, %v1095
  %1097 = vmatmul.bf16.gmra.mxu0 %v826
  %v1098 = vpop.f32.mrf.mxu0
  %v1099 = vadd.f32 0.0, %v1098
  %v1100 = vpop.f32.mrf.mxu0
  %v1101 = vadd.f32 0.0, %v1100
  %1102 = vmatmul.bf16.gmra.mxu0 %v828
  %v1103 = vpop.f32.mrf.mxu0
  %v1104 = vadd.f32 0.0, %v1103
  %v1105 = vpop.f32.mrf.mxu0
  %v1106 = vadd.f32 0.0, %v1105
  %1107 = vmatmul.bf16.gmra.mxu0 %v830
  %v1108 = vpop.f32.mrf.mxu0
  %v1109 = vadd.f32 0.0, %v1108
  %v1110 = vpop.f32.mrf.mxu0
  %v1111 = vadd.f32 0.0, %v1110
  %1112 = vmatmul.bf16.gmra.mxu0 %v832
  %v1113 = vpop.f32.mrf.mxu0
  %v1114 = vadd.f32 0.0, %v1113
  %v1115 = vpop.f32.mrf.mxu0
  %v1116 = vadd.f32 0.0, %v1115
  %1117 = vmatmul.bf16.gmra.mxu0 %v834
  %v1118 = vpop.f32.mrf.mxu0
  %v1119 = vadd.f32 0.0, %v1118
  %v1120 = vpop.f32.mrf.mxu0
  %v1121 = vadd.f32 0.0, %v1120
  %1122 = vmatmul.bf16.gmra.mxu0 %v836
  %v1123 = vpop.f32.mrf.mxu0
  %v1124 = vadd.f32 0.0, %v1123
  %v1125 = vpop.f32.mrf.mxu0
  %v1126 = vadd.f32 0.0, %v1125
  %1127 = vmatmul.bf16.gmra.mxu0 %v838
  %v1128 = vpop.f32.mrf.mxu0
  %v1129 = vadd.f32 0.0, %v1128
  %v1130 = vpop.f32.mrf.mxu0
  %v1131 = vadd.f32 0.0, %v1130
  %1132 = vdwg.mxu0
  %1133 = vmatpush.bf16.msra.mxu0 0
  %1134 = vmatpush.bf16.msra.mxu0 0
  %1135 = vmatpush.bf16.msra.mxu0 0
  %1136 = vmatpush.bf16.msra.mxu0 0
  %1137 = vmatpush.bf16.msra.mxu0 0
  %1138 = vmatpush.bf16.msra.mxu0 0
  %1139 = vmatpush.bf16.msra.mxu0 %v292
  %1140 = vmatpush.bf16.msra.mxu0 %v290
  %1141 = vmatmul.bf16.gmra.mxu0 %v855
  %v1142 = vpop.f32.mrf.mxu0
  %v1143 = vadd.f32 %v1064, %v1142
  %v1144 = vpop.f32.mrf.mxu0
  %v1145 = vadd.f32 %v1066, %v1144
  %1146 = vmatmul.bf16.gmra.mxu0 %v858
  %v1147 = vpop.f32.mrf.mxu0
  %v1148 = vadd.f32 %v1069, %v1147
  %v1149 = vpop.f32.mrf.mxu0
  %v1150 = vadd.f32 %v1071, %v1149
  %1151 = vmatmul.bf16.gmra.mxu0 %v861
  %v1152 = vpop.f32.mrf.mxu0
  %v1153 = vadd.f32 %v1074, %v1152
  %v1154 = vpop.f32.mrf.mxu0
  %v1155 = vadd.f32 %v1076, %v1154
  %1156 = vmatmul.bf16.gmra.mxu0 %v864
  %v1157 = vpop.f32.mrf.mxu0
  %v1158 = vadd.f32 %v1079, %v1157
  %v1159 = vpop.f32.mrf.mxu0
  %v1160 = vadd.f32 %v1081, %v1159
  %1161 = vmatmul.bf16.gmra.mxu0 %v867
  %v1162 = vpop.f32.mrf.mxu0
  %v1163 = vadd.f32 %v1084, %v1162
  %v1164 = vpop.f32.mrf.mxu0
  %v1165 = vadd.f32 %v1086, %v1164
  %1166 = vmatmul.bf16.gmra.mxu0 %v870
  %v1167 = vpop.f32.mrf.mxu0
  %v1168 = vadd.f32 %v1089, %v1167
  %v1169 = vpop.f32.mrf.mxu0
  %v1170 = vadd.f32 %v1091, %v1169
  %1171 = vmatmul.bf16.gmra.mxu0 %v873
  %v1172 = vpop.f32.mrf.mxu0
  %v1173 = vadd.f32 %v1094, %v1172
  %v1174 = vpop.f32.mrf.mxu0
  %v1175 = vadd.f32 %v1096, %v1174
  %1176 = vmatmul.bf16.gmra.mxu0 %v876
  %v1177 = vpop.f32.mrf.mxu0
  %v1178 = vadd.f32 %v1099, %v1177
  %v1179 = vpop.f32.mrf.mxu0
  %v1180 = vadd.f32 %v1101, %v1179
  %1181 = vmatmul.bf16.gmra.mxu0 %v879
  %v1182 = vpop.f32.mrf.mxu0
  %v1183 = vadd.f32 %v1104, %v1182
  %v1184 = vpop.f32.mrf.mxu0
  %v1185 = vadd.f32 %v1106, %v1184
  %1186 = vmatmul.bf16.gmra.mxu0 %v882
  %v1187 = vpop.f32.mrf.mxu0
  %v1188 = vadd.f32 %v1109, %v1187
  %v1189 = vpop.f32.mrf.mxu0
  %v1190 = vadd.f32 %v1111, %v1189
  %1191 = vmatmul.bf16.gmra.mxu0 %v885
  %v1192 = vpop.f32.mrf.mxu0
  %v1193 = vadd.f32 %v1114, %v1192
  %v1194 = vpop.f32.mrf.mxu0
  %v1195 = vadd.f32 %v1116, %v1194
  %1196 = vmatmul.bf16.gmra.mxu0 %v888
  %v1197 = vpop.f32.mrf.mxu0
  %v1198 = vadd.f32 %v1119, %v1197
  %v1199 = vpop.f32.mrf.mxu0
  %v1200 = vadd.f32 %v1121, %v1199
  %1201 = vmatmul.bf16.gmra.mxu0 %v891
  %v1202 = vpop.f32.mrf.mxu0
  %v1203 = vadd.f32 %v1124, %v1202
  %v1204 = vpop.f32.mrf.mxu0
  %v1205 = vadd.f32 %v1126, %v1204
  %1206 = vmatmul.bf16.gmra.mxu0 %v894
  %v1207 = vpop.f32.mrf.mxu0
  %v1208 = vadd.f32 %v1129, %v1207
  %v1209 = vpop.f32.mrf.mxu0
  %v1210 = vadd.f32 %v1131, %v1209
  %1211 = vdwg.mxu0
  %v1212 = vmax.f32 %v985, %v1143
  %v1213 = vmax.f32 %v987, %v1145
  %v1214 = vmax.f32 %v990, %v1148
  %v1215 = vmax.f32 %v992, %v1150
  %v1216 = vmax.f32 %v995, %v1153
  %v1217 = vmax.f32 %v997, %v1155
  %v1218 = vmax.f32 %v1000, %v1158
  %v1219 = vmax.f32 %v1002, %v1160
  %v1220 = vmax.f32 %v1005, %v1163
  %v1221 = vmax.f32 %v1007, %v1165
  %v1222 = vmax.f32 %v1010, %v1168
  %v1223 = vmax.f32 %v1012, %v1170
  %v1224 = vmax.f32 %v1015, %v1173
  %v1225 = vmax.f32 %v1017, %v1175
  %v1226 = vmax.f32 %v1020, %v1178
  %v1227 = vmax.f32 %v1022, %v1180
  %v1228 = vmax.f32 %v1025, %v1183
  %v1229 = vmax.f32 %v1027, %v1185
  %v1230 = vmax.f32 %v1030, %v1188
  %v1231 = vmax.f32 %v1032, %v1190
  %v1232 = vmax.f32 %v1035, %v1193
  %v1233 = vmax.f32 %v1037, %v1195
  %v1234 = vmax.f32 %v1040, %v1198
  %v1235 = vmax.f32 %v1042, %v1200
  %v1236 = vmax.f32 %v1045, %v1203
  %v1237 = vmax.f32 %v1047, %v1205
  %v1238 = vmax.f32 %v1050, %v1208
  %v1239 = vmax.f32 %v1052, %v1210
  %v1240 = vmax.f32 %v672, %v1212
  %v1241 = vmax.f32 %v673, %v1213
  %v1242 = vmax.f32 %v674, %v1214
  %v1243 = vmax.f32 %v675, %v1215
  %v1244 = vmax.f32 %v676, %v1216
  %v1245 = vmax.f32 %v677, %v1217
  %v1246 = vmax.f32 %v678, %v1218
  %v1247 = vmax.f32 %v679, %v1219
  %v1248 = vmax.f32 %v680, %v1220
  %v1249 = vmax.f32 %v681, %v1221
  %v1250 = vmax.f32 %v682, %v1222
  %v1251 = vmax.f32 %v683, %v1223
  %v1252 = vmax.f32 %v684, %v1224
  %v1253 = vmax.f32 %v685, %v1225
  %v1254 = vmax.f32 %v686, %v1226
  %v1255 = vmax.f32 %v687, %v1227
  %v1256 = vmax.f32 %v688, %v1228
  %v1257 = vmax.f32 %v689, %v1229
  %v1258 = vmax.f32 %v690, %v1230
  %v1259 = vmax.f32 %v691, %v1231
  %v1260 = vmax.f32 %v692, %v1232
  %v1261 = vmax.f32 %v693, %v1233
  %v1262 = vmax.f32 %v694, %v1234
  %v1263 = vmax.f32 %v695, %v1235
  %v1264 = vmax.f32 %v696, %v1236
  %v1265 = vmax.f32 %v697, %v1237
  %v1266 = vmax.f32 %v698, %v1238
  %v1267 = vmax.f32 %v699, %v1239
  %v1268 = vld [vmem:[%s2] sm:$0x1]
  %v1270 = vperm.slane %v1268, 0
  %v1272 = vadd.f32 %v1240, %v1270
  %v1273 = vadd.f32 %v1241, %v1270
  %v1274 = vadd.f32 %v1242, %v1270
  %v1275 = vadd.f32 %v1243, %v1270
  %v1276 = vadd.f32 %v1244, %v1270
  %v1277 = vadd.f32 %v1245, %v1270
  %v1278 = vadd.f32 %v1246, %v1270
  %v1279 = vadd.f32 %v1247, %v1270
  %v1280 = vadd.f32 %v1248, %v1270
  %v1281 = vadd.f32 %v1249, %v1270
  %v1282 = vadd.f32 %v1250, %v1270
  %v1283 = vadd.f32 %v1251, %v1270
  %v1284 = vadd.f32 %v1252, %v1270
  %v1285 = vadd.f32 %v1253, %v1270
  %v1286 = vadd.f32 %v1254, %v1270
  %v1287 = vadd.f32 %v1255, %v1270
  %v1288 = vadd.f32 %v1256, %v1270
  %v1289 = vadd.f32 %v1257, %v1270
  %v1290 = vadd.f32 %v1258, %v1270
  %v1291 = vadd.f32 %v1259, %v1270
  %v1292 = vadd.f32 %v1260, %v1270
  %v1293 = vadd.f32 %v1261, %v1270
  %v1294 = vadd.f32 %v1262, %v1270
  %v1295 = vadd.f32 %v1263, %v1270
  %v1296 = vadd.f32 %v1264, %v1270
  %v1297 = vadd.f32 %v1265, %v1270
  %v1298 = vadd.f32 %v1266, %v1270
  %v1299 = vadd.f32 %v1267, %v1270
  %v1300 = vmax.f32 %v1272, 0.0
  %v1301 = vmax.f32 %v1273, 0.0
  %v1302 = vmax.f32 %v1274, 0.0
  %v1303 = vmax.f32 %v1275, 0.0
  %v1304 = vmax.f32 %v1276, 0.0
  %v1305 = vmax.f32 %v1277, 0.0
  %v1306 = vmax.f32 %v1278, 0.0
  %v1307 = vmax.f32 %v1279, 0.0
  %v1308 = vmax.f32 %v1280, 0.0
  %v1309 = vmax.f32 %v1281, 0.0
  %v1310 = vmax.f32 %v1282, 0.0
  %v1311 = vmax.f32 %v1283, 0.0
  %v1312 = vmax.f32 %v1284, 0.0
  %v1313 = vmax.f32 %v1285, 0.0
  %v1314 = vmax.f32 %v1286, 0.0
  %v1315 = vmax.f32 %v1287, 0.0
  %v1316 = vmax.f32 %v1288, 0.0
  %v1317 = vmax.f32 %v1289, 0.0
  %v1318 = vmax.f32 %v1290, 0.0
  %v1319 = vmax.f32 %v1291, 0.0
  %v1320 = vmax.f32 %v1292, 0.0
  %v1321 = vmax.f32 %v1293, 0.0
  %v1322 = vmax.f32 %v1294, 0.0
  %v1323 = vmax.f32 %v1295, 0.0
  %v1324 = vmax.f32 %v1296, 0.0
  %v1325 = vmax.f32 %v1297, 0.0
  %v1326 = vmax.f32 %v1298, 0.0
  %v1327 = vmax.f32 %v1299, 0.0
  %1328 = vst [vmem:[#allocation2] sm:$0xff] %v1300
  %1329 = vst [vmem:[#allocation2 + $0x8] sm:$0xff] %v1301
  %1330 = vst [vmem:[#allocation2 + $0x10] sm:$0xff] %v1302
  %1331 = vst [vmem:[#allocation2 + $0x18] sm:$0xff] %v1303
  %1332 = vst [vmem:[#allocation2 + $0x20] sm:$0xff] %v1304
  %1333 = vst [vmem:[#allocation2 + $0x28] sm:$0xff] %v1305
  %1334 = vst [vmem:[#allocation2 + $0x30] sm:$0xff] %v1306
  %1335 = vst [vmem:[#allocation2 + $0x38] sm:$0xff] %v1307
  %1336 = vst [vmem:[#allocation2 + $0x40] sm:$0xff] %v1308
  %1337 = vst [vmem:[#allocation2 + $0x48] sm:$0xff] %v1309
  %1338 = vst [vmem:[#allocation2 + $0x50] sm:$0xff] %v1310
  %1339 = vst [vmem:[#allocation2 + $0x58] sm:$0xff] %v1311
  %1340 = vst [vmem:[#allocation2 + $0x60] sm:$0xff] %v1312
  %1341 = vst [vmem:[#allocation2 + $0x68] sm:$0xff] %v1313
  %1342 = vst [vmem:[#allocation2 + $0x70] sm:$0xff] %v1314
  %1343 = vst [vmem:[#allocation2 + $0x78] sm:$0xff] %v1315
  %1344 = vst [vmem:[#allocation2 + $0x80] sm:$0xff] %v1316
  %1345 = vst [vmem:[#allocation2 + $0x88] sm:$0xff] %v1317
  %1346 = vst [vmem:[#allocation2 + $0x90] sm:$0xff] %v1318
  %1347 = vst [vmem:[#allocation2 + $0x98] sm:$0xff] %v1319
  %1348 = vst [vmem:[#allocation2 + $0xa0] sm:$0xff] %v1320
  %1349 = vst [vmem:[#allocation2 + $0xa8] sm:$0xff] %v1321
  %1350 = vst [vmem:[#allocation2 + $0xb0] sm:$0xff] %v1322
  %1351 = vst [vmem:[#allocation2 + $0xb8] sm:$0xff] %v1323
  %1352 = vst [vmem:[#allocation2 + $0xc0] sm:$0xff] %v1324
  %1353 = vst [vmem:[#allocation2 + $0xc8] sm:$0xff] %v1325
  %1354 = vst [vmem:[#allocation2 + $0xd0] sm:$0xff] %v1326
  %1355 = vst [vmem:[#allocation2 + $0xd8] sm:$0xff] %v1327
  %v1356 = vld [vmem:[#allocation2] sm:$0xff]
  %v1357 = vld [vmem:[#allocation2 + $0x8] sm:$0xff]
  %v1358 = vld [vmem:[#allocation2 + $0x10] sm:$0xff]
  %v1359 = vld [vmem:[#allocation2 + $0x18] sm:$0xff]
  %v1360 = vld [vmem:[#allocation2 + $0x20] sm:$0xff]
  %v1361 = vld [vmem:[#allocation2 + $0x28] sm:$0xff]
  %v1362 = vld [vmem:[#allocation2 + $0x30] sm:$0xff]
  %v1363 = vld [vmem:[#allocation2 + $0x38] sm:$0xff]
  %v1364 = vld [vmem:[#allocation2 + $0x40] sm:$0xff]
  %v1365 = vld [vmem:[#allocation2 + $0x48] sm:$0xff]
  %v1366 = vld [vmem:[#allocation2 + $0x50] sm:$0xff]
  %v1367 = vld [vmem:[#allocation2 + $0x58] sm:$0xff]
  %v1368 = vld [vmem:[#allocation2 + $0x60] sm:$0xff]
  %v1369 = vld [vmem:[#allocation2 + $0x68] sm:$0xff]
  %v1370 = vld [vmem:[#allocation2 + $0x70] sm:$0xff]
  %v1371 = vld [vmem:[#allocation2 + $0x78] sm:$0xff]
  %v1372 = vld [vmem:[#allocation2 + $0x80] sm:$0xff]
  %v1373 = vld [vmem:[#allocation2 + $0x88] sm:$0xff]
  %v1374 = vld [vmem:[#allocation2 + $0x90] sm:$0xff]
  %v1375 = vld [vmem:[#allocation2 + $0x98] sm:$0xff]
  %v1376 = vpack.c.bf16 %v1357, %v1356
  %v1377 = vpack.c.bf16 %v1359, %v1358
  %v1378 = vpack.c.bf16 %v1361, %v1360
  %v1379 = vpack.c.bf16 %v1363, %v1362
  %v1380 = vpack.c.bf16 %v1365, %v1364
  %v1381 = vpack.c.bf16 %v1367, %v1366
  %v1382 = vpack.c.bf16 %v1369, %v1368
  %v1383 = vpack.c.bf16 %v1371, %v1370
  %v1384 = vpack.c.bf16 %v1373, %v1372
  %v1385 = vpack.c.bf16 %v1375, %v1374
  %v1386 = vld [vmem:[%s3] sm:$0xff]
  %v1387 = vld [vmem:[%s3 + $0x8] sm:$0xff]
  %v1388 = vld [vmem:[%s3 + $0x10] sm:$0xff]
  %v1389 = vld [vmem:[%s3 + $0x18] sm:$0xff]
  %v1390 = vld [vmem:[%s3 + $0x20] sm:$0xff]
  %v1391 = vld [vmem:[%s3 + $0x28] sm:$0xff]
  %v1392 = vld [vmem:[%s3 + $0x30] sm:$0xff]
  %v1393 = vld [vmem:[%s3 + $0x38] sm:$0xff]
  %v1394 = vld [vmem:[%s3 + $0x40] sm:$0xff]
  %v1395 = vld [vmem:[%s3 + $0x48] sm:$0xff]
  %v1396 = vld [vmem:[%s3 + $0x50] sm:$0xff]
  %v1397 = vld [vmem:[%s3 + $0x58] sm:$0xff]
  %v1398 = vld [vmem:[%s3 + $0x60] sm:$0xff]
  %v1399 = vld [vmem:[%s3 + $0x68] sm:$0xff]
  %v1400 = vld [vmem:[%s3 + $0x70] sm:$0xff]
  %v1401 = vld [vmem:[%s3 + $0x78] sm:$0xff]
  %v1418 = vunpack.c.l.b16 %v1386
  %v1419 = vunpack.c.h.b16 %v1386
  %v1420 = vunpack.c.l.b16 %v1387
  %v1421 = vunpack.c.h.b16 %v1387
  %v1422 = vunpack.c.l.b16 %v1388
  %v1423 = vunpack.c.h.b16 %v1388
  %v1424 = vunpack.c.l.b16 %v1389
  %v1425 = vunpack.c.h.b16 %v1389
  %v1426 = vunpack.c.l.b16 %v1390
  %v1427 = vunpack.c.h.b16 %v1390
  %v1428 = vunpack.c.l.b16 %v1391
  %v1429 = vunpack.c.h.b16 %v1391
  %v1430 = vunpack.c.l.b16 %v1392
  %v1431 = vunpack.c.h.b16 %v1392
  %v1432 = vunpack.c.l.b16 %v1393
  %v1433 = vunpack.c.h.b16 %v1393
  %v1434 = vunpack.c.l.b16 %v1394
  %v1435 = vunpack.c.h.b16 %v1394
  %v1436 = vunpack.c.l.b16 %v1395
  %v1437 = vunpack.c.h.b16 %v1395
  %v1438 = vunpack.c.l.b16 %v1396
  %v1439 = vunpack.c.h.b16 %v1396
  %v1440 = vunpack.c.l.b16 %v1397
  %v1441 = vunpack.c.h.b16 %v1397
  %v1442 = vunpack.c.l.b16 %v1398
  %v1443 = vunpack.c.h.b16 %v1398
  %v1444 = vunpack.c.l.b16 %v1399
  %v1445 = vunpack.c.h.b16 %v1399
  %v1446 = vunpack.c.l.b16 %v1400
  %v1447 = vunpack.c.h.b16 %v1400
  %v1448 = vunpack.c.l.b16 %v1401
  %v1449 = vunpack.c.h.b16 %v1401
  %v1450 = vpack.c.b16 %v1420, %v1418
  %v1451 = vpack.c.b16 %v1421, %v1419
  %v1452 = vpack.c.b16 %v1424, %v1422
  %v1453 = vpack.c.b16 %v1425, %v1423
  %v1454 = vpack.c.b16 %v1428, %v1426
  %v1455 = vpack.c.b16 %v1429, %v1427
  %v1456 = vpack.c.b16 %v1432, %v1430
  %v1457 = vpack.c.b16 %v1433, %v1431
  %v1458 = vpack.c.b16 %v1436, %v1434
  %v1459 = vpack.c.b16 %v1437, %v1435
  %v1460 = vpack.c.b16 %v1440, %v1438
  %v1461 = vpack.c.b16 %v1441, %v1439
  %v1462 = vpack.c.b16 %v1444, %v1442
  %v1463 = vpack.c.b16 %v1445, %v1443
  %v1464 = vpack.c.b16 %v1448, %v1446
  %v1465 = vpack.c.b16 %v1449, %v1447
  %1482 = vmatpush.bf16.msra.mxu0 %v1464
  %1483 = vmatpush.bf16.msra.mxu0 %v1462
  %1484 = vmatpush.bf16.msra.mxu0 %v1460
  %1485 = vmatpush.bf16.msra.mxu0 %v1458
  %1486 = vmatpush.bf16.msra.mxu0 %v1456
  %1487 = vmatpush.bf16.msra.mxu0 %v1454
  %1488 = vmatpush.bf16.msra.mxu0 %v1452
  %1489 = vmatpush.bf16.msra.mxu0 %v1450
  %1490 = vmatmul.bf16.gmra.mxu0 %v1376
  %v1491 = vpop.f32.mrf.mxu0
  %v1492 = vadd.f32 0.0, %v1491
  %v1493 = vpop.f32.mrf.mxu0
  %v1494 = vadd.f32 0.0, %v1493
  %1495 = vmatmul.bf16.gmra.mxu0 %v1377
  %v1496 = vpop.f32.mrf.mxu0
  %v1497 = vadd.f32 0.0, %v1496
  %v1498 = vpop.f32.mrf.mxu0
  %v1499 = vadd.f32 0.0, %v1498
  %1500 = vmatmul.bf16.gmra.mxu0 %v1378
  %v1501 = vpop.f32.mrf.mxu0
  %v1502 = vadd.f32 0.0, %v1501
  %v1503 = vpop.f32.mrf.mxu0
  %v1504 = vadd.f32 0.0, %v1503
  %1505 = vmatmul.bf16.gmra.mxu0 %v1379
  %v1506 = vpop.f32.mrf.mxu0
  %v1507 = vadd.f32 0.0, %v1506
  %v1508 = vpop.f32.mrf.mxu0
  %v1509 = vadd.f32 0.0, %v1508
  %1510 = vmatmul.bf16.gmra.mxu0 %v1380
  %v1511 = vpop.f32.mrf.mxu0
  %v1512 = vadd.f32 0.0, %v1511
  %v1513 = vpop.f32.mrf.mxu0
  %v1514 = vadd.f32 0.0, %v1513
  %1515 = vmatmul.bf16.gmra.mxu0 %v1381
  %v1516 = vpop.f32.mrf.mxu0
  %v1517 = vadd.f32 0.0, %v1516
  %v1518 = vpop.f32.mrf.mxu0
  %v1519 = vadd.f32 0.0, %v1518
  %1520 = vmatmul.bf16.gmra.mxu0 %v1382
  %v1521 = vpop.f32.mrf.mxu0
  %v1522 = vadd.f32 0.0, %v1521
  %v1523 = vpop.f32.mrf.mxu0
  %v1524 = vadd.f32 0.0, %v1523
  %1525 = vmatmul.bf16.gmra.mxu0 %v1383
  %v1526 = vpop.f32.mrf.mxu0
  %v1527 = vadd.f32 0.0, %v1526
  %v1528 = vpop.f32.mrf.mxu0
  %v1529 = vadd.f32 0.0, %v1528
  %1530 = vmatmul.bf16.gmra.mxu0 %v1384
  %v1531 = vpop.f32.mrf.mxu0
  %v1532 = vadd.f32 0.0, %v1531
  %v1533 = vpop.f32.mrf.mxu0
  %v1534 = vadd.f32 0.0, %v1533
  %1535 = vmatmul.bf16.gmra.mxu0 %v1385
  %v1536 = vpop.f32.mrf.mxu0
  %v1537 = vadd.f32 0.0, %v1536
  %v1538 = vpop.f32.mrf.mxu0
  %v1539 = vadd.f32 0.0, %v1538
  %1540 = vdwg.mxu0
  %1541 = vmatpush.bf16.msra.mxu0 %v1465
  %1542 = vmatpush.bf16.msra.mxu0 %v1463
  %1543 = vmatpush.bf16.msra.mxu0 %v1461
  %1544 = vmatpush.bf16.msra.mxu0 %v1459
  %1545 = vmatpush.bf16.msra.mxu0 %v1457
  %1546 = vmatpush.bf16.msra.mxu0 %v1455
  %1547 = vmatpush.bf16.msra.mxu0 %v1453
  %1548 = vmatpush.bf16.msra.mxu0 %v1451
  %1549 = vmatmul.bf16.gmra.mxu0 %v1376
  %v1550 = vpop.f32.mrf.mxu0
  %v1551 = vadd.f32 0.0, %v1550
  %v1552 = vpop.f32.mrf.mxu0
  %v1553 = vadd.f32 0.0, %v1552
  %1554 = vmatmul.bf16.gmra.mxu0 %v1377
  %v1555 = vpop.f32.mrf.mxu0
  %v1556 = vadd.f32 0.0, %v1555
  %v1557 = vpop.f32.mrf.mxu0
  %v1558 = vadd.f32 0.0, %v1557
  %1559 = vmatmul.bf16.gmra.mxu0 %v1378
  %v1560 = vpop.f32.mrf.mxu0
  %v1561 = vadd.f32 0.0, %v1560
  %v1562 = vpop.f32.mrf.mxu0
  %v1563 = vadd.f32 0.0, %v1562
  %1564 = vmatmul.bf16.gmra.mxu0 %v1379
  %v1565 = vpop.f32.mrf.mxu0
  %v1566 = vadd.f32 0.0, %v1565
  %v1567 = vpop.f32.mrf.mxu0
  %v1568 = vadd.f32 0.0, %v1567
  %1569 = vmatmul.bf16.gmra.mxu0 %v1380
  %v1570 = vpop.f32.mrf.mxu0
  %v1571 = vadd.f32 0.0, %v1570
  %v1572 = vpop.f32.mrf.mxu0
  %v1573 = vadd.f32 0.0, %v1572
  %1574 = vmatmul.bf16.gmra.mxu0 %v1381
  %v1575 = vpop.f32.mrf.mxu0
  %v1576 = vadd.f32 0.0, %v1575
  %v1577 = vpop.f32.mrf.mxu0
  %v1578 = vadd.f32 0.0, %v1577
  %1579 = vmatmul.bf16.gmra.mxu0 %v1382
  %v1580 = vpop.f32.mrf.mxu0
  %v1581 = vadd.f32 0.0, %v1580
  %v1582 = vpop.f32.mrf.mxu0
  %v1583 = vadd.f32 0.0, %v1582
  %1584 = vmatmul.bf16.gmra.mxu0 %v1383
  %v1585 = vpop.f32.mrf.mxu0
  %v1586 = vadd.f32 0.0, %v1585
  %v1587 = vpop.f32.mrf.mxu0
  %v1588 = vadd.f32 0.0, %v1587
  %1589 = vmatmul.bf16.gmra.mxu0 %v1384
  %v1590 = vpop.f32.mrf.mxu0
  %v1591 = vadd.f32 0.0, %v1590
  %v1592 = vpop.f32.mrf.mxu0
  %v1593 = vadd.f32 0.0, %v1592
  %1594 = vmatmul.bf16.gmra.mxu0 %v1385
  %v1595 = vpop.f32.mrf.mxu0
  %v1596 = vadd.f32 0.0, %v1595
  %v1597 = vpop.f32.mrf.mxu0
  %v1598 = vadd.f32 0.0, %v1597
  %1599 = vdwg.mxu0
  %1600 = vst [vmem:[#allocation3] sm:$0xff] %v1492
  %1601 = vst [vmem:[#allocation3 + $0x8] sm:$0xff] %v1551
  %1602 = vst [vmem:[#allocation3 + $0x10] sm:$0xff] %v1494
  %1603 = vst [vmem:[#allocation3 + $0x18] sm:$0xff] %v1553
  %1604 = vst [vmem:[#allocation3 + $0x20] sm:$0xff] %v1497
  %1605 = vst [vmem:[#allocation3 + $0x28] sm:$0xff] %v1556
  %1606 = vst [vmem:[#allocation3 + $0x30] sm:$0xff] %v1499
  %1607 = vst [vmem:[#allocation3 + $0x38] sm:$0xff] %v1558
  %1608 = vst [vmem:[#allocation3 + $0x40] sm:$0xff] %v1502
  %1609 = vst [vmem:[#allocation3 + $0x48] sm:$0xff] %v1561
  %1610 = vst [vmem:[#allocation3 + $0x50] sm:$0xff] %v1504
  %1611 = vst [vmem:[#allocation3 + $0x58] sm:$0xff] %v1563
  %1612 = vst [vmem:[#allocation3 + $0x60] sm:$0xff] %v1507
  %1613 = vst [vmem:[#allocation3 + $0x68] sm:$0xff] %v1566
  %1614 = vst [vmem:[#allocation3 + $0x70] sm:$0xff] %v1509
  %1615 = vst [vmem:[#allocation3 + $0x78] sm:$0xff] %v1568
  %1616 = vst [vmem:[#allocation3 + $0x80] sm:$0xff] %v1512
  %1617 = vst [vmem:[#allocation3 + $0x88] sm:$0xff] %v1571
  %1618 = vst [vmem:[#allocation3 + $0x90] sm:$0xff] %v1514
  %1619 = vst [vmem:[#allocation3 + $0x98] sm:$0xff] %v1573
  %1620 = vst [vmem:[#allocation3 + $0xa0] sm:$0xff] %v1517
  %1621 = vst [vmem:[#allocation3 + $0xa8] sm:$0xff] %v1576
  %1622 = vst [vmem:[#allocation3 + $0xb0] sm:$0xff] %v1519
  %1623 = vst [vmem:[#allocation3 + $0xb8] sm:$0xff] %v1578
  %1624 = vst [vmem:[#allocation3 + $0xc0] sm:$0xff] %v1522
  %1625 = vst [vmem:[#allocation3 + $0xc8] sm:$0xff] %v1581
  %1626 = vst [vmem:[#allocation3 + $0xd0] sm:$0xff] %v1524
  %1627 = vst [vmem:[#allocation3 + $0xd8] sm:$0xff] %v1583
  %1628 = vst [vmem:[#allocation3 + $0xe0] sm:$0xff] %v1527
  %1629 = vst [vmem:[#allocation3 + $0xe8] sm:$0xff] %v1586
  %1630 = vst [vmem:[#allocation3 + $0xf0] sm:$0xff] %v1529
  %1631 = vst [vmem:[#allocation3 + $0xf8] sm:$0xff] %v1588
  %1632 = vst [vmem:[#allocation3 + $0x100] sm:$0xff] %v1532
  %1633 = vst [vmem:[#allocation3 + $0x108] sm:$0xff] %v1591
  %1634 = vst [vmem:[#allocation3 + $0x110] sm:$0xff] %v1534
  %1635 = vst [vmem:[#allocation3 + $0x118] sm:$0xff] %v1593
  %1636 = vst [vmem:[#allocation3 + $0x120] sm:$0xff] %v1537
  %1637 = vst [vmem:[#allocation3 + $0x128] sm:$0xff] %v1596
  %1638 = vst [vmem:[#allocation3 + $0x130] sm:$0xff] %v1539
  %1639 = vst [vmem:[#allocation3 + $0x138] sm:$0xff] %v1598
  %v1640 = vld [vmem:[#allocation2 + $0x10] sm:$0xff]
  %v1641 = vld [vmem:[#allocation2 + $0x18] sm:$0xff]
  %v1642 = vld [vmem:[#allocation2 + $0x20] sm:$0xff]
  %v1643 = vld [vmem:[#allocation2 + $0x28] sm:$0xff]
  %v1644 = vld [vmem:[#allocation2 + $0x30] sm:$0xff]
  %v1645 = vld [vmem:[#allocation2 + $0x38] sm:$0xff]
  %v1646 = vld [vmem:[#allocation2 + $0x40] sm:$0xff]
  %v1647 = vld [vmem:[#allocation2 + $0x48] sm:$0xff]
  %v1648 = vld [vmem:[#allocation2 + $0x50] sm:$0xff]
  %v1649 = vld [vmem:[#allocation2 + $0x58] sm:$0xff]
  %v1650 = vld [vmem:[#allocation2 + $0x60] sm:$0xff]
  %v1651 = vld [vmem:[#allocation2 + $0x68] sm:$0xff]
  %v1652 = vld [vmem:[#allocation2 + $0x70] sm:$0xff]
  %v1653 = vld [vmem:[#allocation2 + $0x78] sm:$0xff]
  %v1654 = vld [vmem:[#allocation2 + $0x80] sm:$0xff]
  %v1655 = vld [vmem:[#allocation2 + $0x88] sm:$0xff]
  %v1656 = vld [vmem:[#allocation2 + $0x90] sm:$0xff]
  %v1657 = vld [vmem:[#allocation2 + $0x98] sm:$0xff]
  %v1658 = vld [vmem:[#allocation2 + $0xa0] sm:$0xff]
  %v1659 = vld [vmem:[#allocation2 + $0xa8] sm:$0xff]
  %v1660 = vpack.c.bf16 %v1641, %v1640
  %v1661 = vpack.c.bf16 %v1643, %v1642
  %v1662 = vpack.c.bf16 %v1645, %v1644
  %v1663 = vpack.c.bf16 %v1647, %v1646
  %v1664 = vpack.c.bf16 %v1649, %v1648
  %v1665 = vpack.c.bf16 %v1651, %v1650
  %v1666 = vpack.c.bf16 %v1653, %v1652
  %v1667 = vpack.c.bf16 %v1655, %v1654
  %v1668 = vpack.c.bf16 %v1657, %v1656
  %v1669 = vpack.c.bf16 %v1659, %v1658
  %s1670 = scalar_lea.vmem %s3, 128
  %v1671 = vld [vmem:[%s1670] sm:$0xff]
  %v1672 = vld [vmem:[%s1670 + $0x8] sm:$0xff]
  %v1673 = vld [vmem:[%s1670 + $0x10] sm:$0xff]
  %v1674 = vld [vmem:[%s1670 + $0x18] sm:$0xff]
  %v1675 = vld [vmem:[%s1670 + $0x20] sm:$0xff]
  %v1676 = vld [vmem:[%s1670 + $0x28] sm:$0xff]
  %v1677 = vld [vmem:[%s1670 + $0x30] sm:$0xff]
  %v1678 = vld [vmem:[%s1670 + $0x38] sm:$0xff]
  %v1679 = vld [vmem:[%s1670 + $0x40] sm:$0xff]
  %v1680 = vld [vmem:[%s1670 + $0x48] sm:$0xff]
  %v1681 = vld [vmem:[%s1670 + $0x50] sm:$0xff]
  %v1682 = vld [vmem:[%s1670 + $0x58] sm:$0xff]
  %v1683 = vld [vmem:[%s1670 + $0x60] sm:$0xff]
  %v1684 = vld [vmem:[%s1670 + $0x68] sm:$0xff]
  %v1685 = vld [vmem:[%s1670 + $0x70] sm:$0xff]
  %v1686 = vld [vmem:[%s1670 + $0x78] sm:$0xff]
  %v1703 = vunpack.c.l.b16 %v1671
  %v1704 = vunpack.c.h.b16 %v1671
  %v1705 = vunpack.c.l.b16 %v1672
  %v1706 = vunpack.c.h.b16 %v1672
  %v1707 = vunpack.c.l.b16 %v1673
  %v1708 = vunpack.c.h.b16 %v1673
  %v1709 = vunpack.c.l.b16 %v1674
  %v1710 = vunpack.c.h.b16 %v1674
  %v1711 = vunpack.c.l.b16 %v1675
  %v1712 = vunpack.c.h.b16 %v1675
  %v1713 = vunpack.c.l.b16 %v1676
  %v1714 = vunpack.c.h.b16 %v1676
  %v1715 = vunpack.c.l.b16 %v1677
  %v1716 = vunpack.c.h.b16 %v1677
  %v1717 = vunpack.c.l.b16 %v1678
  %v1718 = vunpack.c.h.b16 %v1678
  %v1719 = vunpack.c.l.b16 %v1679
  %v1720 = vunpack.c.h.b16 %v1679
  %v1721 = vunpack.c.l.b16 %v1680
  %v1722 = vunpack.c.h.b16 %v1680
  %v1723 = vunpack.c.l.b16 %v1681
  %v1724 = vunpack.c.h.b16 %v1681
  %v1725 = vunpack.c.l.b16 %v1682
  %v1726 = vunpack.c.h.b16 %v1682
  %v1727 = vunpack.c.l.b16 %v1683
  %v1728 = vunpack.c.h.b16 %v1683
  %v1729 = vunpack.c.l.b16 %v1684
  %v1730 = vunpack.c.h.b16 %v1684
  %v1731 = vunpack.c.l.b16 %v1685
  %v1732 = vunpack.c.h.b16 %v1685
  %v1733 = vunpack.c.l.b16 %v1686
  %v1734 = vunpack.c.h.b16 %v1686
  %v1735 = vpack.c.b16 %v1705, %v1703
  %v1736 = vpack.c.b16 %v1706, %v1704
  %v1737 = vpack.c.b16 %v1709, %v1707
  %v1738 = vpack.c.b16 %v1710, %v1708
  %v1739 = vpack.c.b16 %v1713, %v1711
  %v1740 = vpack.c.b16 %v1714, %v1712
  %v1741 = vpack.c.b16 %v1717, %v1715
  %v1742 = vpack.c.b16 %v1718, %v1716
  %v1743 = vpack.c.b16 %v1721, %v1719
  %v1744 = vpack.c.b16 %v1722, %v1720
  %v1745 = vpack.c.b16 %v1725, %v1723
  %v1746 = vpack.c.b16 %v1726, %v1724
  %v1747 = vpack.c.b16 %v1729, %v1727
  %v1748 = vpack.c.b16 %v1730, %v1728
  %v1749 = vpack.c.b16 %v1733, %v1731
  %v1750 = vpack.c.b16 %v1734, %v1732
  %1767 = vmatpush.bf16.msra.mxu0 %v1749
  %1768 = vmatpush.bf16.msra.mxu0 %v1747
  %1769 = vmatpush.bf16.msra.mxu0 %v1745
  %1770 = vmatpush.bf16.msra.mxu0 %v1743
  %1771 = vmatpush.bf16.msra.mxu0 %v1741
  %1772 = vmatpush.bf16.msra.mxu0 %v1739
  %1773 = vmatpush.bf16.msra.mxu0 %v1737
  %1774 = vmatpush.bf16.msra.mxu0 %v1735
  %1775 = vmatmul.bf16.gmra.mxu0 %v1660
  %v1776 = vpop.f32.mrf.mxu0
  %v1777 = vadd.f32 0.0, %v1776
  %v1778 = vpop.f32.mrf.mxu0
  %v1779 = vadd.f32 0.0, %v1778
  %1780 = vmatmul.bf16.gmra.mxu0 %v1661
  %v1781 = vpop.f32.mrf.mxu0
  %v1782 = vadd.f32 0.0, %v1781
  %v1783 = vpop.f32.mrf.mxu0
  %v1784 = vadd.f32 0.0, %v1783
  %1785 = vmatmul.bf16.gmra.mxu0 %v1662
  %v1786 = vpop.f32.mrf.mxu0
  %v1787 = vadd.f32 0.0, %v1786
  %v1788 = vpop.f32.mrf.mxu0
  %v1789 = vadd.f32 0.0, %v1788
  %1790 = vmatmul.bf16.gmra.mxu0 %v1663
  %v1791 = vpop.f32.mrf.mxu0
  %v1792 = vadd.f32 0.0, %v1791
  %v1793 = vpop.f32.mrf.mxu0
  %v1794 = vadd.f32 0.0, %v1793
  %1795 = vmatmul.bf16.gmra.mxu0 %v1664
  %v1796 = vpop.f32.mrf.mxu0
  %v1797 = vadd.f32 0.0, %v1796
  %v1798 = vpop.f32.mrf.mxu0
  %v1799 = vadd.f32 0.0, %v1798
  %1800 = vmatmul.bf16.gmra.mxu0 %v1665
  %v1801 = vpop.f32.mrf.mxu0
  %v1802 = vadd.f32 0.0, %v1801
  %v1803 = vpop.f32.mrf.mxu0
  %v1804 = vadd.f32 0.0, %v1803
  %1805 = vmatmul.bf16.gmra.mxu0 %v1666
  %v1806 = vpop.f32.mrf.mxu0
  %v1807 = vadd.f32 0.0, %v1806
  %v1808 = vpop.f32.mrf.mxu0
  %v1809 = vadd.f32 0.0, %v1808
  %1810 = vmatmul.bf16.gmra.mxu0 %v1667
  %v1811 = vpop.f32.mrf.mxu0
  %v1812 = vadd.f32 0.0, %v1811
  %v1813 = vpop.f32.mrf.mxu0
  %v1814 = vadd.f32 0.0, %v1813
  %1815 = vmatmul.bf16.gmra.mxu0 %v1668
  %v1816 = vpop.f32.mrf.mxu0
  %v1817 = vadd.f32 0.0, %v1816
  %v1818 = vpop.f32.mrf.mxu0
  %v1819 = vadd.f32 0.0, %v1818
  %1820 = vmatmul.bf16.gmra.mxu0 %v1669
  %v1821 = vpop.f32.mrf.mxu0
  %v1822 = vadd.f32 0.0, %v1821
  %v1823 = vpop.f32.mrf.mxu0
  %v1824 = vadd.f32 0.0, %v1823
  %1825 = vdwg.mxu0
  %1826 = vmatpush.bf16.msra.mxu0 %v1750
  %1827 = vmatpush.bf16.msra.mxu0 %v1748
  %1828 = vmatpush.bf16.msra.mxu0 %v1746
  %1829 = vmatpush.bf16.msra.mxu0 %v1744
  %1830 = vmatpush.bf16.msra.mxu0 %v1742
  %1831 = vmatpush.bf16.msra.mxu0 %v1740
  %1832 = vmatpush.bf16.msra.mxu0 %v1738
  %1833 = vmatpush.bf16.msra.mxu0 %v1736
  %1834 = vmatmul.bf16.gmra.mxu0 %v1660
  %v1835 = vpop.f32.mrf.mxu0
  %v1836 = vadd.f32 0.0, %v1835
  %v1837 = vpop.f32.mrf.mxu0
  %v1838 = vadd.f32 0.0, %v1837
  %1839 = vmatmul.bf16.gmra.mxu0 %v1661
  %v1840 = vpop.f32.mrf.mxu0
  %v1841 = vadd.f32 0.0, %v1840
  %v1842 = vpop.f32.mrf.mxu0
  %v1843 = vadd.f32 0.0, %v1842
  %1844 = vmatmul.bf16.gmra.mxu0 %v1662
  %v1845 = vpop.f32.mrf.mxu0
  %v1846 = vadd.f32 0.0, %v1845
  %v1847 = vpop.f32.mrf.mxu0
  %v1848 = vadd.f32 0.0, %v1847
  %1849 = vmatmul.bf16.gmra.mxu0 %v1663
  %v1850 = vpop.f32.mrf.mxu0
  %v1851 = vadd.f32 0.0, %v1850
  %v1852 = vpop.f32.mrf.mxu0
  %v1853 = vadd.f32 0.0, %v1852
  %1854 = vmatmul.bf16.gmra.mxu0 %v1664
  %v1855 = vpop.f32.mrf.mxu0
  %v1856 = vadd.f32 0.0, %v1855
  %v1857 = vpop.f32.mrf.mxu0
  %v1858 = vadd.f32 0.0, %v1857
  %1859 = vmatmul.bf16.gmra.mxu0 %v1665
  %v1860 = vpop.f32.mrf.mxu0
  %v1861 = vadd.f32 0.0, %v1860
  %v1862 = vpop.f32.mrf.mxu0
  %v1863 = vadd.f32 0.0, %v1862
  %1864 = vmatmul.bf16.gmra.mxu0 %v1666
  %v1865 = vpop.f32.mrf.mxu0
  %v1866 = vadd.f32 0.0, %v1865
  %v1867 = vpop.f32.mrf.mxu0
  %v1868 = vadd.f32 0.0, %v1867
  %1869 = vmatmul.bf16.gmra.mxu0 %v1667
  %v1870 = vpop.f32.mrf.mxu0
  %v1871 = vadd.f32 0.0, %v1870
  %v1872 = vpop.f32.mrf.mxu0
  %v1873 = vadd.f32 0.0, %v1872
  %1874 = vmatmul.bf16.gmra.mxu0 %v1668
  %v1875 = vpop.f32.mrf.mxu0
  %v1876 = vadd.f32 0.0, %v1875
  %v1877 = vpop.f32.mrf.mxu0
  %v1878 = vadd.f32 0.0, %v1877
  %1879 = vmatmul.bf16.gmra.mxu0 %v1669
  %v1880 = vpop.f32.mrf.mxu0
  %v1881 = vadd.f32 0.0, %v1880
  %v1882 = vpop.f32.mrf.mxu0
  %v1883 = vadd.f32 0.0, %v1882
  %1884 = vdwg.mxu0
  %v1885 = vld [vmem:[#allocation3] sm:$0xff]
  %v1886 = vld [vmem:[#allocation3 + $0x8] sm:$0xff]
  %v1887 = vld [vmem:[#allocation3 + $0x10] sm:$0xff]
  %v1888 = vld [vmem:[#allocation3 + $0x18] sm:$0xff]
  %v1889 = vld [vmem:[#allocation3 + $0x20] sm:$0xff]
  %v1890 = vld [vmem:[#allocation3 + $0x28] sm:$0xff]
  %v1891 = vld [vmem:[#allocation3 + $0x30] sm:$0xff]
  %v1892 = vld [vmem:[#allocation3 + $0x38] sm:$0xff]
  %v1893 = vld [vmem:[#allocation3 + $0x40] sm:$0xff]
  %v1894 = vld [vmem:[#allocation3 + $0x48] sm:$0xff]
  %v1895 = vld [vmem:[#allocation3 + $0x50] sm:$0xff]
  %v1896 = vld [vmem:[#allocation3 + $0x58] sm:$0xff]
  %v1897 = vld [vmem:[#allocation3 + $0x60] sm:$0xff]
  %v1898 = vld [vmem:[#allocation3 + $0x68] sm:$0xff]
  %v1899 = vld [vmem:[#allocation3 + $0x70] sm:$0xff]
  %v1900 = vld [vmem:[#allocation3 + $0x78] sm:$0xff]
  %v1901 = vld [vmem:[#allocation3 + $0x80] sm:$0xff]
  %v1902 = vld [vmem:[#allocation3 + $0x88] sm:$0xff]
  %v1903 = vld [vmem:[#allocation3 + $0x90] sm:$0xff]
  %v1904 = vld [vmem:[#allocation3 + $0x98] sm:$0xff]
  %v1905 = vld [vmem:[#allocation3 + $0xa0] sm:$0xff]
  %v1906 = vld [vmem:[#allocation3 + $0xa8] sm:$0xff]
  %v1907 = vld [vmem:[#allocation3 + $0xb0] sm:$0xff]
  %v1908 = vld [vmem:[#allocation3 + $0xb8] sm:$0xff]
  %v1909 = vld [vmem:[#allocation3 + $0xc0] sm:$0xff]
  %v1910 = vld [vmem:[#allocation3 + $0xc8] sm:$0xff]
  %v1911 = vld [vmem:[#allocation3 + $0xd0] sm:$0xff]
  %v1912 = vld [vmem:[#allocation3 + $0xd8] sm:$0xff]
  %v1913 = vld [vmem:[#allocation3 + $0xe0] sm:$0xff]
  %v1914 = vld [vmem:[#allocation3 + $0xe8] sm:$0xff]
  %v1915 = vld [vmem:[#allocation3 + $0xf0] sm:$0xff]
  %v1916 = vld [vmem:[#allocation3 + $0xf8] sm:$0xff]
  %v1917 = vld [vmem:[#allocation3 + $0x100] sm:$0xff]
  %v1918 = vld [vmem:[#allocation3 + $0x108] sm:$0xff]
  %v1919 = vld [vmem:[#allocation3 + $0x110] sm:$0xff]
  %v1920 = vld [vmem:[#allocation3 + $0x118] sm:$0xff]
  %v1921 = vld [vmem:[#allocation3 + $0x120] sm:$0xff]
  %v1922 = vld [vmem:[#allocation3 + $0x128] sm:$0xff]
  %v1923 = vld [vmem:[#allocation3 + $0x130] sm:$0xff]
  %v1924 = vld [vmem:[#allocation3 + $0x138] sm:$0xff]
  %v1925 = vadd.f32 %v1885, %v1777
  %v1926 = vadd.f32 %v1886, %v1836
  %v1927 = vadd.f32 %v1887, %v1779
  %v1928 = vadd.f32 %v1888, %v1838
  %v1929 = vadd.f32 %v1889, %v1782
  %v1930 = vadd.f32 %v1890, %v1841
  %v1931 = vadd.f32 %v1891, %v1784
  %v1932 = vadd.f32 %v1892, %v1843
  %v1933 = vadd.f32 %v1893, %v1787
  %v1934 = vadd.f32 %v1894, %v1846
  %v1935 = vadd.f32 %v1895, %v1789
  %v1936 = vadd.f32 %v1896, %v1848
  %v1937 = vadd.f32 %v1897, %v1792
  %v1938 = vadd.f32 %v1898, %v1851
  %v1939 = vadd.f32 %v1899, %v1794
  %v1940 = vadd.f32 %v1900, %v1853
  %v1941 = vadd.f32 %v1901, %v1797
  %v1942 = vadd.f32 %v1902, %v1856
  %v1943 = vadd.f32 %v1903, %v1799
  %v1944 = vadd.f32 %v1904, %v1858
  %v1945 = vadd.f32 %v1905, %v1802
  %v1946 = vadd.f32 %v1906, %v1861
  %v1947 = vadd.f32 %v1907, %v1804
  %v1948 = vadd.f32 %v1908, %v1863
  %v1949 = vadd.f32 %v1909, %v1807
  %v1950 = vadd.f32 %v1910, %v1866
  %v1951 = vadd.f32 %v1911, %v1809
  %v1952 = vadd.f32 %v1912, %v1868
  %v1953 = vadd.f32 %v1913, %v1812
  %v1954 = vadd.f32 %v1914, %v1871
  %v1955 = vadd.f32 %v1915, %v1814
  %v1956 = vadd.f32 %v1916, %v1873
  %v1957 = vadd.f32 %v1917, %v1817
  %v1958 = vadd.f32 %v1918, %v1876
  %v1959 = vadd.f32 %v1919, %v1819
  %v1960 = vadd.f32 %v1920, %v1878
  %v1961 = vadd.f32 %v1921, %v1822
  %v1962 = vadd.f32 %v1922, %v1881
  %v1963 = vadd.f32 %v1923, %v1824
  %v1964 = vadd.f32 %v1924, %v1883
  %1965 = vst [vmem:[#allocation3] sm:$0xff] %v1925
  %1966 = vst [vmem:[#allocation3 + $0x8] sm:$0xff] %v1926
  %1967 = vst [vmem:[#allocation3 + $0x10] sm:$0xff] %v1927
  %1968 = vst [vmem:[#allocation3 + $0x18] sm:$0xff] %v1928
  %1969 = vst [vmem:[#allocation3 + $0x20] sm:$0xff] %v1929
  %1970 = vst [vmem:[#allocation3 + $0x28] sm:$0xff] %v1930
  %1971 = vst [vmem:[#allocation3 + $0x30] sm:$0xff] %v1931
  %1972 = vst [vmem:[#allocation3 + $0x38] sm:$0xff] %v1932
  %1973 = vst [vmem:[#allocation3 + $0x40] sm:$0xff] %v1933
  %1974 = vst [vmem:[#allocation3 + $0x48] sm:$0xff] %v1934
  %1975 = vst [vmem:[#allocation3 + $0x50] sm:$0xff] %v1935
  %1976 = vst [vmem:[#allocation3 + $0x58] sm:$0xff] %v1936
  %1977 = vst [vmem:[#allocation3 + $0x60] sm:$0xff] %v1937
  %1978 = vst [vmem:[#allocation3 + $0x68] sm:$0xff] %v1938
  %1979 = vst [vmem:[#allocation3 + $0x70] sm:$0xff] %v1939
  %1980 = vst [vmem:[#allocation3 + $0x78] sm:$0xff] %v1940
  %1981 = vst [vmem:[#allocation3 + $0x80] sm:$0xff] %v1941
  %1982 = vst [vmem:[#allocation3 + $0x88] sm:$0xff] %v1942
  %1983 = vst [vmem:[#allocation3 + $0x90] sm:$0xff] %v1943
  %1984 = vst [vmem:[#allocation3 + $0x98] sm:$0xff] %v1944
  %1985 = vst [vmem:[#allocation3 + $0xa0] sm:$0xff] %v1945
  %1986 = vst [vmem:[#allocation3 + $0xa8] sm:$0xff] %v1946
  %1987 = vst [vmem:[#allocation3 + $0xb0] sm:$0xff] %v1947
  %1988 = vst [vmem:[#allocation3 + $0xb8] sm:$0xff] %v1948
  %1989 = vst [vmem:[#allocation3 + $0xc0] sm:$0xff] %v1949
  %1990 = vst [vmem:[#allocation3 + $0xc8] sm:$0xff] %v1950
  %1991 = vst [vmem:[#allocation3 + $0xd0] sm:$0xff] %v1951
  %1992 = vst [vmem:[#allocation3 + $0xd8] sm:$0xff] %v1952
  %1993 = vst [vmem:[#allocation3 + $0xe0] sm:$0xff] %v1953
  %1994 = vst [vmem:[#allocation3 + $0xe8] sm:$0xff] %v1954
  %1995 = vst [vmem:[#allocation3 + $0xf0] sm:$0xff] %v1955
  %1996 = vst [vmem:[#allocation3 + $0xf8] sm:$0xff] %v1956
  %1997 = vst [vmem:[#allocation3 + $0x100] sm:$0xff] %v1957
  %1998 = vst [vmem:[#allocation3 + $0x108] sm:$0xff] %v1958
  %1999 = vst [vmem:[#allocation3 + $0x110] sm:$0xff] %v1959
  %2000 = vst [vmem:[#allocation3 + $0x118] sm:$0xff] %v1960
  %2001 = vst [vmem:[#allocation3 + $0x120] sm:$0xff] %v1961
  %2002 = vst [vmem:[#allocation3 + $0x128] sm:$0xff] %v1962
  %2003 = vst [vmem:[#allocation3 + $0x130] sm:$0xff] %v1963
  %2004 = vst [vmem:[#allocation3 + $0x138] sm:$0xff] %v1964
  %v2005 = vld [vmem:[#allocation2 + $0x20] sm:$0xff]
  %v2006 = vld [vmem:[#allocation2 + $0x28] sm:$0xff]
  %v2007 = vld [vmem:[#allocation2 + $0x30] sm:$0xff]
  %v2008 = vld [vmem:[#allocation2 + $0x38] sm:$0xff]
  %v2009 = vld [vmem:[#allocation2 + $0x40] sm:$0xff]
  %v2010 = vld [vmem:[#allocation2 + $0x48] sm:$0xff]
  %v2011 = vld [vmem:[#allocation2 + $0x50] sm:$0xff]
  %v2012 = vld [vmem:[#allocation2 + $0x58] sm:$0xff]
  %v2013 = vld [vmem:[#allocation2 + $0x60] sm:$0xff]
  %v2014 = vld [vmem:[#allocation2 + $0x68] sm:$0xff]
  %v2015 = vld [vmem:[#allocation2 + $0x70] sm:$0xff]
  %v2016 = vld [vmem:[#allocation2 + $0x78] sm:$0xff]
  %v2017 = vld [vmem:[#allocation2 + $0x80] sm:$0xff]
  %v2018 = vld [vmem:[#allocation2 + $0x88] sm:$0xff]
  %v2019 = vld [vmem:[#allocation2 + $0x90] sm:$0xff]
  %v2020 = vld [vmem:[#allocation2 + $0x98] sm:$0xff]
  %v2021 = vld [vmem:[#allocation2 + $0xa0] sm:$0xff]
  %v2022 = vld [vmem:[#allocation2 + $0xa8] sm:$0xff]
  %v2023 = vld [vmem:[#allocation2 + $0xb0] sm:$0xff]
  %v2024 = vld [vmem:[#allocation2 + $0xb8] sm:$0xff]
  %v2025 = vpack.c.bf16 %v2006, %v2005
  %v2026 = vpack.c.bf16 %v2008, %v2007
  %v2027 = vpack.c.bf16 %v2010, %v2009
  %v2028 = vpack.c.bf16 %v2012, %v2011
  %v2029 = vpack.c.bf16 %v2014, %v2013
  %v2030 = vpack.c.bf16 %v2016, %v2015
  %v2031 = vpack.c.bf16 %v2018, %v2017
  %v2032 = vpack.c.bf16 %v2020, %v2019
  %v2033 = vpack.c.bf16 %v2022, %v2021
  %v2034 = vpack.c.bf16 %v2024, %v2023
  %s2035 = scalar_lea.vmem %s3, 256
  %v2036 = vld [vmem:[%s2035] sm:$0xff]
  %v2037 = vld [vmem:[%s2035 + $0x8] sm:$0xff]
  %v2038 = vld [vmem:[%s2035 + $0x10] sm:$0xff]
  %v2039 = vld [vmem:[%s2035 + $0x18] sm:$0xff]
  %v2040 = vld [vmem:[%s2035 + $0x20] sm:$0xff]
  %v2041 = vld [vmem:[%s2035 + $0x28] sm:$0xff]
  %v2042 = vld [vmem:[%s2035 + $0x30] sm:$0xff]
  %v2043 = vld [vmem:[%s2035 + $0x38] sm:$0xff]
  %v2044 = vld [vmem:[%s2035 + $0x40] sm:$0xff]
  %v2045 = vld [vmem:[%s2035 + $0x48] sm:$0xff]
  %v2046 = vld [vmem:[%s2035 + $0x50] sm:$0xff]
  %v2047 = vld [vmem:[%s2035 + $0x58] sm:$0xff]
  %v2048 = vld [vmem:[%s2035 + $0x60] sm:$0xff]
  %v2049 = vld [vmem:[%s2035 + $0x68] sm:$0xff]
  %v2050 = vld [vmem:[%s2035 + $0x70] sm:$0xff]
  %v2051 = vld [vmem:[%s2035 + $0x78] sm:$0xff]
  %v2068 = vunpack.c.l.b16 %v2036
  %v2069 = vunpack.c.h.b16 %v2036
  %v2070 = vunpack.c.l.b16 %v2037
  %v2071 = vunpack.c.h.b16 %v2037
  %v2072 = vunpack.c.l.b16 %v2038
  %v2073 = vunpack.c.h.b16 %v2038
  %v2074 = vunpack.c.l.b16 %v2039
  %v2075 = vunpack.c.h.b16 %v2039
  %v2076 = vunpack.c.l.b16 %v2040
  %v2077 = vunpack.c.h.b16 %v2040
  %v2078 = vunpack.c.l.b16 %v2041
  %v2079 = vunpack.c.h.b16 %v2041
  %v2080 = vunpack.c.l.b16 %v2042
  %v2081 = vunpack.c.h.b16 %v2042
  %v2082 = vunpack.c.l.b16 %v2043
  %v2083 = vunpack.c.h.b16 %v2043
  %v2084 = vunpack.c.l.b16 %v2044
  %v2085 = vunpack.c.h.b16 %v2044
  %v2086 = vunpack.c.l.b16 %v2045
  %v2087 = vunpack.c.h.b16 %v2045
  %v2088 = vunpack.c.l.b16 %v2046
  %v2089 = vunpack.c.h.b16 %v2046
  %v2090 = vunpack.c.l.b16 %v2047
  %v2091 = vunpack.c.h.b16 %v2047
  %v2092 = vunpack.c.l.b16 %v2048
  %v2093 = vunpack.c.h.b16 %v2048
  %v2094 = vunpack.c.l.b16 %v2049
  %v2095 = vunpack.c.h.b16 %v2049
  %v2096 = vunpack.c.l.b16 %v2050
  %v2097 = vunpack.c.h.b16 %v2050
  %v2098 = vunpack.c.l.b16 %v2051
  %v2099 = vunpack.c.h.b16 %v2051
  %v2100 = vpack.c.b16 %v2070, %v2068
  %v2101 = vpack.c.b16 %v2071, %v2069
  %v2102 = vpack.c.b16 %v2074, %v2072
  %v2103 = vpack.c.b16 %v2075, %v2073
  %v2104 = vpack.c.b16 %v2078, %v2076
  %v2105 = vpack.c.b16 %v2079, %v2077
  %v2106 = vpack.c.b16 %v2082, %v2080
  %v2107 = vpack.c.b16 %v2083, %v2081
  %v2108 = vpack.c.b16 %v2086, %v2084
  %v2109 = vpack.c.b16 %v2087, %v2085
  %v2110 = vpack.c.b16 %v2090, %v2088
  %v2111 = vpack.c.b16 %v2091, %v2089
  %v2112 = vpack.c.b16 %v2094, %v2092
  %v2113 = vpack.c.b16 %v2095, %v2093
  %v2114 = vpack.c.b16 %v2098, %v2096
  %v2115 = vpack.c.b16 %v2099, %v2097
  %2132 = vmatpush.bf16.msra.mxu0 %v2114
  %2133 = vmatpush.bf16.msra.mxu0 %v2112
  %2134 = vmatpush.bf16.msra.mxu0 %v2110
  %2135 = vmatpush.bf16.msra.mxu0 %v2108
  %2136 = vmatpush.bf16.msra.mxu0 %v2106
  %2137 = vmatpush.bf16.msra.mxu0 %v2104
  %2138 = vmatpush.bf16.msra.mxu0 %v2102
  %2139 = vmatpush.bf16.msra.mxu0 %v2100
  %2140 = vmatmul.bf16.gmra.mxu0 %v2025
  %v2141 = vpop.f32.mrf.mxu0
  %v2142 = vadd.f32 0.0, %v2141
  %v2143 = vpop.f32.mrf.mxu0
  %v2144 = vadd.f32 0.0, %v2143
  %2145 = vmatmul.bf16.gmra.mxu0 %v2026
  %v2146 = vpop.f32.mrf.mxu0
  %v2147 = vadd.f32 0.0, %v2146
  %v2148 = vpop.f32.mrf.mxu0
  %v2149 = vadd.f32 0.0, %v2148
  %2150 = vmatmul.bf16.gmra.mxu0 %v2027
  %v2151 = vpop.f32.mrf.mxu0
  %v2152 = vadd.f32 0.0, %v2151
  %v2153 = vpop.f32.mrf.mxu0
  %v2154 = vadd.f32 0.0, %v2153
  %2155 = vmatmul.bf16.gmra.mxu0 %v2028
  %v2156 = vpop.f32.mrf.mxu0
  %v2157 = vadd.f32 0.0, %v2156
  %v2158 = vpop.f32.mrf.mxu0
  %v2159 = vadd.f32 0.0, %v2158
  %2160 = vmatmul.bf16.gmra.mxu0 %v2029
  %v2161 = vpop.f32.mrf.mxu0
  %v2162 = vadd.f32 0.0, %v2161
  %v2163 = vpop.f32.mrf.mxu0
  %v2164 = vadd.f32 0.0, %v2163
  %2165 = vmatmul.bf16.gmra.mxu0 %v2030
  %v2166 = vpop.f32.mrf.mxu0
  %v2167 = vadd.f32 0.0, %v2166
  %v2168 = vpop.f32.mrf.mxu0
  %v2169 = vadd.f32 0.0, %v2168
  %2170 = vmatmul.bf16.gmra.mxu0 %v2031
  %v2171 = vpop.f32.mrf.mxu0
  %v2172 = vadd.f32 0.0, %v2171
  %v2173 = vpop.f32.mrf.mxu0
  %v2174 = vadd.f32 0.0, %v2173
  %2175 = vmatmul.bf16.gmra.mxu0 %v2032
  %v2176 = vpop.f32.mrf.mxu0
  %v2177 = vadd.f32 0.0, %v2176
  %v2178 = vpop.f32.mrf.mxu0
  %v2179 = vadd.f32 0.0, %v2178
  %2180 = vmatmul.bf16.gmra.mxu0 %v2033
  %v2181 = vpop.f32.mrf.mxu0
  %v2182 = vadd.f32 0.0, %v2181
  %v2183 = vpop.f32.mrf.mxu0
  %v2184 = vadd.f32 0.0, %v2183
  %2185 = vmatmul.bf16.gmra.mxu0 %v2034
  %v2186 = vpop.f32.mrf.mxu0
  %v2187 = vadd.f32 0.0, %v2186
  %v2188 = vpop.f32.mrf.mxu0
  %v2189 = vadd.f32 0.0, %v2188
  %2190 = vdwg.mxu0
  %2191 = vmatpush.bf16.msra.mxu0 %v2115
  %2192 = vmatpush.bf16.msra.mxu0 %v2113
  %2193 = vmatpush.bf16.msra.mxu0 %v2111
  %2194 = vmatpush.bf16.msra.mxu0 %v2109
  %2195 = vmatpush.bf16.msra.mxu0 %v2107
  %2196 = vmatpush.bf16.msra.mxu0 %v2105
  %2197 = vmatpush.bf16.msra.mxu0 %v2103
  %2198 = vmatpush.bf16.msra.mxu0 %v2101
  %2199 = vmatmul.bf16.gmra.mxu0 %v2025
  %v2200 = vpop.f32.mrf.mxu0
  %v2201 = vadd.f32 0.0, %v2200
  %v2202 = vpop.f32.mrf.mxu0
  %v2203 = vadd.f32 0.0, %v2202
  %2204 = vmatmul.bf16.gmra.mxu0 %v2026
  %v2205 = vpop.f32.mrf.mxu0
  %v2206 = vadd.f32 0.0, %v2205
  %v2207 = vpop.f32.mrf.mxu0
  %v2208 = vadd.f32 0.0, %v2207
  %2209 = vmatmul.bf16.gmra.mxu0 %v2027
  %v2210 = vpop.f32.mrf.mxu0
  %v2211 = vadd.f32 0.0, %v2210
  %v2212 = vpop.f32.mrf.mxu0
  %v2213 = vadd.f32 0.0, %v2212
  %2214 = vmatmul.bf16.gmra.mxu0 %v2028
  %v2215 = vpop.f32.mrf.mxu0
  %v2216 = vadd.f32 0.0, %v2215
  %v2217 = vpop.f32.mrf.mxu0
  %v2218 = vadd.f32 0.0, %v2217
  %2219 = vmatmul.bf16.gmra.mxu0 %v2029
  %v2220 = vpop.f32.mrf.mxu0
  %v2221 = vadd.f32 0.0, %v2220
  %v2222 = vpop.f32.mrf.mxu0
  %v2223 = vadd.f32 0.0, %v2222
  %2224 = vmatmul.bf16.gmra.mxu0 %v2030
  %v2225 = vpop.f32.mrf.mxu0
  %v2226 = vadd.f32 0.0, %v2225
  %v2227 = vpop.f32.mrf.mxu0
  %v2228 = vadd.f32 0.0, %v2227
  %2229 = vmatmul.bf16.gmra.mxu0 %v2031
  %v2230 = vpop.f32.mrf.mxu0
  %v2231 = vadd.f32 0.0, %v2230
  %v2232 = vpop.f32.mrf.mxu0
  %v2233 = vadd.f32 0.0, %v2232
  %2234 = vmatmul.bf16.gmra.mxu0 %v2032
  %v2235 = vpop.f32.mrf.mxu0
  %v2236 = vadd.f32 0.0, %v2235
  %v2237 = vpop.f32.mrf.mxu0
  %v2238 = vadd.f32 0.0, %v2237
  %2239 = vmatmul.bf16.gmra.mxu0 %v2033
  %v2240 = vpop.f32.mrf.mxu0
  %v2241 = vadd.f32 0.0, %v2240
  %v2242 = vpop.f32.mrf.mxu0
  %v2243 = vadd.f32 0.0, %v2242
  %2244 = vmatmul.bf16.gmra.mxu0 %v2034
  %v2245 = vpop.f32.mrf.mxu0
  %v2246 = vadd.f32 0.0, %v2245
  %v2247 = vpop.f32.mrf.mxu0
  %v2248 = vadd.f32 0.0, %v2247
  %2249 = vdwg.mxu0
  %v2250 = vld [vmem:[#allocation3] sm:$0xff]
  %v2251 = vld [vmem:[#allocation3 + $0x8] sm:$0xff]
  %v2252 = vld [vmem:[#allocation3 + $0x10] sm:$0xff]
  %v2253 = vld [vmem:[#allocation3 + $0x18] sm:$0xff]
  %v2254 = vld [vmem:[#allocation3 + $0x20] sm:$0xff]
  %v2255 = vld [vmem:[#allocation3 + $0x28] sm:$0xff]
  %v2256 = vld [vmem:[#allocation3 + $0x30] sm:$0xff]
  %v2257 = vld [vmem:[#allocation3 + $0x38] sm:$0xff]
  %v2258 = vld [vmem:[#allocation3 + $0x40] sm:$0xff]
  %v2259 = vld [vmem:[#allocation3 + $0x48] sm:$0xff]
  %v2260 = vld [vmem:[#allocation3 + $0x50] sm:$0xff]
  %v2261 = vld [vmem:[#allocation3 + $0x58] sm:$0xff]
  %v2262 = vld [vmem:[#allocation3 + $0x60] sm:$0xff]
  %v2263 = vld [vmem:[#allocation3 + $0x68] sm:$0xff]
  %v2264 = vld [vmem:[#allocation3 + $0x70] sm:$0xff]
  %v2265 = vld [vmem:[#allocation3 + $0x78] sm:$0xff]
  %v2266 = vld [vmem:[#allocation3 + $0x80] sm:$0xff]
  %v2267 = vld [vmem:[#allocation3 + $0x88] sm:$0xff]
  %v2268 = vld [vmem:[#allocation3 + $0x90] sm:$0xff]
  %v2269 = vld [vmem:[#allocation3 + $0x98] sm:$0xff]
  %v2270 = vld [vmem:[#allocation3 + $0xa0] sm:$0xff]
  %v2271 = vld [vmem:[#allocation3 + $0xa8] sm:$0xff]
  %v2272 = vld [vmem:[#allocation3 + $0xb0] sm:$0xff]
  %v2273 = vld [vmem:[#allocation3 + $0xb8] sm:$0xff]
  %v2274 = vld [vmem:[#allocation3 + $0xc0] sm:$0xff]
  %v2275 = vld [vmem:[#allocation3 + $0xc8] sm:$0xff]
  %v2276 = vld [vmem:[#allocation3 + $0xd0] sm:$0xff]
  %v2277 = vld [vmem:[#allocation3 + $0xd8] sm:$0xff]
  %v2278 = vld [vmem:[#allocation3 + $0xe0] sm:$0xff]
  %v2279 = vld [vmem:[#allocation3 + $0xe8] sm:$0xff]
  %v2280 = vld [vmem:[#allocation3 + $0xf0] sm:$0xff]
  %v2281 = vld [vmem:[#allocation3 + $0xf8] sm:$0xff]
  %v2282 = vld [vmem:[#allocation3 + $0x100] sm:$0xff]
  %v2283 = vld [vmem:[#allocation3 + $0x108] sm:$0xff]
  %v2284 = vld [vmem:[#allocation3 + $0x110] sm:$0xff]
  %v2285 = vld [vmem:[#allocation3 + $0x118] sm:$0xff]
  %v2286 = vld [vmem:[#allocation3 + $0x120] sm:$0xff]
  %v2287 = vld [vmem:[#allocation3 + $0x128] sm:$0xff]
  %v2288 = vld [vmem:[#allocation3 + $0x130] sm:$0xff]
  %v2289 = vld [vmem:[#allocation3 + $0x138] sm:$0xff]
  %v2290 = vadd.f32 %v2250, %v2142
  %v2291 = vadd.f32 %v2251, %v2201
  %v2292 = vadd.f32 %v2252, %v2144
  %v2293 = vadd.f32 %v2253, %v2203
  %v2294 = vadd.f32 %v2254, %v2147
  %v2295 = vadd.f32 %v2255, %v2206
  %v2296 = vadd.f32 %v2256, %v2149
  %v2297 = vadd.f32 %v2257, %v2208
  %v2298 = vadd.f32 %v2258, %v2152
  %v2299 = vadd.f32 %v2259, %v2211
  %v2300 = vadd.f32 %v2260, %v2154
  %v2301 = vadd.f32 %v2261, %v2213
  %v2302 = vadd.f32 %v2262, %v2157
  %v2303 = vadd.f32 %v2263, %v2216
  %v2304 = vadd.f32 %v2264, %v2159
  %v2305 = vadd.f32 %v2265, %v2218
  %v2306 = vadd.f32 %v2266, %v2162
  %v2307 = vadd.f32 %v2267, %v2221
  %v2308 = vadd.f32 %v2268, %v2164
  %v2309 = vadd.f32 %v2269, %v2223
  %v2310 = vadd.f32 %v2270, %v2167
  %v2311 = vadd.f32 %v2271, %v2226
  %v2312 = vadd.f32 %v2272, %v2169
  %v2313 = vadd.f32 %v2273, %v2228
  %v2314 = vadd.f32 %v2274, %v2172
  %v2315 = vadd.f32 %v2275, %v2231
  %v2316 = vadd.f32 %v2276, %v2174
  %v2317 = vadd.f32 %v2277, %v2233
  %v2318 = vadd.f32 %v2278, %v2177
  %v2319 = vadd.f32 %v2279, %v2236
  %v2320 = vadd.f32 %v2280, %v2179
  %v2321 = vadd.f32 %v2281, %v2238
  %v2322 = vadd.f32 %v2282, %v2182
  %v2323 = vadd.f32 %v2283, %v2241
  %v2324 = vadd.f32 %v2284, %v2184
  %v2325 = vadd.f32 %v2285, %v2243
  %v2326 = vadd.f32 %v2286, %v2187
  %v2327 = vadd.f32 %v2287, %v2246
  %v2328 = vadd.f32 %v2288, %v2189
  %v2329 = vadd.f32 %v2289, %v2248
  %2330 = vst [vmem:[#allocation3] sm:$0xff] %v2290
  %2331 = vst [vmem:[#allocation3 + $0x8] sm:$0xff] %v2291
  %2332 = vst [vmem:[#allocation3 + $0x10] sm:$0xff] %v2292
  %2333 = vst [vmem:[#allocation3 + $0x18] sm:$0xff] %v2293
  %2334 = vst [vmem:[#allocation3 + $0x20] sm:$0xff] %v2294
  %2335 = vst [vmem:[#allocation3 + $0x28] sm:$0xff] %v2295
  %2336 = vst [vmem:[#allocation3 + $0x30] sm:$0xff] %v2296
  %2337 = vst [vmem:[#allocation3 + $0x38] sm:$0xff] %v2297
  %2338 = vst [vmem:[#allocation3 + $0x40] sm:$0xff] %v2298
  %2339 = vst [vmem:[#allocation3 + $0x48] sm:$0xff] %v2299
  %2340 = vst [vmem:[#allocation3 + $0x50] sm:$0xff] %v2300
  %2341 = vst [vmem:[#allocation3 + $0x58] sm:$0xff] %v2301
  %2342 = vst [vmem:[#allocation3 + $0x60] sm:$0xff] %v2302
  %2343 = vst [vmem:[#allocation3 + $0x68] sm:$0xff] %v2303
  %2344 = vst [vmem:[#allocation3 + $0x70] sm:$0xff] %v2304
  %2345 = vst [vmem:[#allocation3 + $0x78] sm:$0xff] %v2305
  %2346 = vst [vmem:[#allocation3 + $0x80] sm:$0xff] %v2306
  %2347 = vst [vmem:[#allocation3 + $0x88] sm:$0xff] %v2307
  %2348 = vst [vmem:[#allocation3 + $0x90] sm:$0xff] %v2308
  %2349 = vst [vmem:[#allocation3 + $0x98] sm:$0xff] %v2309
  %2350 = vst [vmem:[#allocation3 + $0xa0] sm:$0xff] %v2310
  %2351 = vst [vmem:[#allocation3 + $0xa8] sm:$0xff] %v2311
  %2352 = vst [vmem:[#allocation3 + $0xb0] sm:$0xff] %v2312
  %2353 = vst [vmem:[#allocation3 + $0xb8] sm:$0xff] %v2313
  %2354 = vst [vmem:[#allocation3 + $0xc0] sm:$0xff] %v2314
  %2355 = vst [vmem:[#allocation3 + $0xc8] sm:$0xff] %v2315
  %2356 = vst [vmem:[#allocation3 + $0xd0] sm:$0xff] %v2316
  %2357 = vst [vmem:[#allocation3 + $0xd8] sm:$0xff] %v2317
  %2358 = vst [vmem:[#allocation3 + $0xe0] sm:$0xff] %v2318
  %2359 = vst [vmem:[#allocation3 + $0xe8] sm:$0xff] %v2319
  %2360 = vst [vmem:[#allocation3 + $0xf0] sm:$0xff] %v2320
  %2361 = vst [vmem:[#allocation3 + $0xf8] sm:$0xff] %v2321
  %2362 = vst [vmem:[#allocation3 + $0x100] sm:$0xff] %v2322
  %2363 = vst [vmem:[#allocation3 + $0x108] sm:$0xff] %v2323
  %2364 = vst [vmem:[#allocation3 + $0x110] sm:$0xff] %v2324
  %2365 = vst [vmem:[#allocation3 + $0x118] sm:$0xff] %v2325
  %2366 = vst [vmem:[#allocation3 + $0x120] sm:$0xff] %v2326
  %2367 = vst [vmem:[#allocation3 + $0x128] sm:$0xff] %v2327
  %2368 = vst [vmem:[#allocation3 + $0x130] sm:$0xff] %v2328
  %2369 = vst [vmem:[#allocation3 + $0x138] sm:$0xff] %v2329
  %v2370 = vld [vmem:[#allocation2 + $0x30] sm:$0xff]
  %v2371 = vld [vmem:[#allocation2 + $0x38] sm:$0xff]
  %v2372 = vld [vmem:[#allocation2 + $0x40] sm:$0xff]
  %v2373 = vld [vmem:[#allocation2 + $0x48] sm:$0xff]
  %v2374 = vld [vmem:[#allocation2 + $0x50] sm:$0xff]
  %v2375 = vld [vmem:[#allocation2 + $0x58] sm:$0xff]
  %v2376 = vld [vmem:[#allocation2 + $0x60] sm:$0xff]
  %v2377 = vld [vmem:[#allocation2 + $0x68] sm:$0xff]
  %v2378 = vld [vmem:[#allocation2 + $0x70] sm:$0xff]
  %v2379 = vld [vmem:[#allocation2 + $0x78] sm:$0xff]
  %v2380 = vld [vmem:[#allocation2 + $0x80] sm:$0xff]
  %v2381 = vld [vmem:[#allocation2 + $0x88] sm:$0xff]
  %v2382 = vld [vmem:[#allocation2 + $0x90] sm:$0xff]
  %v2383 = vld [vmem:[#allocation2 + $0x98] sm:$0xff]
  %v2384 = vld [vmem:[#allocation2 + $0xa0] sm:$0xff]
  %v2385 = vld [vmem:[#allocation2 + $0xa8] sm:$0xff]
  %v2386 = vld [vmem:[#allocation2 + $0xb0] sm:$0xff]
  %v2387 = vld [vmem:[#allocation2 + $0xb8] sm:$0xff]
  %v2388 = vld [vmem:[#allocation2 + $0xc0] sm:$0xff]
  %v2389 = vld [vmem:[#allocation2 + $0xc8] sm:$0xff]
  %v2390 = vpack.c.bf16 %v2371, %v2370
  %v2391 = vpack.c.bf16 %v2373, %v2372
  %v2392 = vpack.c.bf16 %v2375, %v2374
  %v2393 = vpack.c.bf16 %v2377, %v2376
  %v2394 = vpack.c.bf16 %v2379, %v2378
  %v2395 = vpack.c.bf16 %v2381, %v2380
  %v2396 = vpack.c.bf16 %v2383, %v2382
  %v2397 = vpack.c.bf16 %v2385, %v2384
  %v2398 = vpack.c.bf16 %v2387, %v2386
  %v2399 = vpack.c.bf16 %v2389, %v2388
  %s2400 = scalar_lea.vmem %s3, 384
  %v2401 = vld [vmem:[%s2400] sm:$0xff]
  %v2402 = vld [vmem:[%s2400 + $0x8] sm:$0xff]
  %v2403 = vld [vmem:[%s2400 + $0x10] sm:$0xff]
  %v2404 = vld [vmem:[%s2400 + $0x18] sm:$0xff]
  %v2405 = vld [vmem:[%s2400 + $0x20] sm:$0xff]
  %v2406 = vld [vmem:[%s2400 + $0x28] sm:$0xff]
  %v2407 = vld [vmem:[%s2400 + $0x30] sm:$0xff]
  %v2408 = vld [vmem:[%s2400 + $0x38] sm:$0xff]
  %v2409 = vld [vmem:[%s2400 + $0x40] sm:$0xff]
  %v2410 = vld [vmem:[%s2400 + $0x48] sm:$0xff]
  %v2411 = vld [vmem:[%s2400 + $0x50] sm:$0xff]
  %v2412 = vld [vmem:[%s2400 + $0x58] sm:$0xff]
  %v2413 = vld [vmem:[%s2400 + $0x60] sm:$0xff]
  %v2414 = vld [vmem:[%s2400 + $0x68] sm:$0xff]
  %v2415 = vld [vmem:[%s2400 + $0x70] sm:$0xff]
  %v2416 = vld [vmem:[%s2400 + $0x78] sm:$0xff]
  %v2433 = vunpack.c.l.b16 %v2401
  %v2434 = vunpack.c.h.b16 %v2401
  %v2435 = vunpack.c.l.b16 %v2402
  %v2436 = vunpack.c.h.b16 %v2402
  %v2437 = vunpack.c.l.b16 %v2403
  %v2438 = vunpack.c.h.b16 %v2403
  %v2439 = vunpack.c.l.b16 %v2404
  %v2440 = vunpack.c.h.b16 %v2404
  %v2441 = vunpack.c.l.b16 %v2405
  %v2442 = vunpack.c.h.b16 %v2405
  %v2443 = vunpack.c.l.b16 %v2406
  %v2444 = vunpack.c.h.b16 %v2406
  %v2445 = vunpack.c.l.b16 %v2407
  %v2446 = vunpack.c.h.b16 %v2407
  %v2447 = vunpack.c.l.b16 %v2408
  %v2448 = vunpack.c.h.b16 %v2408
  %v2449 = vunpack.c.l.b16 %v2409
  %v2450 = vunpack.c.h.b16 %v2409
  %v2451 = vunpack.c.l.b16 %v2410
  %v2452 = vunpack.c.h.b16 %v2410
  %v2453 = vunpack.c.l.b16 %v2411
  %v2454 = vunpack.c.h.b16 %v2411
  %v2455 = vunpack.c.l.b16 %v2412
  %v2456 = vunpack.c.h.b16 %v2412
  %v2457 = vunpack.c.l.b16 %v2413
  %v2458 = vunpack.c.h.b16 %v2413
  %v2459 = vunpack.c.l.b16 %v2414
  %v2460 = vunpack.c.h.b16 %v2414
  %v2461 = vunpack.c.l.b16 %v2415
  %v2462 = vunpack.c.h.b16 %v2415
  %v2463 = vunpack.c.l.b16 %v2416
  %v2464 = vunpack.c.h.b16 %v2416
  %v2465 = vpack.c.b16 %v2435, %v2433
  %v2466 = vpack.c.b16 %v2436, %v2434
  %v2467 = vpack.c.b16 %v2439, %v2437
  %v2468 = vpack.c.b16 %v2440, %v2438
  %v2469 = vpack.c.b16 %v2443, %v2441
  %v2470 = vpack.c.b16 %v2444, %v2442
  %v2471 = vpack.c.b16 %v2447, %v2445
  %v2472 = vpack.c.b16 %v2448, %v2446
  %v2473 = vpack.c.b16 %v2451, %v2449
  %v2474 = vpack.c.b16 %v2452, %v2450
  %v2475 = vpack.c.b16 %v2455, %v2453
  %v2476 = vpack.c.b16 %v2456, %v2454
  %v2477 = vpack.c.b16 %v2459, %v2457
  %v2478 = vpack.c.b16 %v2460, %v2458
  %v2479 = vpack.c.b16 %v2463, %v2461
  %v2480 = vpack.c.b16 %v2464, %v2462
  %2497 = vmatpush.bf16.msra.mxu0 %v2479
  %2498 = vmatpush.bf16.msra.mxu0 %v2477
  %2499 = vmatpush.bf16.msra.mxu0 %v2475
  %2500 = vmatpush.bf16.msra.mxu0 %v2473
  %2501 = vmatpush.bf16.msra.mxu0 %v2471
  %2502 = vmatpush.bf16.msra.mxu0 %v2469
  %2503 = vmatpush.bf16.msra.mxu0 %v2467
  %2504 = vmatpush.bf16.msra.mxu0 %v2465
  %2505 = vmatmul.bf16.gmra.mxu0 %v2390
  %v2506 = vpop.f32.mrf.mxu0
  %v2507 = vadd.f32 0.0, %v2506
  %v2508 = vpop.f32.mrf.mxu0
  %v2509 = vadd.f32 0.0, %v2508
  %2510 = vmatmul.bf16.gmra.mxu0 %v2391
  %v2511 = vpop.f32.mrf.mxu0
  %v2512 = vadd.f32 0.0, %v2511
  %v2513 = vpop.f32.mrf.mxu0
  %v2514 = vadd.f32 0.0, %v2513
  %2515 = vmatmul.bf16.gmra.mxu0 %v2392
  %v2516 = vpop.f32.mrf.mxu0
  %v2517 = vadd.f32 0.0, %v2516
  %v2518 = vpop.f32.mrf.mxu0
  %v2519 = vadd.f32 0.0, %v2518
  %2520 = vmatmul.bf16.gmra.mxu0 %v2393
  %v2521 = vpop.f32.mrf.mxu0
  %v2522 = vadd.f32 0.0, %v2521
  %v2523 = vpop.f32.mrf.mxu0
  %v2524 = vadd.f32 0.0, %v2523
  %2525 = vmatmul.bf16.gmra.mxu0 %v2394
  %v2526 = vpop.f32.mrf.mxu0
  %v2527 = vadd.f32 0.0, %v2526
  %v2528 = vpop.f32.mrf.mxu0
  %v2529 = vadd.f32 0.0, %v2528
  %2530 = vmatmul.bf16.gmra.mxu0 %v2395
  %v2531 = vpop.f32.mrf.mxu0
  %v2532 = vadd.f32 0.0, %v2531
  %v2533 = vpop.f32.mrf.mxu0
  %v2534 = vadd.f32 0.0, %v2533
  %2535 = vmatmul.bf16.gmra.mxu0 %v2396
  %v2536 = vpop.f32.mrf.mxu0
  %v2537 = vadd.f32 0.0, %v2536
  %v2538 = vpop.f32.mrf.mxu0
  %v2539 = vadd.f32 0.0, %v2538
  %2540 = vmatmul.bf16.gmra.mxu0 %v2397
  %v2541 = vpop.f32.mrf.mxu0
  %v2542 = vadd.f32 0.0, %v2541
  %v2543 = vpop.f32.mrf.mxu0
  %v2544 = vadd.f32 0.0, %v2543
  %2545 = vmatmul.bf16.gmra.mxu0 %v2398
  %v2546 = vpop.f32.mrf.mxu0
  %v2547 = vadd.f32 0.0, %v2546
  %v2548 = vpop.f32.mrf.mxu0
  %v2549 = vadd.f32 0.0, %v2548
  %2550 = vmatmul.bf16.gmra.mxu0 %v2399
  %v2551 = vpop.f32.mrf.mxu0
  %v2552 = vadd.f32 0.0, %v2551
  %v2553 = vpop.f32.mrf.mxu0
  %v2554 = vadd.f32 0.0, %v2553
  %2555 = vdwg.mxu0
  %2556 = vmatpush.bf16.msra.mxu0 %v2480
  %2557 = vmatpush.bf16.msra.mxu0 %v2478
  %2558 = vmatpush.bf16.msra.mxu0 %v2476
  %2559 = vmatpush.bf16.msra.mxu0 %v2474
  %2560 = vmatpush.bf16.msra.mxu0 %v2472
  %2561 = vmatpush.bf16.msra.mxu0 %v2470
  %2562 = vmatpush.bf16.msra.mxu0 %v2468
  %2563 = vmatpush.bf16.msra.mxu0 %v2466
  %2564 = vmatmul.bf16.gmra.mxu0 %v2390
  %v2565 = vpop.f32.mrf.mxu0
  %v2566 = vadd.f32 0.0, %v2565
  %v2567 = vpop.f32.mrf.mxu0
  %v2568 = vadd.f32 0.0, %v2567
  %2569 = vmatmul.bf16.gmra.mxu0 %v2391
  %v2570 = vpop.f32.mrf.mxu0
  %v2571 = vadd.f32 0.0, %v2570
  %v2572 = vpop.f32.mrf.mxu0
  %v2573 = vadd.f32 0.0, %v2572
  %2574 = vmatmul.bf16.gmra.mxu0 %v2392
  %v2575 = vpop.f32.mrf.mxu0
  %v2576 = vadd.f32 0.0, %v2575
  %v2577 = vpop.f32.mrf.mxu0
  %v2578 = vadd.f32 0.0, %v2577
  %2579 = vmatmul.bf16.gmra.mxu0 %v2393
  %v2580 = vpop.f32.mrf.mxu0
  %v2581 = vadd.f32 0.0, %v2580
  %v2582 = vpop.f32.mrf.mxu0
  %v2583 = vadd.f32 0.0, %v2582
  %2584 = vmatmul.bf16.gmra.mxu0 %v2394
  %v2585 = vpop.f32.mrf.mxu0
  %v2586 = vadd.f32 0.0, %v2585
  %v2587 = vpop.f32.mrf.mxu0
  %v2588 = vadd.f32 0.0, %v2587
  %2589 = vmatmul.bf16.gmra.mxu0 %v2395
  %v2590 = vpop.f32.mrf.mxu0
  %v2591 = vadd.f32 0.0, %v2590
  %v2592 = vpop.f32.mrf.mxu0
  %v2593 = vadd.f32 0.0, %v2592
  %2594 = vmatmul.bf16.gmra.mxu0 %v2396
  %v2595 = vpop.f32.mrf.mxu0
  %v2596 = vadd.f32 0.0, %v2595
  %v2597 = vpop.f32.mrf.mxu0
  %v2598 = vadd.f32 0.0, %v2597
  %2599 = vmatmul.bf16.gmra.mxu0 %v2397
  %v2600 = vpop.f32.mrf.mxu0
  %v2601 = vadd.f32 0.0, %v2600
  %v2602 = vpop.f32.mrf.mxu0
  %v2603 = vadd.f32 0.0, %v2602
  %2604 = vmatmul.bf16.gmra.mxu0 %v2398
  %v2605 = vpop.f32.mrf.mxu0
  %v2606 = vadd.f32 0.0, %v2605
  %v2607 = vpop.f32.mrf.mxu0
  %v2608 = vadd.f32 0.0, %v2607
  %2609 = vmatmul.bf16.gmra.mxu0 %v2399
  %v2610 = vpop.f32.mrf.mxu0
  %v2611 = vadd.f32 0.0, %v2610
  %v2612 = vpop.f32.mrf.mxu0
  %v2613 = vadd.f32 0.0, %v2612
  %2614 = vdwg.mxu0
  %v2615 = vld [vmem:[#allocation3] sm:$0xff]
  %v2616 = vld [vmem:[#allocation3 + $0x8] sm:$0xff]
  %v2617 = vld [vmem:[#allocation3 + $0x10] sm:$0xff]
  %v2618 = vld [vmem:[#allocation3 + $0x18] sm:$0xff]
  %v2619 = vld [vmem:[#allocation3 + $0x20] sm:$0xff]
  %v2620 = vld [vmem:[#allocation3 + $0x28] sm:$0xff]
  %v2621 = vld [vmem:[#allocation3 + $0x30] sm:$0xff]
  %v2622 = vld [vmem:[#allocation3 + $0x38] sm:$0xff]
  %v2623 = vld [vmem:[#allocation3 + $0x40] sm:$0xff]
  %v2624 = vld [vmem:[#allocation3 + $0x48] sm:$0xff]
  %v2625 = vld [vmem:[#allocation3 + $0x50] sm:$0xff]
  %v2626 = vld [vmem:[#allocation3 + $0x58] sm:$0xff]
  %v2627 = vld [vmem:[#allocation3 + $0x60] sm:$0xff]
  %v2628 = vld [vmem:[#allocation3 + $0x68] sm:$0xff]
  %v2629 = vld [vmem:[#allocation3 + $0x70] sm:$0xff]
  %v2630 = vld [vmem:[#allocation3 + $0x78] sm:$0xff]
  %v2631 = vld [vmem:[#allocation3 + $0x80] sm:$0xff]
  %v2632 = vld [vmem:[#allocation3 + $0x88] sm:$0xff]
  %v2633 = vld [vmem:[#allocation3 + $0x90] sm:$0xff]
  %v2634 = vld [vmem:[#allocation3 + $0x98] sm:$0xff]
  %v2635 = vld [vmem:[#allocation3 + $0xa0] sm:$0xff]
  %v2636 = vld [vmem:[#allocation3 + $0xa8] sm:$0xff]
  %v2637 = vld [vmem:[#allocation3 + $0xb0] sm:$0xff]
  %v2638 = vld [vmem:[#allocation3 + $0xb8] sm:$0xff]
  %v2639 = vld [vmem:[#allocation3 + $0xc0] sm:$0xff]
  %v2640 = vld [vmem:[#allocation3 + $0xc8] sm:$0xff]
  %v2641 = vld [vmem:[#allocation3 + $0xd0] sm:$0xff]
  %v2642 = vld [vmem:[#allocation3 + $0xd8] sm:$0xff]
  %v2643 = vld [vmem:[#allocation3 + $0xe0] sm:$0xff]
  %v2644 = vld [vmem:[#allocation3 + $0xe8] sm:$0xff]
  %v2645 = vld [vmem:[#allocation3 + $0xf0] sm:$0xff]
  %v2646 = vld [vmem:[#allocation3 + $0xf8] sm:$0xff]
  %v2647 = vld [vmem:[#allocation3 + $0x100] sm:$0xff]
  %v2648 = vld [vmem:[#allocation3 + $0x108] sm:$0xff]
  %v2649 = vld [vmem:[#allocation3 + $0x110] sm:$0xff]
  %v2650 = vld [vmem:[#allocation3 + $0x118] sm:$0xff]
  %v2651 = vld [vmem:[#allocation3 + $0x120] sm:$0xff]
  %v2652 = vld [vmem:[#allocation3 + $0x128] sm:$0xff]
  %v2653 = vld [vmem:[#allocation3 + $0x130] sm:$0xff]
  %v2654 = vld [vmem:[#allocation3 + $0x138] sm:$0xff]
  %v2655 = vadd.f32 %v2615, %v2507
  %v2656 = vadd.f32 %v2616, %v2566
  %v2657 = vadd.f32 %v2617, %v2509
  %v2658 = vadd.f32 %v2618, %v2568
  %v2659 = vadd.f32 %v2619, %v2512
  %v2660 = vadd.f32 %v2620, %v2571
  %v2661 = vadd.f32 %v2621, %v2514
  %v2662 = vadd.f32 %v2622, %v2573
  %v2663 = vadd.f32 %v2623, %v2517
  %v2664 = vadd.f32 %v2624, %v2576
  %v2665 = vadd.f32 %v2625, %v2519
  %v2666 = vadd.f32 %v2626, %v2578
  %v2667 = vadd.f32 %v2627, %v2522
  %v2668 = vadd.f32 %v2628, %v2581
  %v2669 = vadd.f32 %v2629, %v2524
  %v2670 = vadd.f32 %v2630, %v2583
  %v2671 = vadd.f32 %v2631, %v2527
  %v2672 = vadd.f32 %v2632, %v2586
  %v2673 = vadd.f32 %v2633, %v2529
  %v2674 = vadd.f32 %v2634, %v2588
  %v2675 = vadd.f32 %v2635, %v2532
  %v2676 = vadd.f32 %v2636, %v2591
  %v2677 = vadd.f32 %v2637, %v2534
  %v2678 = vadd.f32 %v2638, %v2593
  %v2679 = vadd.f32 %v2639, %v2537
  %v2680 = vadd.f32 %v2640, %v2596
  %v2681 = vadd.f32 %v2641, %v2539
  %v2682 = vadd.f32 %v2642, %v2598
  %v2683 = vadd.f32 %v2643, %v2542
  %v2684 = vadd.f32 %v2644, %v2601
  %v2685 = vadd.f32 %v2645, %v2544
  %v2686 = vadd.f32 %v2646, %v2603
  %v2687 = vadd.f32 %v2647, %v2547
  %v2688 = vadd.f32 %v2648, %v2606
  %v2689 = vadd.f32 %v2649, %v2549
  %v2690 = vadd.f32 %v2650, %v2608
  %v2691 = vadd.f32 %v2651, %v2552
  %v2692 = vadd.f32 %v2652, %v2611
  %v2693 = vadd.f32 %v2653, %v2554
  %v2694 = vadd.f32 %v2654, %v2613
  %2695 = vst [vmem:[#allocation3] sm:$0xff] %v2655
  %2696 = vst [vmem:[#allocation3 + $0x8] sm:$0xff] %v2656
  %2697 = vst [vmem:[#allocation3 + $0x10] sm:$0xff] %v2657
  %2698 = vst [vmem:[#allocation3 + $0x18] sm:$0xff] %v2658
  %2699 = vst [vmem:[#allocation3 + $0x20] sm:$0xff] %v2659
  %2700 = vst [vmem:[#allocation3 + $0x28] sm:$0xff] %v2660
  %2701 = vst [vmem:[#allocation3 + $0x30] sm:$0xff] %v2661
  %2702 = vst [vmem:[#allocation3 + $0x38] sm:$0xff] %v2662
  %2703 = vst [vmem:[#allocation3 + $0x40] sm:$0xff] %v2663
  %2704 = vst [vmem:[#allocation3 + $0x48] sm:$0xff] %v2664
  %2705 = vst [vmem:[#allocation3 + $0x50] sm:$0xff] %v2665
  %2706 = vst [vmem:[#allocation3 + $0x58] sm:$0xff] %v2666
  %2707 = vst [vmem:[#allocation3 + $0x60] sm:$0xff] %v2667
  %2708 = vst [vmem:[#allocation3 + $0x68] sm:$0xff] %v2668
  %2709 = vst [vmem:[#allocation3 + $0x70] sm:$0xff] %v2669
  %2710 = vst [vmem:[#allocation3 + $0x78] sm:$0xff] %v2670
  %2711 = vst [vmem:[#allocation3 + $0x80] sm:$0xff] %v2671
  %2712 = vst [vmem:[#allocation3 + $0x88] sm:$0xff] %v2672
  %2713 = vst [vmem:[#allocation3 + $0x90] sm:$0xff] %v2673
  %2714 = vst [vmem:[#allocation3 + $0x98] sm:$0xff] %v2674
  %2715 = vst [vmem:[#allocation3 + $0xa0] sm:$0xff] %v2675
  %2716 = vst [vmem:[#allocation3 + $0xa8] sm:$0xff] %v2676
  %2717 = vst [vmem:[#allocation3 + $0xb0] sm:$0xff] %v2677
  %2718 = vst [vmem:[#allocation3 + $0xb8] sm:$0xff] %v2678
  %2719 = vst [vmem:[#allocation3 + $0xc0] sm:$0xff] %v2679
  %2720 = vst [vmem:[#allocation3 + $0xc8] sm:$0xff] %v2680
  %2721 = vst [vmem:[#allocation3 + $0xd0] sm:$0xff] %v2681
  %2722 = vst [vmem:[#allocation3 + $0xd8] sm:$0xff] %v2682
  %2723 = vst [vmem:[#allocation3 + $0xe0] sm:$0xff] %v2683
  %2724 = vst [vmem:[#allocation3 + $0xe8] sm:$0xff] %v2684
  %2725 = vst [vmem:[#allocation3 + $0xf0] sm:$0xff] %v2685
  %2726 = vst [vmem:[#allocation3 + $0xf8] sm:$0xff] %v2686
  %2727 = vst [vmem:[#allocation3 + $0x100] sm:$0xff] %v2687
  %2728 = vst [vmem:[#allocation3 + $0x108] sm:$0xff] %v2688
  %2729 = vst [vmem:[#allocation3 + $0x110] sm:$0xff] %v2689
  %2730 = vst [vmem:[#allocation3 + $0x118] sm:$0xff] %v2690
  %2731 = vst [vmem:[#allocation3 + $0x120] sm:$0xff] %v2691
  %2732 = vst [vmem:[#allocation3 + $0x128] sm:$0xff] %v2692
  %2733 = vst [vmem:[#allocation3 + $0x130] sm:$0xff] %v2693
  %2734 = vst [vmem:[#allocation3 + $0x138] sm:$0xff] %v2694
  %v2735 = vld [vmem:[#allocation2 + $0x40] sm:$0xff]
  %v2736 = vld [vmem:[#allocation2 + $0x48] sm:$0xff]
  %v2737 = vld [vmem:[#allocation2 + $0x50] sm:$0xff]
  %v2738 = vld [vmem:[#allocation2 + $0x58] sm:$0xff]
  %v2739 = vld [vmem:[#allocation2 + $0x60] sm:$0xff]
  %v2740 = vld [vmem:[#allocation2 + $0x68] sm:$0xff]
  %v2741 = vld [vmem:[#allocation2 + $0x70] sm:$0xff]
  %v2742 = vld [vmem:[#allocation2 + $0x78] sm:$0xff]
  %v2743 = vld [vmem:[#allocation2 + $0x80] sm:$0xff]
  %v2744 = vld [vmem:[#allocation2 + $0x88] sm:$0xff]
  %v2745 = vld [vmem:[#allocation2 + $0x90] sm:$0xff]
  %v2746 = vld [vmem:[#allocation2 + $0x98] sm:$0xff]
  %v2747 = vld [vmem:[#allocation2 + $0xa0] sm:$0xff]
  %v2748 = vld [vmem:[#allocation2 + $0xa8] sm:$0xff]
  %v2749 = vld [vmem:[#allocation2 + $0xb0] sm:$0xff]
  %v2750 = vld [vmem:[#allocation2 + $0xb8] sm:$0xff]
  %v2751 = vld [vmem:[#allocation2 + $0xc0] sm:$0xff]
  %v2752 = vld [vmem:[#allocation2 + $0xc8] sm:$0xff]
  %v2753 = vld [vmem:[#allocation2 + $0xd0] sm:$0xff]
  %v2754 = vld [vmem:[#allocation2 + $0xd8] sm:$0xff]
  %v2755 = vpack.c.bf16 %v2736, %v2735
  %v2756 = vpack.c.bf16 %v2738, %v2737
  %v2757 = vpack.c.bf16 %v2740, %v2739
  %v2758 = vpack.c.bf16 %v2742, %v2741
  %v2759 = vpack.c.bf16 %v2744, %v2743
  %v2760 = vpack.c.bf16 %v2746, %v2745
  %v2761 = vpack.c.bf16 %v2748, %v2747
  %v2762 = vpack.c.bf16 %v2750, %v2749
  %v2763 = vpack.c.bf16 %v2752, %v2751
  %v2764 = vpack.c.bf16 %v2754, %v2753
  %s2765 = scalar_lea.vmem %s3, 512
  %v2766 = vld [vmem:[%s2765] sm:$0xff]
  %v2767 = vld [vmem:[%s2765 + $0x8] sm:$0xff]
  %v2768 = vld [vmem:[%s2765 + $0x10] sm:$0xff]
  %v2769 = vld [vmem:[%s2765 + $0x18] sm:$0xff]
  %v2770 = vld [vmem:[%s2765 + $0x20] sm:$0xff]
  %v2771 = vld [vmem:[%s2765 + $0x28] sm:$0xff]
  %v2772 = vld [vmem:[%s2765 + $0x30] sm:$0xff]
  %v2773 = vld [vmem:[%s2765 + $0x38] sm:$0xff]
  %v2774 = vld [vmem:[%s2765 + $0x40] sm:$0xff]
  %v2775 = vld [vmem:[%s2765 + $0x48] sm:$0xff]
  %v2776 = vld [vmem:[%s2765 + $0x50] sm:$0xff]
  %v2777 = vld [vmem:[%s2765 + $0x58] sm:$0xff]
  %v2778 = vld [vmem:[%s2765 + $0x60] sm:$0xff]
  %v2779 = vld [vmem:[%s2765 + $0x68] sm:$0xff]
  %v2780 = vld [vmem:[%s2765 + $0x70] sm:$0xff]
  %v2781 = vld [vmem:[%s2765 + $0x78] sm:$0xff]
  %v2798 = vunpack.c.l.b16 %v2766
  %v2799 = vunpack.c.h.b16 %v2766
  %v2800 = vunpack.c.l.b16 %v2767
  %v2801 = vunpack.c.h.b16 %v2767
  %v2802 = vunpack.c.l.b16 %v2768
  %v2803 = vunpack.c.h.b16 %v2768
  %v2804 = vunpack.c.l.b16 %v2769
  %v2805 = vunpack.c.h.b16 %v2769
  %v2806 = vunpack.c.l.b16 %v2770
  %v2807 = vunpack.c.h.b16 %v2770
  %v2808 = vunpack.c.l.b16 %v2771
  %v2809 = vunpack.c.h.b16 %v2771
  %v2810 = vunpack.c.l.b16 %v2772
  %v2811 = vunpack.c.h.b16 %v2772
  %v2812 = vunpack.c.l.b16 %v2773
  %v2813 = vunpack.c.h.b16 %v2773
  %v2814 = vunpack.c.l.b16 %v2774
  %v2815 = vunpack.c.h.b16 %v2774
  %v2816 = vunpack.c.l.b16 %v2775
  %v2817 = vunpack.c.h.b16 %v2775
  %v2818 = vunpack.c.l.b16 %v2776
  %v2819 = vunpack.c.h.b16 %v2776
  %v2820 = vunpack.c.l.b16 %v2777
  %v2821 = vunpack.c.h.b16 %v2777
  %v2822 = vunpack.c.l.b16 %v2778
  %v2823 = vunpack.c.h.b16 %v2778
  %v2824 = vunpack.c.l.b16 %v2779
  %v2825 = vunpack.c.h.b16 %v2779
  %v2826 = vunpack.c.l.b16 %v2780
  %v2827 = vunpack.c.h.b16 %v2780
  %v2828 = vunpack.c.l.b16 %v2781
  %v2829 = vunpack.c.h.b16 %v2781
  %v2830 = vpack.c.b16 %v2800, %v2798
  %v2831 = vpack.c.b16 %v2801, %v2799
  %v2832 = vpack.c.b16 %v2804, %v2802
  %v2833 = vpack.c.b16 %v2805, %v2803
  %v2834 = vpack.c.b16 %v2808, %v2806
  %v2835 = vpack.c.b16 %v2809, %v2807
  %v2836 = vpack.c.b16 %v2812, %v2810
  %v2837 = vpack.c.b16 %v2813, %v2811
  %v2838 = vpack.c.b16 %v2816, %v2814
  %v2839 = vpack.c.b16 %v2817, %v2815
  %v2840 = vpack.c.b16 %v2820, %v2818
  %v2841 = vpack.c.b16 %v2821, %v2819
  %v2842 = vpack.c.b16 %v2824, %v2822
  %v2843 = vpack.c.b16 %v2825, %v2823
  %v2844 = vpack.c.b16 %v2828, %v2826
  %v2845 = vpack.c.b16 %v2829, %v2827
  %2862 = vmatpush.bf16.msra.mxu0 %v2844
  %2863 = vmatpush.bf16.msra.mxu0 %v2842
  %2864 = vmatpush.bf16.msra.mxu0 %v2840
  %2865 = vmatpush.bf16.msra.mxu0 %v2838
  %2866 = vmatpush.bf16.msra.mxu0 %v2836
  %2867 = vmatpush.bf16.msra.mxu0 %v2834
  %2868 = vmatpush.bf16.msra.mxu0 %v2832
  %2869 = vmatpush.bf16.msra.mxu0 %v2830
  %2870 = vmatmul.bf16.gmra.mxu0 %v2755
  %v2871 = vpop.f32.mrf.mxu0
  %v2872 = vadd.f32 0.0, %v2871
  %v2873 = vpop.f32.mrf.mxu0
  %v2874 = vadd.f32 0.0, %v2873
  %2875 = vmatmul.bf16.gmra.mxu0 %v2756
  %v2876 = vpop.f32.mrf.mxu0
  %v2877 = vadd.f32 0.0, %v2876
  %v2878 = vpop.f32.mrf.mxu0
  %v2879 = vadd.f32 0.0, %v2878
  %2880 = vmatmul.bf16.gmra.mxu0 %v2757
  %v2881 = vpop.f32.mrf.mxu0
  %v2882 = vadd.f32 0.0, %v2881
  %v2883 = vpop.f32.mrf.mxu0
  %v2884 = vadd.f32 0.0, %v2883
  %2885 = vmatmul.bf16.gmra.mxu0 %v2758
  %v2886 = vpop.f32.mrf.mxu0
  %v2887 = vadd.f32 0.0, %v2886
  %v2888 = vpop.f32.mrf.mxu0
  %v2889 = vadd.f32 0.0, %v2888
  %2890 = vmatmul.bf16.gmra.mxu0 %v2759
  %v2891 = vpop.f32.mrf.mxu0
  %v2892 = vadd.f32 0.0, %v2891
  %v2893 = vpop.f32.mrf.mxu0
  %v2894 = vadd.f32 0.0, %v2893
  %2895 = vmatmul.bf16.gmra.mxu0 %v2760
  %v2896 = vpop.f32.mrf.mxu0
  %v2897 = vadd.f32 0.0, %v2896
  %v2898 = vpop.f32.mrf.mxu0
  %v2899 = vadd.f32 0.0, %v2898
  %2900 = vmatmul.bf16.gmra.mxu0 %v2761
  %v2901 = vpop.f32.mrf.mxu0
  %v2902 = vadd.f32 0.0, %v2901
  %v2903 = vpop.f32.mrf.mxu0
  %v2904 = vadd.f32 0.0, %v2903
  %2905 = vmatmul.bf16.gmra.mxu0 %v2762
  %v2906 = vpop.f32.mrf.mxu0
  %v2907 = vadd.f32 0.0, %v2906
  %v2908 = vpop.f32.mrf.mxu0
  %v2909 = vadd.f32 0.0, %v2908
  %2910 = vmatmul.bf16.gmra.mxu0 %v2763
  %v2911 = vpop.f32.mrf.mxu0
  %v2912 = vadd.f32 0.0, %v2911
  %v2913 = vpop.f32.mrf.mxu0
  %v2914 = vadd.f32 0.0, %v2913
  %2915 = vmatmul.bf16.gmra.mxu0 %v2764
  %v2916 = vpop.f32.mrf.mxu0
  %v2917 = vadd.f32 0.0, %v2916
  %v2918 = vpop.f32.mrf.mxu0
  %v2919 = vadd.f32 0.0, %v2918
  %2920 = vdwg.mxu0
  %2921 = vmatpush.bf16.msra.mxu0 %v2845
  %2922 = vmatpush.bf16.msra.mxu0 %v2843
  %2923 = vmatpush.bf16.msra.mxu0 %v2841
  %2924 = vmatpush.bf16.msra.mxu0 %v2839
  %2925 = vmatpush.bf16.msra.mxu0 %v2837
  %2926 = vmatpush.bf16.msra.mxu0 %v2835
  %2927 = vmatpush.bf16.msra.mxu0 %v2833
  %2928 = vmatpush.bf16.msra.mxu0 %v2831
  %2929 = vmatmul.bf16.gmra.mxu0 %v2755
  %v2930 = vpop.f32.mrf.mxu0
  %v2931 = vadd.f32 0.0, %v2930
  %v2932 = vpop.f32.mrf.mxu0
  %v2933 = vadd.f32 0.0, %v2932
  %2934 = vmatmul.bf16.gmra.mxu0 %v2756
  %v2935 = vpop.f32.mrf.mxu0
  %v2936 = vadd.f32 0.0, %v2935
  %v2937 = vpop.f32.mrf.mxu0
  %v2938 = vadd.f32 0.0, %v2937
  %2939 = vmatmul.bf16.gmra.mxu0 %v2757
  %v2940 = vpop.f32.mrf.mxu0
  %v2941 = vadd.f32 0.0, %v2940
  %v2942 = vpop.f32.mrf.mxu0
  %v2943 = vadd.f32 0.0, %v2942
  %2944 = vmatmul.bf16.gmra.mxu0 %v2758
  %v2945 = vpop.f32.mrf.mxu0
  %v2946 = vadd.f32 0.0, %v2945
  %v2947 = vpop.f32.mrf.mxu0
  %v2948 = vadd.f32 0.0, %v2947
  %2949 = vmatmul.bf16.gmra.mxu0 %v2759
  %v2950 = vpop.f32.mrf.mxu0
  %v2951 = vadd.f32 0.0, %v2950
  %v2952 = vpop.f32.mrf.mxu0
  %v2953 = vadd.f32 0.0, %v2952
  %2954 = vmatmul.bf16.gmra.mxu0 %v2760
  %v2955 = vpop.f32.mrf.mxu0
  %v2956 = vadd.f32 0.0, %v2955
  %v2957 = vpop.f32.mrf.mxu0
  %v2958 = vadd.f32 0.0, %v2957
  %2959 = vmatmul.bf16.gmra.mxu0 %v2761
  %v2960 = vpop.f32.mrf.mxu0
  %v2961 = vadd.f32 0.0, %v2960
  %v2962 = vpop.f32.mrf.mxu0
  %v2963 = vadd.f32 0.0, %v2962
  %2964 = vmatmul.bf16.gmra.mxu0 %v2762
  %v2965 = vpop.f32.mrf.mxu0
  %v2966 = vadd.f32 0.0, %v2965
  %v2967 = vpop.f32.mrf.mxu0
  %v2968 = vadd.f32 0.0, %v2967
  %2969 = vmatmul.bf16.gmra.mxu0 %v2763
  %v2970 = vpop.f32.mrf.mxu0
  %v2971 = vadd.f32 0.0, %v2970
  %v2972 = vpop.f32.mrf.mxu0
  %v2973 = vadd.f32 0.0, %v2972
  %2974 = vmatmul.bf16.gmra.mxu0 %v2764
  %v2975 = vpop.f32.mrf.mxu0
  %v2976 = vadd.f32 0.0, %v2975
  %v2977 = vpop.f32.mrf.mxu0
  %v2978 = vadd.f32 0.0, %v2977
  %2979 = vdwg.mxu0
  %v2980 = vld [vmem:[#allocation3] sm:$0xff]
  %v2981 = vld [vmem:[#allocation3 + $0x8] sm:$0xff]
  %v2982 = vld [vmem:[#allocation3 + $0x10] sm:$0xff]
  %v2983 = vld [vmem:[#allocation3 + $0x18] sm:$0xff]
  %v2984 = vld [vmem:[#allocation3 + $0x20] sm:$0xff]
  %v2985 = vld [vmem:[#allocation3 + $0x28] sm:$0xff]
  %v2986 = vld [vmem:[#allocation3 + $0x30] sm:$0xff]
  %v2987 = vld [vmem:[#allocation3 + $0x38] sm:$0xff]
  %v2988 = vld [vmem:[#allocation3 + $0x40] sm:$0xff]
  %v2989 = vld [vmem:[#allocation3 + $0x48] sm:$0xff]
  %v2990 = vld [vmem:[#allocation3 + $0x50] sm:$0xff]
  %v2991 = vld [vmem:[#allocation3 + $0x58] sm:$0xff]
  %v2992 = vld [vmem:[#allocation3 + $0x60] sm:$0xff]
  %v2993 = vld [vmem:[#allocation3 + $0x68] sm:$0xff]
  %v2994 = vld [vmem:[#allocation3 + $0x70] sm:$0xff]
  %v2995 = vld [vmem:[#allocation3 + $0x78] sm:$0xff]
  %v2996 = vld [vmem:[#allocation3 + $0x80] sm:$0xff]
  %v2997 = vld [vmem:[#allocation3 + $0x88] sm:$0xff]
  %v2998 = vld [vmem:[#allocation3 + $0x90] sm:$0xff]
  %v2999 = vld [vmem:[#allocation3 + $0x98] sm:$0xff]
  %v3000 = vld [vmem:[#allocation3 + $0xa0] sm:$0xff]
  %v3001 = vld [vmem:[#allocation3 + $0xa8] sm:$0xff]
  %v3002 = vld [vmem:[#allocation3 + $0xb0] sm:$0xff]
  %v3003 = vld [vmem:[#allocation3 + $0xb8] sm:$0xff]
  %v3004 = vld [vmem:[#allocation3 + $0xc0] sm:$0xff]
  %v3005 = vld [vmem:[#allocation3 + $0xc8] sm:$0xff]
  %v3006 = vld [vmem:[#allocation3 + $0xd0] sm:$0xff]
  %v3007 = vld [vmem:[#allocation3 + $0xd8] sm:$0xff]
  %v3008 = vld [vmem:[#allocation3 + $0xe0] sm:$0xff]
  %v3009 = vld [vmem:[#allocation3 + $0xe8] sm:$0xff]
  %v3010 = vld [vmem:[#allocation3 + $0xf0] sm:$0xff]
  %v3011 = vld [vmem:[#allocation3 + $0xf8] sm:$0xff]
  %v3012 = vld [vmem:[#allocation3 + $0x100] sm:$0xff]
  %v3013 = vld [vmem:[#allocation3 + $0x108] sm:$0xff]
  %v3014 = vld [vmem:[#allocation3 + $0x110] sm:$0xff]
  %v3015 = vld [vmem:[#allocation3 + $0x118] sm:$0xff]
  %v3016 = vld [vmem:[#allocation3 + $0x120] sm:$0xff]
  %v3017 = vld [vmem:[#allocation3 + $0x128] sm:$0xff]
  %v3018 = vld [vmem:[#allocation3 + $0x130] sm:$0xff]
  %v3019 = vld [vmem:[#allocation3 + $0x138] sm:$0xff]
  %v3020 = vadd.f32 %v2980, %v2872
  %v3021 = vadd.f32 %v2981, %v2931
  %v3022 = vadd.f32 %v2982, %v2874
  %v3023 = vadd.f32 %v2983, %v2933
  %v3024 = vadd.f32 %v2984, %v2877
  %v3025 = vadd.f32 %v2985, %v2936
  %v3026 = vadd.f32 %v2986, %v2879
  %v3027 = vadd.f32 %v2987, %v2938
  %v3028 = vadd.f32 %v2988, %v2882
  %v3029 = vadd.f32 %v2989, %v2941
  %v3030 = vadd.f32 %v2990, %v2884
  %v3031 = vadd.f32 %v2991, %v2943
  %v3032 = vadd.f32 %v2992, %v2887
  %v3033 = vadd.f32 %v2993, %v2946
  %v3034 = vadd.f32 %v2994, %v2889
  %v3035 = vadd.f32 %v2995, %v2948
  %v3036 = vadd.f32 %v2996, %v2892
  %v3037 = vadd.f32 %v2997, %v2951
  %v3038 = vadd.f32 %v2998, %v2894
  %v3039 = vadd.f32 %v2999, %v2953
  %v3040 = vadd.f32 %v3000, %v2897
  %v3041 = vadd.f32 %v3001, %v2956
  %v3042 = vadd.f32 %v3002, %v2899
  %v3043 = vadd.f32 %v3003, %v2958
  %v3044 = vadd.f32 %v3004, %v2902
  %v3045 = vadd.f32 %v3005, %v2961
  %v3046 = vadd.f32 %v3006, %v2904
  %v3047 = vadd.f32 %v3007, %v2963
  %v3048 = vadd.f32 %v3008, %v2907
  %v3049 = vadd.f32 %v3009, %v2966
  %v3050 = vadd.f32 %v3010, %v2909
  %v3051 = vadd.f32 %v3011, %v2968
  %v3052 = vadd.f32 %v3012, %v2912
  %v3053 = vadd.f32 %v3013, %v2971
  %v3054 = vadd.f32 %v3014, %v2914
  %v3055 = vadd.f32 %v3015, %v2973
  %v3056 = vadd.f32 %v3016, %v2917
  %v3057 = vadd.f32 %v3017, %v2976
  %v3058 = vadd.f32 %v3018, %v2919
  %v3059 = vadd.f32 %v3019, %v2978
  %3060 = vst [vmem:[#allocation3] sm:$0xff] %v3020
  %3061 = vst [vmem:[#allocation3 + $0x8] sm:$0xff] %v3021
  %3062 = vst [vmem:[#allocation3 + $0x10] sm:$0xff] %v3022
  %3063 = vst [vmem:[#allocation3 + $0x18] sm:$0xff] %v3023
  %3064 = vst [vmem:[#allocation3 + $0x20] sm:$0xff] %v3024
  %3065 = vst [vmem:[#allocation3 + $0x28] sm:$0xff] %v3025
  %3066 = vst [vmem:[#allocation3 + $0x30] sm:$0xff] %v3026
  %3067 = vst [vmem:[#allocation3 + $0x38] sm:$0xff] %v3027
  %3068 = vst [vmem:[#allocation3 + $0x40] sm:$0xff] %v3028
  %3069 = vst [vmem:[#allocation3 + $0x48] sm:$0xff] %v3029
  %3070 = vst [vmem:[#allocation3 + $0x50] sm:$0xff] %v3030
  %3071 = vst [vmem:[#allocation3 + $0x58] sm:$0xff] %v3031
  %3072 = vst [vmem:[#allocation3 + $0x60] sm:$0xff] %v3032
  %3073 = vst [vmem:[#allocation3 + $0x68] sm:$0xff] %v3033
  %3074 = vst [vmem:[#allocation3 + $0x70] sm:$0xff] %v3034
  %3075 = vst [vmem:[#allocation3 + $0x78] sm:$0xff] %v3035
  %3076 = vst [vmem:[#allocation3 + $0x80] sm:$0xff] %v3036
  %3077 = vst [vmem:[#allocation3 + $0x88] sm:$0xff] %v3037
  %3078 = vst [vmem:[#allocation3 + $0x90] sm:$0xff] %v3038
  %3079 = vst [vmem:[#allocation3 + $0x98] sm:$0xff] %v3039
  %3080 = vst [vmem:[#allocation3 + $0xa0] sm:$0xff] %v3040
  %3081 = vst [vmem:[#allocation3 + $0xa8] sm:$0xff] %v3041
  %3082 = vst [vmem:[#allocation3 + $0xb0] sm:$0xff] %v3042
  %3083 = vst [vmem:[#allocation3 + $0xb8] sm:$0xff] %v3043
  %3084 = vst [vmem:[#allocation3 + $0xc0] sm:$0xff] %v3044
  %3085 = vst [vmem:[#allocation3 + $0xc8] sm:$0xff] %v3045
  %3086 = vst [vmem:[#allocation3 + $0xd0] sm:$0xff] %v3046
  %3087 = vst [vmem:[#allocation3 + $0xd8] sm:$0xff] %v3047
  %3088 = vst [vmem:[#allocation3 + $0xe0] sm:$0xff] %v3048
  %3089 = vst [vmem:[#allocation3 + $0xe8] sm:$0xff] %v3049
  %3090 = vst [vmem:[#allocation3 + $0xf0] sm:$0xff] %v3050
  %3091 = vst [vmem:[#allocation3 + $0xf8] sm:$0xff] %v3051
  %3092 = vst [vmem:[#allocation3 + $0x100] sm:$0xff] %v3052
  %3093 = vst [vmem:[#allocation3 + $0x108] sm:$0xff] %v3053
  %3094 = vst [vmem:[#allocation3 + $0x110] sm:$0xff] %v3054
  %3095 = vst [vmem:[#allocation3 + $0x118] sm:$0xff] %v3055
  %3096 = vst [vmem:[#allocation3 + $0x120] sm:$0xff] %v3056
  %3097 = vst [vmem:[#allocation3 + $0x128] sm:$0xff] %v3057
  %3098 = vst [vmem:[#allocation3 + $0x130] sm:$0xff] %v3058
  %3099 = vst [vmem:[#allocation3 + $0x138] sm:$0xff] %v3059
  %v3100 = vld [vmem:[#allocation3] sm:$0xff]
  %v3101 = vld [vmem:[#allocation3 + $0x10] sm:$0xff]
  %v3102 = vld [vmem:[#allocation3 + $0x8] sm:$0xff]
  %v3103 = vld [vmem:[#allocation3 + $0x18] sm:$0xff]
  %v3104 = vmax.f32 %v3100, %v3102
  %v3105 = vmax.f32 %v3101, %v3103
  %v3106 = vld [vmem:[#allocation3 + $0x20] sm:$0xff]
  %v3107 = vld [vmem:[#allocation3 + $0x30] sm:$0xff]
  %v3108 = vld [vmem:[#allocation3 + $0x28] sm:$0xff]
  %v3109 = vld [vmem:[#allocation3 + $0x38] sm:$0xff]
  %v3110 = vmax.f32 %v3106, %v3108
  %v3111 = vmax.f32 %v3107, %v3109
  %v3112 = vmax.f32 %v3104, %v3110
  %v3113 = vmax.f32 %v3105, %v3111
  %v3114 = vld [vmem:[%s4] sm:$0x1]
  %v3116 = vperm.slane %v3114, 0
  %v3118 = vadd.f32 %v3112, %v3116
  %v3119 = vadd.f32 %v3113, %v3116
  %v3120 = vmax.f32 %v3118, 0.0
  %v3121 = vmax.f32 %v3119, 0.0
  %3122 = vst [vmem:[#allocation4] sm:$0xff] %v3120
  %3123 = vst [vmem:[#allocation4 + $0x28] sm:$0xff] %v3121
  %v3124 = vld [vmem:[#allocation3 + $0x40] sm:$0xff]
  %v3125 = vld [vmem:[#allocation3 + $0x50] sm:$0xff]
  %v3126 = vld [vmem:[#allocation3 + $0x48] sm:$0xff]
  %v3127 = vld [vmem:[#allocation3 + $0x58] sm:$0xff]
  %v3128 = vmax.f32 %v3124, %v3126
  %v3129 = vmax.f32 %v3125, %v3127
  %v3130 = vld [vmem:[#allocation3 + $0x60] sm:$0xff]
  %v3131 = vld [vmem:[#allocation3 + $0x70] sm:$0xff]
  %v3132 = vld [vmem:[#allocation3 + $0x68] sm:$0xff]
  %v3133 = vld [vmem:[#allocation3 + $0x78] sm:$0xff]
  %v3134 = vmax.f32 %v3130, %v3132
  %v3135 = vmax.f32 %v3131, %v3133
  %v3136 = vmax.f32 %v3128, %v3134
  %v3137 = vmax.f32 %v3129, %v3135
  %v3138 = vld [vmem:[%s4] sm:$0x1]
  %v3140 = vperm.slane %v3138, 0
  %v3142 = vadd.f32 %v3136, %v3140
  %v3143 = vadd.f32 %v3137, %v3140
  %v3144 = vmax.f32 %v3142, 0.0
  %v3145 = vmax.f32 %v3143, 0.0
  %3146 = vst [vmem:[#allocation4 + $0x8] sm:$0xff] %v3144
  %3147 = vst [vmem:[#allocation4 + $0x30] sm:$0xff] %v3145
  %v3148 = vld [vmem:[#allocation3 + $0x80] sm:$0xff]
  %v3149 = vld [vmem:[#allocation3 + $0x90] sm:$0xff]
  %v3150 = vld [vmem:[#allocation3 + $0x88] sm:$0xff]
  %v3151 = vld [vmem:[#allocation3 + $0x98] sm:$0xff]
  %v3152 = vmax.f32 %v3148, %v3150
  %v3153 = vmax.f32 %v3149, %v3151
  %v3154 = vld [vmem:[#allocation3 + $0xa0] sm:$0xff]
  %v3155 = vld [vmem:[#allocation3 + $0xb0] sm:$0xff]
  %v3156 = vld [vmem:[#allocation3 + $0xa8] sm:$0xff]
  %v3157 = vld [vmem:[#allocation3 + $0xb8] sm:$0xff]
  %v3158 = vmax.f32 %v3154, %v3156
  %v3159 = vmax.f32 %v3155, %v3157
  %v3160 = vmax.f32 %v3152, %v3158
  %v3161 = vmax.f32 %v3153, %v3159
  %v3162 = vld [vmem:[%s4] sm:$0x1]
  %v3164 = vperm.slane %v3162, 0
  %v3166 = vadd.f32 %v3160, %v3164
  %v3167 = vadd.f32 %v3161, %v3164
  %v3168 = vmax.f32 %v3166, 0.0
  %v3169 = vmax.f32 %v3167, 0.0
  %3170 = vst [vmem:[#allocation4 + $0x10] sm:$0xff] %v3168
  %3171 = vst [vmem:[#allocation4 + $0x38] sm:$0xff] %v3169
  %v3172 = vld [vmem:[#allocation3 + $0xc0] sm:$0xff]
  %v3173 = vld [vmem:[#allocation3 + $0xd0] sm:$0xff]
  %v3174 = vld [vmem:[#allocation3 + $0xc8] sm:$0xff]
  %v3175 = vld [vmem:[#allocation3 + $0xd8] sm:$0xff]
  %v3176 = vmax.f32 %v3172, %v3174
  %v3177 = vmax.f32 %v3173, %v3175
  %v3178 = vld [vmem:[#allocation3 + $0xe0] sm:$0xff]
  %v3179 = vld [vmem:[#allocation3 + $0xf0] sm:$0xff]
  %v3180 = vld [vmem:[#allocation3 + $0xe8] sm:$0xff]
  %v3181 = vld [vmem:[#allocation3 + $0xf8] sm:$0xff]
  %v3182 = vmax.f32 %v3178, %v3180
  %v3183 = vmax.f32 %v3179, %v3181
  %v3184 = vmax.f32 %v3176, %v3182
  %v3185 = vmax.f32 %v3177, %v3183
  %v3186 = vld [vmem:[%s4] sm:$0x1]
  %v3188 = vperm.slane %v3186, 0
  %v3190 = vadd.f32 %v3184, %v3188
  %v3191 = vadd.f32 %v3185, %v3188
  %v3192 = vmax.f32 %v3190, 0.0
  %v3193 = vmax.f32 %v3191, 0.0
  %3194 = vst [vmem:[#allocation4 + $0x18] sm:$0xff] %v3192
  %3195 = vst [vmem:[#allocation4 + $0x40] sm:$0xff] %v3193
  %v3196 = vld [vmem:[#allocation3 + $0x100] sm:$0xff]
  %v3197 = vld [vmem:[#allocation3 + $0x110] sm:$0xff]
  %v3198 = vld [vmem:[#allocation3 + $0x108] sm:$0xff]
  %v3199 = vld [vmem:[#allocation3 + $0x118] sm:$0xff]
  %v3200 = vmax.f32 %v3196, %v3198
  %v3201 = vmax.f32 %v3197, %v3199
  %v3202 = vld [vmem:[#allocation3 + $0x120] sm:$0xff]
  %v3203 = vld [vmem:[#allocation3 + $0x130] sm:$0xff]
  %v3204 = vld [vmem:[#allocation3 + $0x128] sm:$0xff]
  %v3205 = vld [vmem:[#allocation3 + $0x138] sm:$0xff]
  %v3206 = vmax.f32 %v3202, %v3204
  %v3207 = vmax.f32 %v3203, %v3205
  %v3208 = vmax.f32 %v3200, %v3206
  %v3209 = vmax.f32 %v3201, %v3207
  %v3210 = vld [vmem:[%s4] sm:$0x1]
  %v3212 = vperm.slane %v3210, 0
  %v3214 = vadd.f32 %v3208, %v3212
  %v3215 = vadd.f32 %v3209, %v3212
  %v3216 = vmax.f32 %v3214, 0.0
  %v3217 = vmax.f32 %v3215, 0.0
  %3218 = vst [vmem:[#allocation4 + $0x20] sm:$0xff] %v3216
  %3219 = vst [vmem:[#allocation4 + $0x48] sm:$0xff] %v3217
  %v3220 = vld [vmem:[#allocation4] sm:$0xff]
  %v3221 = vld [vmem:[#allocation4 + $0x8] sm:$0xff]
  %v3222 = vld [vmem:[#allocation4 + $0x10] sm:$0xff]
  %v3223 = vld [vmem:[#allocation4 + $0x18] sm:$0xff]
  %v3224 = vld [vmem:[#allocation4 + $0x20] sm:$0xff]
  %v3225 = vld [vmem:[#allocation4 + $0x28] sm:$0xff]
  %v3226 = vld [vmem:[#allocation4 + $0x30] sm:$0xff]
  %v3227 = vld [vmem:[#allocation4 + $0x38] sm:$0xff]
  %v3228 = vld [vmem:[#allocation4 + $0x40] sm:$0xff]
  %v3229 = vld [vmem:[#allocation4 + $0x48] sm:$0xff]
  %v3230 = vpack.c.bf16 %v3225, %v3220
  %v3231 = vpack.c.bf16 %v3226, %v3221
  %v3232 = vpack.c.bf16 %v3227, %v3222
  %v3233 = vpack.c.bf16 %v3228, %v3223
  %v3234 = vpack.c.bf16 %v3229, %v3224
  %v3235 = vld [vmem:[%s5] sm:$0xf]
  %v3236 = vld [vmem:[%s5 + $0x4] sm:$0xf]
  %v3237 = vld [vmem:[%s5 + $0x8] sm:$0xf]
  %v3238 = vld [vmem:[%s5 + $0xc] sm:$0xf]
  %v3239 = vld [vmem:[%s5 + $0x10] sm:$0xf]
  %v3240 = vld [vmem:[%s5 + $0x14] sm:$0xf]
  %v3241 = vld [vmem:[%s5 + $0x18] sm:$0xf]
  %v3242 = vld [vmem:[%s5 + $0x1c] sm:$0xf]
  %v3243 = vld [vmem:[%s5 + $0x20] sm:$0xf]
  %v3244 = vld [vmem:[%s5 + $0x24] sm:$0xf]
  %v3245 = vld [vmem:[%s5 + $0x28] sm:$0xf]
  %v3246 = vld [vmem:[%s5 + $0x2c] sm:$0xf]
  %v3247 = vld [vmem:[%s5 + $0x30] sm:$0xf]
  %v3248 = vld [vmem:[%s5 + $0x34] sm:$0xf]
  %v3249 = vld [vmem:[%s5 + $0x38] sm:$0xf]
  %v3250 = vld [vmem:[%s5 + $0x3c] sm:$0xf]
  %v3251 = vld [vmem:[%s5 + $0x40] sm:$0xf]
  %v3252 = vld [vmem:[%s5 + $0x44] sm:$0xf]
  %v3253 = vld [vmem:[%s5 + $0x48] sm:$0xf]
  %v3254 = vld [vmem:[%s5 + $0x4c] sm:$0xf]
  %v3255 = vld [vmem:[%s5 + $0x50] sm:$0xf]
  %v3256 = vld [vmem:[%s5 + $0x54] sm:$0xf]
  %v3257 = vld [vmem:[%s5 + $0x58] sm:$0xf]
  %v3258 = vld [vmem:[%s5 + $0x5c] sm:$0xf]
  %v3259 = vld [vmem:[%s5 + $0x60] sm:$0xf]
  %v3260 = vld [vmem:[%s5 + $0x64] sm:$0xf]
  %v3261 = vld [vmem:[%s5 + $0x68] sm:$0xf]
  %v3262 = vld [vmem:[%s5 + $0x6c] sm:$0xf]
  %v3263 = vld [vmem:[%s5 + $0x70] sm:$0xf]
  %v3264 = vld [vmem:[%s5 + $0x74] sm:$0xf]
  %v3265 = vld [vmem:[%s5 + $0x78] sm:$0xf]
  %v3266 = vld [vmem:[%s5 + $0x7c] sm:$0xf]
  %v3267 = vld [vmem:[%s5 + $0x80] sm:$0xf]
  %v3268 = vld [vmem:[%s5 + $0x84] sm:$0xf]
  %v3269 = vld [vmem:[%s5 + $0x88] sm:$0xf]
  %v3270 = vld [vmem:[%s5 + $0x8c] sm:$0xf]
  %v3271 = vld [vmem:[%s5 + $0x90] sm:$0xf]
  %v3272 = vld [vmem:[%s5 + $0x94] sm:$0xf]
  %v3273 = vld [vmem:[%s5 + $0x98] sm:$0xf]
  %v3274 = vld [vmem:[%s5 + $0x9c] sm:$0xf]
  %v3275 = vld [vmem:[%s5 + $0xa0] sm:$0xf]
  %v3276 = vld [vmem:[%s5 + $0xa4] sm:$0xf]
  %v3277 = vld [vmem:[%s5 + $0xa8] sm:$0xf]
  %v3278 = vld [vmem:[%s5 + $0xac] sm:$0xf]
  %v3279 = vld [vmem:[%s5 + $0xb0] sm:$0xf]
  %v3280 = vld [vmem:[%s5 + $0xb4] sm:$0xf]
  %v3281 = vld [vmem:[%s5 + $0xb8] sm:$0xf]
  %v3282 = vld [vmem:[%s5 + $0xbc] sm:$0xf]
  %v3283 = vld [vmem:[%s5 + $0xc0] sm:$0xf]
  %v3284 = vld [vmem:[%s5 + $0xc4] sm:$0xf]
  %v3285 = vld [vmem:[%s5 + $0xc8] sm:$0xf]
  %v3286 = vld [vmem:[%s5 + $0xcc] sm:$0xf]
  %v3287 = vld [vmem:[%s5 + $0xd0] sm:$0xf]
  %v3288 = vld [vmem:[%s5 + $0xd4] sm:$0xf]
  %v3289 = vld [vmem:[%s5 + $0xd8] sm:$0xf]
  %v3290 = vld [vmem:[%s5 + $0xdc] sm:$0xf]
  %v3291 = vld [vmem:[%s5 + $0xe0] sm:$0xf]
  %v3292 = vld [vmem:[%s5 + $0xe4] sm:$0xf]
  %v3293 = vld [vmem:[%s5 + $0xe8] sm:$0xf]
  %v3294 = vld [vmem:[%s5 + $0xec] sm:$0xf]
  %v3295 = vld [vmem:[%s5 + $0xf0] sm:$0xf]
  %v3296 = vld [vmem:[%s5 + $0xf4] sm:$0xf]
  %v3297 = vld [vmem:[%s5 + $0xf8] sm:$0xf]
  %v3298 = vld [vmem:[%s5 + $0xfc] sm:$0xf]
  %v3299 = vld [vmem:[%s5 + $0x100] sm:$0xf]
  %v3300 = vld [vmem:[%s5 + $0x104] sm:$0xf]
  %v3301 = vld [vmem:[%s5 + $0x108] sm:$0xf]
  %v3302 = vld [vmem:[%s5 + $0x10c] sm:$0xf]
  %v3303 = vld [vmem:[%s5 + $0x110] sm:$0xf]
  %v3304 = vld [vmem:[%s5 + $0x114] sm:$0xf]
  %v3305 = vld [vmem:[%s5 + $0x118] sm:$0xf]
  %v3306 = vld [vmem:[%s5 + $0x11c] sm:$0xf]
  %v3307 = vld [vmem:[%s5 + $0x120] sm:$0xf]
  %v3308 = vld [vmem:[%s5 + $0x124] sm:$0xf]
  %v3309 = vld [vmem:[%s5 + $0x128] sm:$0xf]
  %v3310 = vld [vmem:[%s5 + $0x12c] sm:$0xf]
  %v3311 = vld [vmem:[%s5 + $0x130] sm:$0xf]
  %v3312 = vld [vmem:[%s5 + $0x134] sm:$0xf]
  %v3313 = vld [vmem:[%s5 + $0x138] sm:$0xf]
  %v3314 = vld [vmem:[%s5 + $0x13c] sm:$0xf]
  %v3315 = vld [vmem:[%s6] sm:$0x1]
  %v3317 = vperm.slane %v3315, 0
  %v3399 = vunpack.c.l.b16 %v3235
  %v3400 = vunpack.c.l.b16 %v3236
  %v3401 = vunpack.c.l.b16 %v3237
  %v3402 = vunpack.c.l.b16 %v3238
  %v3403 = vunpack.c.l.b16 %v3239
  %v3404 = vunpack.c.l.b16 %v3240
  %v3405 = vunpack.c.l.b16 %v3241
  %v3406 = vunpack.c.l.b16 %v3242
  %v3407 = vunpack.c.l.b16 %v3243
  %v3408 = vunpack.c.l.b16 %v3244
  %v3409 = vunpack.c.l.b16 %v3245
  %v3410 = vunpack.c.l.b16 %v3246
  %v3411 = vunpack.c.l.b16 %v3247
  %v3412 = vunpack.c.l.b16 %v3248
  %v3413 = vunpack.c.l.b16 %v3249
  %v3414 = vunpack.c.l.b16 %v3250
  %v3415 = vunpack.c.l.b16 %v3251
  %v3416 = vunpack.c.l.b16 %v3252
  %v3417 = vunpack.c.l.b16 %v3253
  %v3418 = vunpack.c.l.b16 %v3254
  %v3419 = vunpack.c.l.b16 %v3255
  %v3420 = vunpack.c.l.b16 %v3256
  %v3421 = vunpack.c.l.b16 %v3257
  %v3422 = vunpack.c.l.b16 %v3258
  %v3423 = vunpack.c.l.b16 %v3259
  %v3424 = vunpack.c.l.b16 %v3260
  %v3425 = vunpack.c.l.b16 %v3261
  %v3426 = vunpack.c.l.b16 %v3262
  %v3427 = vunpack.c.l.b16 %v3263
  %v3428 = vunpack.c.l.b16 %v3264
  %v3429 = vunpack.c.l.b16 %v3265
  %v3430 = vunpack.c.l.b16 %v3266
  %v3431 = vunpack.c.l.b16 %v3267
  %v3432 = vunpack.c.l.b16 %v3268
  %v3433 = vunpack.c.l.b16 %v3269
  %v3434 = vunpack.c.l.b16 %v3270
  %v3435 = vunpack.c.l.b16 %v3271
  %v3436 = vunpack.c.l.b16 %v3272
  %v3437 = vunpack.c.l.b16 %v3273
  %v3438 = vunpack.c.l.b16 %v3274
  %v3439 = vunpack.c.l.b16 %v3275
  %v3440 = vunpack.c.l.b16 %v3276
  %v3441 = vunpack.c.l.b16 %v3277
  %v3442 = vunpack.c.l.b16 %v3278
  %v3443 = vunpack.c.l.b16 %v3279
  %v3444 = vunpack.c.l.b16 %v3280
  %v3445 = vunpack.c.l.b16 %v3281
  %v3446 = vunpack.c.l.b16 %v3282
  %v3447 = vunpack.c.l.b16 %v3283
  %v3448 = vunpack.c.l.b16 %v3284
  %v3449 = vunpack.c.l.b16 %v3285
  %v3450 = vunpack.c.l.b16 %v3286
  %v3451 = vunpack.c.l.b16 %v3287
  %v3452 = vunpack.c.l.b16 %v3288
  %v3453 = vunpack.c.l.b16 %v3289
  %v3454 = vunpack.c.l.b16 %v3290
  %v3455 = vunpack.c.l.b16 %v3291
  %v3456 = vunpack.c.l.b16 %v3292
  %v3457 = vunpack.c.l.b16 %v3293
  %v3458 = vunpack.c.l.b16 %v3294
  %v3459 = vunpack.c.l.b16 %v3295
  %v3460 = vunpack.c.l.b16 %v3296
  %v3461 = vunpack.c.l.b16 %v3297
  %v3462 = vunpack.c.l.b16 %v3298
  %v3463 = vunpack.c.l.b16 %v3299
  %v3464 = vunpack.c.l.b16 %v3300
  %v3465 = vunpack.c.l.b16 %v3301
  %v3466 = vunpack.c.l.b16 %v3302
  %v3467 = vunpack.c.l.b16 %v3303
  %v3468 = vunpack.c.l.b16 %v3304
  %v3469 = vunpack.c.l.b16 %v3305
  %v3470 = vunpack.c.l.b16 %v3306
  %v3471 = vunpack.c.l.b16 %v3307
  %v3472 = vunpack.c.l.b16 %v3308
  %v3473 = vunpack.c.l.b16 %v3309
  %v3474 = vunpack.c.l.b16 %v3310
  %v3475 = vunpack.c.l.b16 %v3311
  %v3476 = vunpack.c.l.b16 %v3312
  %v3477 = vunpack.c.l.b16 %v3313
  %v3478 = vunpack.c.l.b16 %v3314
  %v3479 = vpack.c.b16 %v3400, %v3399
  %v3480 = vpack.c.b16 %v3402, %v3401
  %v3481 = vpack.c.b16 %v3404, %v3403
  %v3482 = vpack.c.b16 %v3406, %v3405
  %v3483 = vpack.c.b16 %v3408, %v3407
  %v3484 = vpack.c.b16 %v3410, %v3409
  %v3485 = vpack.c.b16 %v3412, %v3411
  %v3486 = vpack.c.b16 %v3414, %v3413
  %v3487 = vpack.c.b16 %v3416, %v3415
  %v3488 = vpack.c.b16 %v3418, %v3417
  %v3489 = vpack.c.b16 %v3420, %v3419
  %v3490 = vpack.c.b16 %v3422, %v3421
  %v3491 = vpack.c.b16 %v3424, %v3423
  %v3492 = vpack.c.b16 %v3426, %v3425
  %v3493 = vpack.c.b16 %v3428, %v3427
  %v3494 = vpack.c.b16 %v3430, %v3429
  %v3495 = vpack.c.b16 %v3432, %v3431
  %v3496 = vpack.c.b16 %v3434, %v3433
  %v3497 = vpack.c.b16 %v3436, %v3435
  %v3498 = vpack.c.b16 %v3438, %v3437
  %v3499 = vpack.c.b16 %v3440, %v3439
  %v3500 = vpack.c.b16 %v3442, %v3441
  %v3501 = vpack.c.b16 %v3444, %v3443
  %v3502 = vpack.c.b16 %v3446, %v3445
  %v3503 = vpack.c.b16 %v3448, %v3447
  %v3504 = vpack.c.b16 %v3450, %v3449
  %v3505 = vpack.c.b16 %v3452, %v3451
  %v3506 = vpack.c.b16 %v3454, %v3453
  %v3507 = vpack.c.b16 %v3456, %v3455
  %v3508 = vpack.c.b16 %v3458, %v3457
  %v3509 = vpack.c.b16 %v3460, %v3459
  %v3510 = vpack.c.b16 %v3462, %v3461
  %v3511 = vpack.c.b16 %v3464, %v3463
  %v3512 = vpack.c.b16 %v3466, %v3465
  %v3513 = vpack.c.b16 %v3468, %v3467
  %v3514 = vpack.c.b16 %v3470, %v3469
  %v3515 = vpack.c.b16 %v3472, %v3471
  %v3516 = vpack.c.b16 %v3474, %v3473
  %v3517 = vpack.c.b16 %v3476, %v3475
  %v3518 = vpack.c.b16 %v3478, %v3477
  %3559 = vmatpush.bf16.msra.mxu0 %v3486
  %3560 = vmatpush.bf16.msra.mxu0 %v3485
  %3561 = vmatpush.bf16.msra.mxu0 %v3484
  %3562 = vmatpush.bf16.msra.mxu0 %v3483
  %3563 = vmatpush.bf16.msra.mxu0 %v3482
  %3564 = vmatpush.bf16.msra.mxu0 %v3481
  %3565 = vmatpush.bf16.msra.mxu0 %v3480
  %3566 = vmatpush.bf16.msra.mxu0 %v3479
  %3567 = vmatmul.bf16.gmra.mxu0 %v3230
  %v3568 = vpop.f32.mrf.mxu0
  %v3569 = vadd.f32 %v3317, %v3568
  %v3570 = vpop.f32.mrf.mxu0
  %v3571 = vadd.f32 %v3317, %v3570
  %3572 = vdwg.mxu0
  %3573 = vmatpush.bf16.msra.mxu0 %v3494
  %3574 = vmatpush.bf16.msra.mxu0 %v3493
  %3575 = vmatpush.bf16.msra.mxu0 %v3492
  %3576 = vmatpush.bf16.msra.mxu0 %v3491
  %3577 = vmatpush.bf16.msra.mxu0 %v3490
  %3578 = vmatpush.bf16.msra.mxu0 %v3489
  %3579 = vmatpush.bf16.msra.mxu0 %v3488
  %3580 = vmatpush.bf16.msra.mxu0 %v3487
  %3581 = vmatmul.bf16.gmra.mxu0 %v3231
  %v3582 = vpop.f32.mrf.mxu0
  %v3583 = vadd.f32 %v3569, %v3582
  %v3584 = vpop.f32.mrf.mxu0
  %v3585 = vadd.f32 %v3571, %v3584
  %3586 = vdwg.mxu0
  %3587 = vmatpush.bf16.msra.mxu0 %v3502
  %3588 = vmatpush.bf16.msra.mxu0 %v3501
  %3589 = vmatpush.bf16.msra.mxu0 %v3500
  %3590 = vmatpush.bf16.msra.mxu0 %v3499
  %3591 = vmatpush.bf16.msra.mxu0 %v3498
  %3592 = vmatpush.bf16.msra.mxu0 %v3497
  %3593 = vmatpush.bf16.msra.mxu0 %v3496
  %3594 = vmatpush.bf16.msra.mxu0 %v3495
  %3595 = vmatmul.bf16.gmra.mxu0 %v3232
  %v3596 = vpop.f32.mrf.mxu0
  %v3597 = vadd.f32 %v3583, %v3596
  %v3598 = vpop.f32.mrf.mxu0
  %v3599 = vadd.f32 %v3585, %v3598
  %3600 = vdwg.mxu0
  %3601 = vmatpush.bf16.msra.mxu0 %v3510
  %3602 = vmatpush.bf16.msra.mxu0 %v3509
  %3603 = vmatpush.bf16.msra.mxu0 %v3508
  %3604 = vmatpush.bf16.msra.mxu0 %v3507
  %3605 = vmatpush.bf16.msra.mxu0 %v3506
  %3606 = vmatpush.bf16.msra.mxu0 %v3505
  %3607 = vmatpush.bf16.msra.mxu0 %v3504
  %3608 = vmatpush.bf16.msra.mxu0 %v3503
  %3609 = vmatmul.bf16.gmra.mxu0 %v3233
  %v3610 = vpop.f32.mrf.mxu0
  %v3611 = vadd.f32 %v3597, %v3610
  %v3612 = vpop.f32.mrf.mxu0
  %v3613 = vadd.f32 %v3599, %v3612
  %3614 = vdwg.mxu0
  %3615 = vmatpush.bf16.msra.mxu0 %v3518
  %3616 = vmatpush.bf16.msra.mxu0 %v3517
  %3617 = vmatpush.bf16.msra.mxu0 %v3516
  %3618 = vmatpush.bf16.msra.mxu0 %v3515
  %3619 = vmatpush.bf16.msra.mxu0 %v3514
  %3620 = vmatpush.bf16.msra.mxu0 %v3513
  %3621 = vmatpush.bf16.msra.mxu0 %v3512
  %3622 = vmatpush.bf16.msra.mxu0 %v3511
  %3623 = vmatmul.bf16.gmra.mxu0 %v3234
  %v3624 = vpop.f32.mrf.mxu0
  %v3625 = vadd.f32 %v3611, %v3624
  %v3626 = vpop.f32.mrf.mxu0
  %v3627 = vadd.f32 %v3613, %v3626
  %3628 = vdwg.mxu0
  %v3629 = vmax.f32 %v3625, 0.0
  %v3630 = vmax.f32 %v3627, 0.0
  %v3631 = vpack.c.bf16 %v3630, %v3629
  %v3632 = vld [vmem:[%s7] sm:$0xf]
  %v3633 = vld [vmem:[%s7 + $0x4] sm:$0xf]
  %v3634 = vld [vmem:[%s7 + $0x8] sm:$0xf]
  %v3635 = vld [vmem:[%s7 + $0xc] sm:$0xf]
  %v3636 = vld [vmem:[%s7 + $0x10] sm:$0xf]
  %v3637 = vld [vmem:[%s7 + $0x14] sm:$0xf]
  %v3638 = vld [vmem:[%s7 + $0x18] sm:$0xf]
  %v3639 = vld [vmem:[%s7 + $0x1c] sm:$0xf]
  %v3640 = vld [vmem:[%s7 + $0x20] sm:$0xf]
  %v3641 = vld [vmem:[%s7 + $0x24] sm:$0xf]
  %v3642 = vld [vmem:[%s7 + $0x28] sm:$0xf]
  %v3643 = vld [vmem:[%s7 + $0x2c] sm:$0xf]
  %v3644 = vld [vmem:[%s7 + $0x30] sm:$0xf]
  %v3645 = vld [vmem:[%s7 + $0x34] sm:$0xf]
  %v3646 = vld [vmem:[%s7 + $0x38] sm:$0xf]
  %v3647 = vld [vmem:[%s8] sm:$0x1]
  %v3649 = vperm.slane %v3647, 0
  %v3666 = vunpack.c.l.b16 %v3632
  %v3667 = vunpack.c.l.b16 %v3633
  %v3668 = vunpack.c.l.b16 %v3634
  %v3669 = vunpack.c.l.b16 %v3635
  %v3670 = vunpack.c.l.b16 %v3636
  %v3671 = vunpack.c.l.b16 %v3637
  %v3672 = vunpack.c.l.b16 %v3638
  %v3673 = vunpack.c.l.b16 %v3639
  %v3674 = vunpack.c.l.b16 %v3640
  %v3675 = vunpack.c.l.b16 %v3641
  %v3676 = vunpack.c.l.b16 %v3642
  %v3677 = vunpack.c.l.b16 %v3643
  %v3678 = vunpack.c.l.b16 %v3644
  %v3679 = vunpack.c.l.b16 %v3645
  %v3680 = vunpack.c.l.b16 %v3646
  %v3681 = vpack.c.b16 %v3667, %v3666
  %v3682 = vpack.c.b16 %v3669, %v3668
  %v3683 = vpack.c.b16 %v3671, %v3670
  %v3684 = vpack.c.b16 %v3673, %v3672
  %v3685 = vpack.c.b16 %v3675, %v3674
  %v3686 = vpack.c.b16 %v3677, %v3676
  %v3687 = vpack.c.b16 %v3679, %v3678
  %v3688 = vpack.c.b16 %v3680, %v3680
  %vm3696 = vcmask 982016
  %v3698 = vsel %vm3696, %v3631, 0
  %vm3700 = vcmask 1043456
  %v3702 = vsel %vm3700, %v3688, 0
  %3704 = vmatpush.bf16.msra.mxu0 %v3702
  %3705 = vmatpush.bf16.msra.mxu0 %v3687
  %3706 = vmatpush.bf16.msra.mxu0 %v3686
  %3707 = vmatpush.bf16.msra.mxu0 %v3685
  %3708 = vmatpush.bf16.msra.mxu0 %v3684
  %3709 = vmatpush.bf16.msra.mxu0 %v3683
  %3710 = vmatpush.bf16.msra.mxu0 %v3682
  %3711 = vmatpush.bf16.msra.mxu0 %v3681
  %3712 = vmatmul.bf16.gmra.mxu0 %v3698
  %v3713 = vpop.f32.mrf.mxu0
  %v3714 = vadd.f32 %v3649, %v3713
  %v3715 = vpop.f32.mrf.mxu0
  %v3716 = vadd.f32 %v3649, %v3715
  %3717 = vdwg.mxu0
  %v3718 = vmax.f32 %v3714, 0.0
  %v3719 = vmax.f32 %v3716, 0.0
  %v3720 = vpack.c.bf16 %v3719, %v3718
  %v3721 = vld [vmem:[%s9] sm:$0xf]
  %v3722 = vld [vmem:[%s9 + $0x4] sm:$0xf]
  %v3723 = vld [vmem:[%s9 + $0x8] sm:$0xf]
  %v3724 = vld [vmem:[%s9 + $0xc] sm:$0xf]
  %v3725 = vld [vmem:[%s9 + $0x10] sm:$0xf]
  %v3726 = vld [vmem:[%s9 + $0x14] sm:$0xf]
  %v3727 = vld [vmem:[%s9 + $0x18] sm:$0xf]
  %v3728 = vld [vmem:[%s9 + $0x1c] sm:$0xf]
  %v3729 = vld [vmem:[%s9 + $0x20] sm:$0xf]
  %v3730 = vld [vmem:[%s9 + $0x24] sm:$0xf]
  %v3731 = vld [vmem:[%s9 + $0x28] sm:$0x3]
  %v3732 = vld [vmem:[%s10] sm:$0x1]
  %v3734 = vperm.slane %v3732, 0
  %v3747 = vunpack.c.l.b16 %v3721
  %v3748 = vunpack.c.l.b16 %v3722
  %v3749 = vunpack.c.l.b16 %v3723
  %v3750 = vunpack.c.l.b16 %v3724
  %v3751 = vunpack.c.l.b16 %v3725
  %v3752 = vunpack.c.l.b16 %v3726
  %v3753 = vunpack.c.l.b16 %v3727
  %v3754 = vunpack.c.l.b16 %v3728
  %v3755 = vunpack.c.l.b16 %v3729
  %v3756 = vunpack.c.l.b16 %v3730
  %v3757 = vunpack.c.l.b16 %v3731
  %v3758 = vpack.c.b16 %v3748, %v3747
  %v3759 = vpack.c.b16 %v3750, %v3749
  %v3760 = vpack.c.b16 %v3752, %v3751
  %v3761 = vpack.c.b16 %v3754, %v3753
  %v3762 = vpack.c.b16 %v3756, %v3755
  %v3763 = vpack.c.b16 %v3757, %v3757
  %vm3769 = vcmask 687104
  %v3771 = vsel %vm3769, %v3720, 0
  %vm3773 = vcmask 1041408
  %v3775 = vsel %vm3773, %v3763, 0
  %3777 = vmatpush.bf16.msra.mxu0 0
  %3778 = vmatpush.bf16.msra.mxu0 0
  %3779 = vmatpush.bf16.msra.mxu0 %v3775
  %3780 = vmatpush.bf16.msra.mxu0 %v3762
  %3781 = vmatpush.bf16.msra.mxu0 %v3761
  %3782 = vmatpush.bf16.msra.mxu0 %v3760
  %3783 = vmatpush.bf16.msra.mxu0 %v3759
  %3784 = vmatpush.bf16.msra.mxu0 %v3758
  %3785 = vmatmul.bf16.gmra.mxu0 %v3771
  %v3786 = vpop.f32.mrf.mxu0
  %v3787 = vadd.f32 %v3734, %v3786
  %v3788 = vpop.f32.mrf.mxu0
  %v3789 = vadd.f32 %v3734, %v3788
  %3790 = vdwg.mxu0
  %3791 = vst [vmem:[%s11] sm:$0xff] %v3787
  %3792 = vst [vmem:[%s11 + $0x8] sm:$0xff] %v3789
  // Predicated region
  $region46: #{lenet_forward.1} parent=0 // pred_check
    _
  $region47: #{lenet_forward.1} parent=0 // pred_check_branch
    %3794 = sbr.rel (0) target = $region49
  $region48: #{lenet_forward.1} parent=0 // pred_region
    _
  $region49: #{lenet_forward.1} parent=0 // pred_fallthru
    _
  // Predicated region
  $region50: #{lenet_forward.1} parent=0 // pred_check
    _
  $region51: #{lenet_forward.1} parent=0 // pred_check_branch
    %3796 = sbr.rel (0) target = $region53
  $region52: #{lenet_forward.1} parent=0 // pred_region
    _
  $region53: #{lenet_forward.1} parent=0 // pred_fallthru
    _

</llo_original>
